<compile_context>
chip_gen: v7x
topology: tpu7x:2x2x1
jax: 0.10.0
libtpu: 0.0.40
codegen_flags: <defaults>
</compile_context>

<pallas_src>
import functools
import math

import numpy as np
import jax
import jax.numpy as jnp
from jax import lax
from jax.experimental import pallas as pl
from jax.experimental.pallas import tpu as pltpu

# ---- config (mirrors the PyTorch Config) ----
D_MODEL = 20
N_HEADS = 2
DIM_K = D_MODEL // N_HEADS          # 10
DIM_V = D_MODEL // N_HEADS          # 10
HD_K = DIM_K // N_HEADS             # 5 (width of one chunk of the raw reshape split)
HD_V = DIM_V // N_HEADS             # 5
FF_HIDDEN = 2048
LN_EPS = 1e-5
SCALE = 1.0 / math.sqrt(D_MODEL)    # norm_fact = 1/sqrt(d_model)


@functools.lru_cache(maxsize=None)
def _positional_encoding_np(seq_len, d_model, batch):
    # Exactly the reference formula (uses 2*i, not 2*(i//2)).  The Decoder always
    # calls it with embedding_dim == d_model, and d_model is used in the
    # 10000**(2*i/d_model) exponent.
    pe = np.zeros((seq_len, d_model), dtype=np.float64)
    for pos in range(seq_len):
        for i in range(d_model):
            angle = pos / (10000 ** (2 * i / d_model))
            pe[pos, i] = math.sin(angle) if i % 2 == 0 else math.cos(angle)
    return np.tile(pe.astype(np.float32), (batch, 1))


@functools.lru_cache(maxsize=None)
def _constants_np(batch, seq):
    # gmask[r, g*HD_K + d] = 1.0 iff token-row r belongs to reshape-group g.
    # The reference's raw row-major split of (B,S,dim_k) into (n_heads,B,S,hd)
    # makes group g = (seq // n_heads) consecutive token rows (needs seq % n_heads == 0).
    t = batch * seq
    rows_per_group = seq // N_HEADS
    n_groups = batch * N_HEADS
    r = np.arange(t)[:, None]
    c = np.arange(n_groups * HD_K)[None, :]
    gmask = (c // HD_K == r // rows_per_group).astype(np.float32)
    # pavg @ z followed by a lane-sum gives, per row, the mean over that row's
    # whole per-batch (S, D) slice -> vectorized LayerNorm statistics.
    same_batch = (np.arange(t)[:, None] // seq) == (np.arange(t)[None, :] // seq)
    pavg = same_batch.astype(np.float32) / float(seq * D_MODEL)
    return gmask, pavg


def _decoder_kernel(x_ref, enc_ref, pe_ref, gmask_ref, pavg_ref,
                    wq_ref, bq_ref, wk_ref, bk_ref, wv_ref, bv_ref,
                    wo_ref, bo_ref, b1_ref, b2_ref, w1_hbm, w2_hbm,
                    o_ref, w1_vmem, w2_vmem, dma_sem):
    f32 = jnp.float32

    # (perf) Start the FF weight DMAs first so the HBM->VMEM copies (~320 KB)
    # overlap the attention + LayerNorm#1 chain; only the FF matmuls wait.
    cp_w1 = pltpu.make_async_copy(w1_hbm, w1_vmem, dma_sem.at[0])
    cp_w2 = pltpu.make_async_copy(w2_hbm, w2_vmem, dma_sem.at[1])
    cp_w1.start()
    cp_w2.start()

    x = x_ref[...] + pe_ref[...]              # (T, D)   x += positional_encoding
    enc = enc_ref[...]                        # (T, D)
    gmask = gmask_ref[...]                    # (T, G*HD_K) row-group column mask
    pavg = pavg_ref[...]                      # (T, T)     per-batch averaging matrix

    def proj(inp, w, b):
        return jnp.dot(inp, w, preferred_element_type=f32) + b

    # ---------------- multi-head attention (raw reshape semantics) ----------------
    # Reassociated:  M_g = sum_j Kp_g[j]^T @ Vp_g[j]  (5x5 per group), then
    # out_i = Qp_g[i] @ M_g.  Per-head weights are pre-tiled over the groups on
    # the host, so group selection is one constant mask multiply -> no in-kernel
    # slicing/reshaping/concatenation.  SCALE is folded into wq/bq host-side.
    # No softmax; the reference's mask has no effect (masked_fill discarded).
    m_stack = None                                         # (G*HD_K, HD_V)
    for j in range(N_HEADS):
        k_big = gmask * proj(x, wk_ref[j], bk_ref[j])      # (T, G*HD_K)
        v_j = proj(enc, wv_ref[j], bv_ref[j])              # (T, HD_V)
        part = lax.dot_general(k_big, v_j, (((0,), (0,)), ((), ())),
                               preferred_element_type=f32)
        m_stack = part if m_stack is None else m_stack + part

    attn = bo_ref[...]                                     # (1, D), broadcasts
    for i in range(N_HEADS):
        q_big = gmask * proj(x, wq_ref[i], bq_ref[i])      # (T, G*HD_K), SCALE folded in
        head = jnp.dot(q_big, m_stack, preferred_element_type=f32)      # (T, HD_V)
        attn = attn + jnp.dot(head, wo_ref[i], preferred_element_type=f32)

    # --------------- Add & Norm (vectorized per-batch LayerNorm) ------------------
    # nn.LayerNorm(x.size()[1:]) normalizes over the whole (S, D) slice per batch
    # element, weight=1, bias=0, eps=1e-5; dropout is eval-mode identity.
    def add_norm(a, b):
        z = a + b
        mean = jnp.sum(jnp.dot(pavg, z, preferred_element_type=f32),
                       axis=-1, keepdims=True)             # (T, 1) per-batch mean
        zc = z - mean
        var = jnp.sum(jnp.dot(pavg, zc * zc, preferred_element_type=f32),
                      axis=-1, keepdims=True)              # biased variance
        return zc * lax.rsqrt(var + LN_EPS)

    y = add_norm(x, attn)

    # --------------- feed-forward (weights arrive via the overlapped DMA) ---------
    cp_w1.wait()
    cp_w2.wait()
    h = jnp.maximum(proj(y, w1_vmem[...], b1_ref[...]), 0.0)   # (T, 2048), stays in VMEM
    ff = proj(h, w2_vmem[...], b2_ref[...])                    # (T, D)

    # --------------- Add & Norm #2 ---------------
    o_ref[...] = add_norm(y, ff).astype(o_ref.dtype)


def prepare_params(params, batch):
    """One-time host-side weight prep: fold SCALE into Q, split per head, and
    tile each head's columns over the reshape groups so the kernel needs no
    slicing/tiling; split the output projection per head."""
    n_groups = batch * N_HEADS

    def tile_groups(w):                       # (., HD) -> (., n_groups*HD)
        return jnp.tile(w, (1, n_groups))

    wq = params["wq"] * SCALE
    bq = params["bq"] * SCALE
    wqh = jnp.stack([tile_groups(wq[:, i * HD_K:(i + 1) * HD_K]) for i in range(N_HEADS)])
    bqh = jnp.stack([tile_groups(bq[:, i * HD_K:(i + 1) * HD_K]) for i in range(N_HEADS)])
    wkh = jnp.stack([tile_groups(params["wk"][:, j * HD_K:(j + 1) * HD_K]) for j in range(N_HEADS)])
    bkh = jnp.stack([tile_groups(params["bk"][:, j * HD_K:(j + 1) * HD_K]) for j in range(N_HEADS)])
    wvh = jnp.stack([params["wv"][:, j * HD_V:(j + 1) * HD_V] for j in range(N_HEADS)])
    bvh = jnp.stack([params["bv"][:, j * HD_V:(j + 1) * HD_V] for j in range(N_HEADS)])
    woh = jnp.stack([params["wo"][i * HD_V:(i + 1) * HD_V, :] for i in range(N_HEADS)])
    return dict(wqh=wqh, bqh=bqh, wkh=wkh, bkh=bkh, wvh=wvh, bvh=bvh, woh=woh,
                bo=params["bo"], w1=params["w1"], b1=params["b1"],
                w2=params["w2"], b2=params["b2"])


def decoder_forward(x, encoder_output, kp):
    batch, seq, d_model = x.shape
    assert d_model == D_MODEL and seq % N_HEADS == 0
    t = batch * seq

    pe = jnp.asarray(_positional_encoding_np(seq, d_model, batch))
    gmask_np, pavg_np = _constants_np(batch, seq)
    gmask = jnp.asarray(gmask_np)
    pavg = jnp.asarray(pavg_np)

    x2 = x.reshape(t, d_model)                      # row-major flatten
    enc2 = encoder_output.reshape(t, d_model)

    args = (x2, enc2, pe, gmask, pavg,
            kp["wqh"], kp["bqh"], kp["wkh"], kp["bkh"],
            kp["wvh"], kp["bvh"], kp["woh"], kp["bo"],
            kp["b1"], kp["b2"], kp["w1"], kp["w2"])

    vmem = pl.BlockSpec(memory_space=pltpu.MemorySpace.VMEM)
    hbm = pl.BlockSpec(memory_space=pl.ANY)         # w1/w2 stay in HBM; kernel DMAs them
    in_specs = [vmem] * (len(args) - 2) + [hbm, hbm]

    gc = batch * DIM_K
    flops = (4 * N_HEADS * t * D_MODEL * gc          # Q/K group-tiled projections
             + 2 * N_HEADS * t * D_MODEL * HD_V      # V projections
             + 4 * N_HEADS * t * gc * HD_V           # M_stack + Q @ M_stack
             + 2 * N_HEADS * t * HD_V * D_MODEL      # per-head output projection
             + 8 * t * t * D_MODEL                   # 2 LayerNorms x 2 (T,T)@(T,D)
             + 4 * t * D_MODEL * FF_HIDDEN)          # feed-forward
    bytes_accessed = 4 * (sum(int(np.prod(a.shape)) for a in args) + t * d_model)

    out2 = pl.pallas_call(
        _decoder_kernel,
        out_shape=jax.ShapeDtypeStruct((t, d_model), jnp.float32),
        in_specs=in_specs,
        out_specs=vmem,
        scratch_shapes=[
            pltpu.VMEM((D_MODEL, FF_HIDDEN), jnp.float32),   # w1 landing buffer
            pltpu.VMEM((FF_HIDDEN, D_MODEL), jnp.float32),   # w2 landing buffer
            pltpu.SemaphoreType.DMA((2,)),
        ],
        compiler_params=pltpu.CompilerParams(vmem_limit_bytes=32 * 1024 * 1024),
        cost_estimate=pl.CostEstimate(flops=int(flops), transcendentals=2 * t,
                                      bytes_accessed=int(bytes_accessed)),
    )(*args)
    return out2.reshape(batch, seq, d_model)


def init_params(key):
    ks = jax.random.split(key, 12)

    def lin(kw, kb, fan_in, fan_out):
        bound = 1.0 / math.sqrt(fan_in)
        w = jax.random.uniform(kw, (fan_in, fan_out), jnp.float32, -bound, bound)
        b = jax.random.uniform(kb, (1, fan_out), jnp.float32, -bound, bound)
        return w, b

    wq, bq = lin(ks[0], ks[1], D_MODEL, DIM_K)
    wk, bk = lin(ks[2], ks[3], D_MODEL, DIM_K)
    wv, bv = lin(ks[4], ks[5], D_MODEL, DIM_V)
    wo, bo = lin(ks[6], ks[7], DIM_V, D_MODEL)
    w1, b1 = lin(ks[8], ks[9], D_MODEL, FF_HIDDEN)
    w2, b2 = lin(ks[10], ks[11], FF_HIDDEN, D_MODEL)
    return dict(wq=wq, bq=bq, wk=wk, bk=bk, wv=wv, bv=bv, wo=wo, bo=bo,
                w1=w1, b1=b1, w2=w2, b2=b2)


if __name__ == "__main__":
    key = jax.random.PRNGKey(0)
    kx, ke, kp = jax.random.split(key, 3)

    B, S = 2, 8                      # batch=2, seq=8, d_model=20 (from Config)
    x = jax.random.normal(kx, (B, S, D_MODEL), dtype=jnp.float32)
    encoder_output = jax.random.normal(ke, (B, S, D_MODEL), dtype=jnp.float32)

    raw_params = init_params(kp)
    kparams = prepare_params(raw_params, B)   # host-side, once

    out = jax.jit(decoder_forward)(x, encoder_output, kparams)
    jax.block_until_ready(out)
    assert out.shape == (B, S, D_MODEL) and out.dtype == jnp.float32
    print("KERNEL_OK")
</pallas_src>

<mosaic_0001>
module attributes {stable_mosaic.version = 11 : i64} {
  func.func @_decoder_kernel(%arg0: memref<16x20xf32, #tpu.memory_space<vmem>>, %arg1: memref<16x20xf32, #tpu.memory_space<vmem>>, %arg2: memref<16x20xf32, #tpu.memory_space<vmem>>, %arg3: memref<16x20xf32, #tpu.memory_space<vmem>>, %arg4: memref<16x16xf32, #tpu.memory_space<vmem>>, %arg5: memref<2x20x20xf32, #tpu.memory_space<vmem>>, %arg6: memref<2x1x20xf32, #tpu.memory_space<vmem>>, %arg7: memref<2x20x20xf32, #tpu.memory_space<vmem>>, %arg8: memref<2x1x20xf32, #tpu.memory_space<vmem>>, %arg9: memref<2x20x5xf32, #tpu.memory_space<vmem>>, %arg10: memref<2x1x5xf32, #tpu.memory_space<vmem>>, %arg11: memref<2x5x20xf32, #tpu.memory_space<vmem>>, %arg12: memref<1x20xf32, #tpu.memory_space<vmem>>, %arg13: memref<1x2048xf32, #tpu.memory_space<vmem>>, %arg14: memref<1x20xf32, #tpu.memory_space<vmem>>, %arg15: memref<20x2048xf32, #tpu.memory_space<any>>, %arg16: memref<2048x20xf32, #tpu.memory_space<any>>, %arg17: memref<16x20xf32, #tpu.memory_space<vmem>>, %arg18: memref<20x2048xf32, #tpu.memory_space<vmem>>, %arg19: memref<2048x20xf32, #tpu.memory_space<vmem>>, %arg20: memref<2x!tpu.dma_semaphore, #tpu.memory_space<semaphore_mem>>) attributes {dimension_semantics = [], scalar_prefetch = 0 : i64, scratch_operands = 3 : i64, tpu.core_type = #tpu.core_type<tc>} {
    %c0_i32 = arith.constant 0 : i32
    %0 = tpu.memref_slice %arg20[%c0_i32] : memref<2x!tpu.dma_semaphore, #tpu.memory_space<semaphore_mem>> -> memref<1x!tpu.dma_semaphore, #tpu.memory_space<semaphore_mem>>
    %1 = tpu.memref_squeeze %0 : memref<1x!tpu.dma_semaphore, #tpu.memory_space<semaphore_mem>> -> memref<!tpu.dma_semaphore, #tpu.memory_space<semaphore_mem>>
    tpu.enqueue_dma source(%arg15 : memref<20x2048xf32, #tpu.memory_space<any>>) target(%arg18 : memref<20x2048xf32, #tpu.memory_space<vmem>>) target_semaphore(%1 : memref<!tpu.dma_semaphore, #tpu.memory_space<semaphore_mem>>)
    %c1_i32 = arith.constant 1 : i32
    %2 = tpu.memref_slice %arg20[%c1_i32] : memref<2x!tpu.dma_semaphore, #tpu.memory_space<semaphore_mem>> -> memref<1x!tpu.dma_semaphore, #tpu.memory_space<semaphore_mem>>
    %3 = tpu.memref_squeeze %2 : memref<1x!tpu.dma_semaphore, #tpu.memory_space<semaphore_mem>> -> memref<!tpu.dma_semaphore, #tpu.memory_space<semaphore_mem>>
    tpu.enqueue_dma source(%arg16 : memref<2048x20xf32, #tpu.memory_space<any>>) target(%arg19 : memref<2048x20xf32, #tpu.memory_space<vmem>>) target_semaphore(%3 : memref<!tpu.dma_semaphore, #tpu.memory_space<semaphore_mem>>)
    %c0 = arith.constant 0 : index
    %c0_0 = arith.constant 0 : index
    %4 = vector.load %arg0[%c0, %c0_0] : memref<16x20xf32, #tpu.memory_space<vmem>>, vector<16x20xf32>
    %c0_1 = arith.constant 0 : index
    %c0_2 = arith.constant 0 : index
    %5 = vector.load %arg2[%c0_1, %c0_2] : memref<16x20xf32, #tpu.memory_space<vmem>>, vector<16x20xf32>
    %6 = arith.addf %4, %5 : vector<16x20xf32>
    %c0_3 = arith.constant 0 : index
    %c0_4 = arith.constant 0 : index
    %7 = vector.load %arg1[%c0_3, %c0_4] : memref<16x20xf32, #tpu.memory_space<vmem>>, vector<16x20xf32>
    %c0_5 = arith.constant 0 : index
    %c0_6 = arith.constant 0 : index
    %8 = vector.load %arg3[%c0_5, %c0_6] : memref<16x20xf32, #tpu.memory_space<vmem>>, vector<16x20xf32>
    %c0_7 = arith.constant 0 : index
    %c0_8 = arith.constant 0 : index
    %9 = vector.load %arg4[%c0_7, %c0_8] : memref<16x16xf32, #tpu.memory_space<vmem>>, vector<16x16xf32>
    %c0_9 = arith.constant 0 : index
    %c0_10 = arith.constant 0 : index
    %c0_11 = arith.constant 0 : index
    %10 = vector.load %arg7[%c0_9, %c0_10, %c0_11] : memref<2x20x20xf32, #tpu.memory_space<vmem>>, vector<1x20x20xf32>
    %11 = vector.shape_cast %10 : vector<1x20x20xf32> to vector<20x20xf32>
    %c0_12 = arith.constant 0 : index
    %c0_13 = arith.constant 0 : index
    %c0_14 = arith.constant 0 : index
    %12 = vector.load %arg8[%c0_12, %c0_13, %c0_14] : memref<2x1x20xf32, #tpu.memory_space<vmem>>, vector<1x1x20xf32>
    %13 = vector.shape_cast %12 : vector<1x1x20xf32> to vector<1x20xf32>
    %cst = arith.constant dense<0.000000e+00> : vector<16x20xf32>
    %14 = tpu.matmul %6, %11, %cst {dimension_numbers = #tpu.dot_dimension_numbers<[1], [0], [0], [1], [0, 0, 1, 1], [], []>} : vector<16x20xf32>, vector<20x20xf32>, vector<16x20xf32> -> vector<16x20xf32>
    %15 = vector.broadcast %13 : vector<1x20xf32> to vector<16x20xf32>
    %16 = arith.addf %14, %15 : vector<16x20xf32>
    %17 = arith.mulf %8, %16 : vector<16x20xf32>
    %c0_15 = arith.constant 0 : index
    %c0_16 = arith.constant 0 : index
    %c0_17 = arith.constant 0 : index
    %18 = vector.load %arg9[%c0_15, %c0_16, %c0_17] : memref<2x20x5xf32, #tpu.memory_space<vmem>>, vector<1x20x5xf32>
    %19 = vector.shape_cast %18 : vector<1x20x5xf32> to vector<20x5xf32>
    %c0_18 = arith.constant 0 : index
    %c0_19 = arith.constant 0 : index
    %c0_20 = arith.constant 0 : index
    %20 = vector.load %arg10[%c0_18, %c0_19, %c0_20] : memref<2x1x5xf32, #tpu.memory_space<vmem>>, vector<1x1x5xf32>
    %21 = vector.shape_cast %20 : vector<1x1x5xf32> to vector<1x5xf32>
    %cst_21 = arith.constant dense<0.000000e+00> : vector<16x5xf32>
    %22 = tpu.matmul %7, %19, %cst_21 {dimension_numbers = #tpu.dot_dimension_numbers<[1], [0], [0], [1], [0, 0, 1, 1], [], []>} : vector<16x20xf32>, vector<20x5xf32>, vector<16x5xf32> -> vector<16x5xf32>
    %23 = vector.broadcast %21 : vector<1x5xf32> to vector<16x5xf32>
    %24 = arith.addf %22, %23 : vector<16x5xf32>
    %cst_22 = arith.constant dense<0.000000e+00> : vector<20x5xf32>
    %25 = tpu.matmul %17, %24, %cst_22 {dimension_numbers = #tpu.dot_dimension_numbers<[0], [0], [1], [1], [0, 1, 1, 1], [], []>} : vector<16x20xf32>, vector<16x5xf32>, vector<20x5xf32> -> vector<20x5xf32>
    %c1 = arith.constant 1 : index
    %c0_23 = arith.constant 0 : index
    %c0_24 = arith.constant 0 : index
    %26 = vector.load %arg7[%c1, %c0_23, %c0_24] : memref<2x20x20xf32, #tpu.memory_space<vmem>>, vector<1x20x20xf32>
    %27 = vector.shape_cast %26 : vector<1x20x20xf32> to vector<20x20xf32>
    %c1_25 = arith.constant 1 : index
    %c0_26 = arith.constant 0 : index
    %c0_27 = arith.constant 0 : index
    %28 = vector.load %arg8[%c1_25, %c0_26, %c0_27] : memref<2x1x20xf32, #tpu.memory_space<vmem>>, vector<1x1x20xf32>
    %29 = vector.shape_cast %28 : vector<1x1x20xf32> to vector<1x20xf32>
    %cst_28 = arith.constant dense<0.000000e+00> : vector<16x20xf32>
    %30 = tpu.matmul %6, %27, %cst_28 {dimension_numbers = #tpu.dot_dimension_numbers<[1], [0], [0], [1], [0, 0, 1, 1], [], []>} : vector<16x20xf32>, vector<20x20xf32>, vector<16x20xf32> -> vector<16x20xf32>
    %31 = vector.broadcast %29 : vector<1x20xf32> to vector<16x20xf32>
    %32 = arith.addf %30, %31 : vector<16x20xf32>
    %33 = arith.mulf %8, %32 : vector<16x20xf32>
    %c1_29 = arith.constant 1 : index
    %c0_30 = arith.constant 0 : index
    %c0_31 = arith.constant 0 : index
    %34 = vector.load %arg9[%c1_29, %c0_30, %c0_31] : memref<2x20x5xf32, #tpu.memory_space<vmem>>, vector<1x20x5xf32>
    %35 = vector.shape_cast %34 : vector<1x20x5xf32> to vector<20x5xf32>
    %c1_32 = arith.constant 1 : index
    %c0_33 = arith.constant 0 : index
    %c0_34 = arith.constant 0 : index
    %36 = vector.load %arg10[%c1_32, %c0_33, %c0_34] : memref<2x1x5xf32, #tpu.memory_space<vmem>>, vector<1x1x5xf32>
    %37 = vector.shape_cast %36 : vector<1x1x5xf32> to vector<1x5xf32>
    %cst_35 = arith.constant dense<0.000000e+00> : vector<16x5xf32>
    %38 = tpu.matmul %7, %35, %cst_35 {dimension_numbers = #tpu.dot_dimension_numbers<[1], [0], [0], [1], [0, 0, 1, 1], [], []>} : vector<16x20xf32>, vector<20x5xf32>, vector<16x5xf32> -> vector<16x5xf32>
    %39 = vector.broadcast %37 : vector<1x5xf32> to vector<16x5xf32>
    %40 = arith.addf %38, %39 : vector<16x5xf32>
    %cst_36 = arith.constant dense<0.000000e+00> : vector<20x5xf32>
    %41 = tpu.matmul %33, %40, %cst_36 {dimension_numbers = #tpu.dot_dimension_numbers<[0], [0], [1], [1], [0, 1, 1, 1], [], []>} : vector<16x20xf32>, vector<16x5xf32>, vector<20x5xf32> -> vector<20x5xf32>
    %42 = arith.addf %25, %41 : vector<20x5xf32>
    %c0_37 = arith.constant 0 : index
    %c0_38 = arith.constant 0 : index
    %43 = vector.load %arg12[%c0_37, %c0_38] : memref<1x20xf32, #tpu.memory_space<vmem>>, vector<1x20xf32>
    %c0_39 = arith.constant 0 : index
    %c0_40 = arith.constant 0 : index
    %c0_41 = arith.constant 0 : index
    %44 = vector.load %arg5[%c0_39, %c0_40, %c0_41] : memref<2x20x20xf32, #tpu.memory_space<vmem>>, vector<1x20x20xf32>
    %45 = vector.shape_cast %44 : vector<1x20x20xf32> to vector<20x20xf32>
    %c0_42 = arith.constant 0 : index
    %c0_43 = arith.constant 0 : index
    %c0_44 = arith.constant 0 : index
    %46 = vector.load %arg6[%c0_42, %c0_43, %c0_44] : memref<2x1x20xf32, #tpu.memory_space<vmem>>, vector<1x1x20xf32>
    %47 = vector.shape_cast %46 : vector<1x1x20xf32> to vector<1x20xf32>
    %cst_45 = arith.constant dense<0.000000e+00> : vector<16x20xf32>
    %48 = tpu.matmul %6, %45, %cst_45 {dimension_numbers = #tpu.dot_dimension_numbers<[1], [0], [0], [1], [0, 0, 1, 1], [], []>} : vector<16x20xf32>, vector<20x20xf32>, vector<16x20xf32> -> vector<16x20xf32>
    %49 = vector.broadcast %47 : vector<1x20xf32> to vector<16x20xf32>
    %50 = arith.addf %48, %49 : vector<16x20xf32>
    %51 = arith.mulf %8, %50 : vector<16x20xf32>
    %cst_46 = arith.constant dense<0.000000e+00> : vector<16x5xf32>
    %52 = tpu.matmul %51, %42, %cst_46 {dimension_numbers = #tpu.dot_dimension_numbers<[1], [0], [0], [1], [0, 0, 1, 1], [], []>} : vector<16x20xf32>, vector<20x5xf32>, vector<16x5xf32> -> vector<16x5xf32>
    %c0_47 = arith.constant 0 : index
    %c0_48 = arith.constant 0 : index
    %c0_49 = arith.constant 0 : index
    %53 = vector.load %arg11[%c0_47, %c0_48, %c0_49] : memref<2x5x20xf32, #tpu.memory_space<vmem>>, vector<1x5x20xf32>
    %54 = vector.shape_cast %53 : vector<1x5x20xf32> to vector<5x20xf32>
    %cst_50 = arith.constant dense<0.000000e+00> : vector<16x20xf32>
    %55 = tpu.matmul %52, %54, %cst_50 {dimension_numbers = #tpu.dot_dimension_numbers<[1], [0], [0], [1], [0, 0, 1, 1], [], []>} : vector<16x5xf32>, vector<5x20xf32>, vector<16x20xf32> -> vector<16x20xf32>
    %56 = vector.broadcast %43 : vector<1x20xf32> to vector<16x20xf32>
    %57 = arith.addf %56, %55 : vector<16x20xf32>
    %c1_51 = arith.constant 1 : index
    %c0_52 = arith.constant 0 : index
    %c0_53 = arith.constant 0 : index
    %58 = vector.load %arg5[%c1_51, %c0_52, %c0_53] : memref<2x20x20xf32, #tpu.memory_space<vmem>>, vector<1x20x20xf32>
    %59 = vector.shape_cast %58 : vector<1x20x20xf32> to vector<20x20xf32>
    %c1_54 = arith.constant 1 : index
    %c0_55 = arith.constant 0 : index
    %c0_56 = arith.constant 0 : index
    %60 = vector.load %arg6[%c1_54, %c0_55, %c0_56] : memref<2x1x20xf32, #tpu.memory_space<vmem>>, vector<1x1x20xf32>
    %61 = vector.shape_cast %60 : vector<1x1x20xf32> to vector<1x20xf32>
    %cst_57 = arith.constant dense<0.000000e+00> : vector<16x20xf32>
    %62 = tpu.matmul %6, %59, %cst_57 {dimension_numbers = #tpu.dot_dimension_numbers<[1], [0], [0], [1], [0, 0, 1, 1], [], []>} : vector<16x20xf32>, vector<20x20xf32>, vector<16x20xf32> -> vector<16x20xf32>
    %63 = vector.broadcast %61 : vector<1x20xf32> to vector<16x20xf32>
    %64 = arith.addf %62, %63 : vector<16x20xf32>
    %65 = arith.mulf %8, %64 : vector<16x20xf32>
    %cst_58 = arith.constant dense<0.000000e+00> : vector<16x5xf32>
    %66 = tpu.matmul %65, %42, %cst_58 {dimension_numbers = #tpu.dot_dimension_numbers<[1], [0], [0], [1], [0, 0, 1, 1], [], []>} : vector<16x20xf32>, vector<20x5xf32>, vector<16x5xf32> -> vector<16x5xf32>
    %c1_59 = arith.constant 1 : index
    %c0_60 = arith.constant 0 : index
    %c0_61 = arith.constant 0 : index
    %67 = vector.load %arg11[%c1_59, %c0_60, %c0_61] : memref<2x5x20xf32, #tpu.memory_space<vmem>>, vector<1x5x20xf32>
    %68 = vector.shape_cast %67 : vector<1x5x20xf32> to vector<5x20xf32>
    %cst_62 = arith.constant dense<0.000000e+00> : vector<16x20xf32>
    %69 = tpu.matmul %66, %68, %cst_62 {dimension_numbers = #tpu.dot_dimension_numbers<[1], [0], [0], [1], [0, 0, 1, 1], [], []>} : vector<16x5xf32>, vector<5x20xf32>, vector<16x20xf32> -> vector<16x20xf32>
    %70 = arith.addf %57, %69 : vector<16x20xf32>
    %71 = arith.addf %6, %70 : vector<16x20xf32>
    %cst_63 = arith.constant dense<0.000000e+00> : vector<16x20xf32>
    %72 = tpu.matmul %9, %71, %cst_63 {dimension_numbers = #tpu.dot_dimension_numbers<[1], [0], [0], [1], [0, 0, 1, 1], [], []>} : vector<16x16xf32>, vector<16x20xf32>, vector<16x20xf32> -> vector<16x20xf32>
    %cst_64 = arith.constant dense<0.000000e+00> : vector<16xf32>
    %73 = vector.multi_reduction <add>, %72, %cst_64 [1] : vector<16x20xf32> to vector<16xf32>
    %74 = vector.shape_cast %73 : vector<16xf32> to vector<16x1xf32>
    %75 = vector.broadcast %74 : vector<16x1xf32> to vector<16x20xf32>
    %76 = arith.subf %71, %75 : vector<16x20xf32>
    %77 = arith.mulf %76, %76 : vector<16x20xf32>
    %cst_65 = arith.constant dense<0.000000e+00> : vector<16x20xf32>
    %78 = tpu.matmul %9, %77, %cst_65 {dimension_numbers = #tpu.dot_dimension_numbers<[1], [0], [0], [1], [0, 0, 1, 1], [], []>} : vector<16x16xf32>, vector<16x20xf32>, vector<16x20xf32> -> vector<16x20xf32>
    %cst_66 = arith.constant dense<0.000000e+00> : vector<16xf32>
    %79 = vector.multi_reduction <add>, %78, %cst_66 [1] : vector<16x20xf32> to vector<16xf32>
    %80 = vector.shape_cast %79 : vector<16xf32> to vector<16x1xf32>
    %cst_67 = arith.constant 9.99999974E-6 : f32
    %81 = vector.broadcast %cst_67 : f32 to vector<16x1xf32>
    %82 = arith.addf %80, %81 : vector<16x1xf32>
    %83 = math.rsqrt %82 : vector<16x1xf32>
    %84 = vector.broadcast %83 : vector<16x1xf32> to vector<16x20xf32>
    %85 = arith.mulf %76, %84 : vector<16x20xf32>
    %c0_i32_68 = arith.constant 0 : i32
    %86 = tpu.memref_slice %arg20[%c0_i32_68] : memref<2x!tpu.dma_semaphore, #tpu.memory_space<semaphore_mem>> -> memref<1x!tpu.dma_semaphore, #tpu.memory_space<semaphore_mem>>
    %87 = tpu.memref_squeeze %86 : memref<1x!tpu.dma_semaphore, #tpu.memory_space<semaphore_mem>> -> memref<!tpu.dma_semaphore, #tpu.memory_space<semaphore_mem>>
    tpu.wait_dma2 semaphore(%87 : memref<!tpu.dma_semaphore, #tpu.memory_space<semaphore_mem>>) src(%arg15 : memref<20x2048xf32, #tpu.memory_space<any>>) dst(%arg18 : memref<20x2048xf32, #tpu.memory_space<vmem>>)
    %c1_i32_69 = arith.constant 1 : i32
    %88 = tpu.memref_slice %arg20[%c1_i32_69] : memref<2x!tpu.dma_semaphore, #tpu.memory_space<semaphore_mem>> -> memref<1x!tpu.dma_semaphore, #tpu.memory_space<semaphore_mem>>
    %89 = tpu.memref_squeeze %88 : memref<1x!tpu.dma_semaphore, #tpu.memory_space<semaphore_mem>> -> memref<!tpu.dma_semaphore, #tpu.memory_space<semaphore_mem>>
    tpu.wait_dma2 semaphore(%89 : memref<!tpu.dma_semaphore, #tpu.memory_space<semaphore_mem>>) src(%arg16 : memref<2048x20xf32, #tpu.memory_space<any>>) dst(%arg19 : memref<2048x20xf32, #tpu.memory_space<vmem>>)
    %c0_70 = arith.constant 0 : index
    %c0_71 = arith.constant 0 : index
    %90 = vector.load %arg18[%c0_70, %c0_71] : memref<20x2048xf32, #tpu.memory_space<vmem>>, vector<20x2048xf32>
    %c0_72 = arith.constant 0 : index
    %c0_73 = arith.constant 0 : index
    %91 = vector.load %arg13[%c0_72, %c0_73] : memref<1x2048xf32, #tpu.memory_space<vmem>>, vector<1x2048xf32>
    %cst_74 = arith.constant dense<0.000000e+00> : vector<16x2048xf32>
    %92 = tpu.matmul %85, %90, %cst_74 {dimension_numbers = #tpu.dot_dimension_numbers<[1], [0], [0], [1], [0, 0, 1, 1], [], []>} : vector<16x20xf32>, vector<20x2048xf32>, vector<16x2048xf32> -> vector<16x2048xf32>
    %93 = vector.broadcast %91 : vector<1x2048xf32> to vector<16x2048xf32>
    %94 = arith.addf %92, %93 : vector<16x2048xf32>
    %cst_75 = arith.constant 0.000000e+00 : f32
    %95 = vector.broadcast %cst_75 : f32 to vector<16x2048xf32>
    %96 = arith.maximumf %94, %95 : vector<16x2048xf32>
    %c0_76 = arith.constant 0 : index
    %c0_77 = arith.constant 0 : index
    %97 = vector.load %arg19[%c0_76, %c0_77] : memref<2048x20xf32, #tpu.memory_space<vmem>>, vector<2048x20xf32>
    %c0_78 = arith.constant 0 : index
    %c0_79 = arith.constant 0 : index
    %98 = vector.load %arg14[%c0_78, %c0_79] : memref<1x20xf32, #tpu.memory_space<vmem>>, vector<1x20xf32>
    %cst_80 = arith.constant dense<0.000000e+00> : vector<16x20xf32>
    %99 = tpu.matmul %96, %97, %cst_80 {dimension_numbers = #tpu.dot_dimension_numbers<[1], [0], [0], [1], [0, 0, 1, 1], [], []>} : vector<16x2048xf32>, vector<2048x20xf32>, vector<16x20xf32> -> vector<16x20xf32>
    %100 = vector.broadcast %98 : vector<1x20xf32> to vector<16x20xf32>
    %101 = arith.addf %99, %100 : vector<16x20xf32>
    %102 = arith.addf %85, %101 : vector<16x20xf32>
    %cst_81 = arith.constant dense<0.000000e+00> : vector<16x20xf32>
    %103 = tpu.matmul %9, %102, %cst_81 {dimension_numbers = #tpu.dot_dimension_numbers<[1], [0], [0], [1], [0, 0, 1, 1], [], []>} : vector<16x16xf32>, vector<16x20xf32>, vector<16x20xf32> -> vector<16x20xf32>
    %cst_82 = arith.constant dense<0.000000e+00> : vector<16xf32>
    %104 = vector.multi_reduction <add>, %103, %cst_82 [1] : vector<16x20xf32> to vector<16xf32>
    %105 = vector.shape_cast %104 : vector<16xf32> to vector<16x1xf32>
    %106 = vector.broadcast %105 : vector<16x1xf32> to vector<16x20xf32>
    %107 = arith.subf %102, %106 : vector<16x20xf32>
    %108 = arith.mulf %107, %107 : vector<16x20xf32>
    %cst_83 = arith.constant dense<0.000000e+00> : vector<16x20xf32>
    %109 = tpu.matmul %9, %108, %cst_83 {dimension_numbers = #tpu.dot_dimension_numbers<[1], [0], [0], [1], [0, 0, 1, 1], [], []>} : vector<16x16xf32>, vector<16x20xf32>, vector<16x20xf32> -> vector<16x20xf32>
    %cst_84 = arith.constant dense<0.000000e+00> : vector<16xf32>
    %110 = vector.multi_reduction <add>, %109, %cst_84 [1] : vector<16x20xf32> to vector<16xf32>
    %111 = vector.shape_cast %110 : vector<16xf32> to vector<16x1xf32>
    %cst_85 = arith.constant 9.99999974E-6 : f32
    %112 = vector.broadcast %cst_85 : f32 to vector<16x1xf32>
    %113 = arith.addf %111, %112 : vector<16x1xf32>
    %114 = math.rsqrt %113 : vector<16x1xf32>
    %115 = vector.broadcast %114 : vector<16x1xf32> to vector<16x20xf32>
    %116 = arith.mulf %107, %115 : vector<16x20xf32>
    %c0_86 = arith.constant 0 : index
    %c0_87 = arith.constant 0 : index
    %117 = vector.load %arg17[%c0_86, %c0_87] : memref<16x20xf32, #tpu.memory_space<vmem>>, vector<16x20xf32>
    tpu.vector_store %arg17[%c0_86, %c0_87], %116 {strides = array<i32>} : memref<16x20xf32, #tpu.memory_space<vmem>>, vector<16x20xf32>,
    return
  }
}

</mosaic_0001>

<llo_original>
// kernel: decoder_forward.1
$region0: #{decoder_forward.1}
  #allocation0 [shape = 'u32[]', space=smem, size = 0x4, offset = 0x4, fixed_abs, tag = 'smem constant byte address 0x4 - core index']
  #allocation1 [shape = 'u32[144,128]{1,0:T(1,128)}', space=vmem, size = 0x12000, scoped, tag = 'internal scratch']
  #allocation2 [shape = 'f32[20,2048]{1,0:T(8,128)}', space=vmem, size = 0x30000, scoped, tag = 'scratch operand']
  #allocation3 [shape = 'f32[2048,20]{1,0:T(8,128)}', space=vmem, size = 0x100000, scoped, tag = 'scratch operand']
  #allocation4 [shape = 's32[2]{0}', space=sflag, size = 0x8, scoped, tag = 'scratch operand']
  #allocation7 [shape = 's32[]', space=sflag, size = 0x4, offset = 0, fixed_abs, tag = 'sflag constant byte address 0x0 - dummy sync flag']
  #allocation8 [shape = 's32[]', space=sflag, size = 0x4, offset = 0, fixed_abs, tag = 'sflag constant byte address 0x0 - dummy sync flag']
  %s0 = inlined_call_operand.vmem [shape: f32[16,20], index: 0, kind: input, shape index: {}]
  %s1 = inlined_call_operand.vmem [shape: f32[16,20], index: 1, kind: input, shape index: {}]
  %s2 = inlined_call_operand.vmem [shape: f32[16,20], index: 2, kind: input, shape index: {}]
  %s3 = inlined_call_operand.vmem [shape: f32[16,20], index: 3, kind: input, shape index: {}]
  %s4 = inlined_call_operand.vmem [shape: f32[16,16], index: 4, kind: input, shape index: {}]
  %s5 = inlined_call_operand.vmem [shape: f32[2,20,20], index: 5, kind: input, shape index: {}]
  %s6 = inlined_call_operand.vmem [shape: f32[2,1,20], index: 6, kind: input, shape index: {}]
  %s7 = inlined_call_operand.vmem [shape: f32[2,20,20], index: 7, kind: input, shape index: {}]
  %s8 = inlined_call_operand.vmem [shape: f32[2,1,20], index: 8, kind: input, shape index: {}]
  %s9 = inlined_call_operand.vmem [shape: f32[2,20,5], index: 9, kind: input, shape index: {}]
  %s10 = inlined_call_operand.vmem [shape: f32[2,1,5], index: 10, kind: input, shape index: {}]
  %s11 = inlined_call_operand.vmem [shape: f32[2,5,20], index: 11, kind: input, shape index: {}]
  %s12 = inlined_call_operand.vmem [shape: f32[1,20], index: 12, kind: input, shape index: {}]
  %s13 = inlined_call_operand.vmem [shape: f32[1,2048], index: 13, kind: input, shape index: {}]
  %s14 = inlined_call_operand.vmem [shape: f32[1,20], index: 14, kind: input, shape index: {}]
  %s15 = inlined_call_operand.vmem [shape: f32[20,2048], index: 15, kind: input, shape index: {}]
  %s16 = inlined_call_operand.vmem [shape: f32[2048,20], index: 16, kind: input, shape index: {}]
  %s17 = inlined_call_operand.hbm [shape: f32[16,20], index: 17, kind: output, shape index: {}]
  %s18 = sld [smem:[#allocation0]]
  $region138: #{decoder_forward.1} parent=0
    _
  %s20 = ssub.s32 1, %s18
  %s21 = scalar_select 0, %s20, %s18
  $region1: #{decoder_forward.1} parent=0
    #allocation5 [shape = 'u8[8192]{0}', space=vmem, size = 0x2000, scoped, tag = 'output window, operand 0, single buffered']
    #allocation6 [shape = 's32[1]{0}', space=sflag, size = 0x4, scoped, tag = 'scoped memory for decoder_forward.1']
    %22 = vsyncpa [#allocation6], 0
    // Predicated region
    $region2: #{decoder_forward.1} parent=1 // pred_check
      _
    $region3: #{decoder_forward.1} parent=1 // pred_check_branch
      %24 = sbr.rel (0) target = $region5
    $region4: #{decoder_forward.1} parent=1 // pred_region
      _
    $region5: #{decoder_forward.1} parent=1 // pred_fallthru
      _
    // Predicated region
    $region6: #{decoder_forward.1} parent=1 // pred_check
      _
    $region7: #{decoder_forward.1} parent=1 // pred_check_branch
      %26 = sbr.rel (0) target = $region9
    $region8: #{decoder_forward.1} parent=1 // pred_region
      _
    $region9: #{decoder_forward.1} parent=1 // pred_fallthru
      _
    // Predicated region
    $region10: #{decoder_forward.1} parent=1 // pred_check
      _
    $region11: #{decoder_forward.1} parent=1 // pred_check_branch
      %28 = sbr.rel (0) target = $region13
    $region12: #{decoder_forward.1} parent=1 // pred_region
      _
    $region13: #{decoder_forward.1} parent=1 // pred_fallthru
      _
    // Predicated region
    $region14: #{decoder_forward.1} parent=1 // pred_check
      _
    $region15: #{decoder_forward.1} parent=1 // pred_check_branch
      %30 = sbr.rel (0) target = $region17
    $region16: #{decoder_forward.1} parent=1 // pred_region
      _
    $region17: #{decoder_forward.1} parent=1 // pred_fallthru
      _
    // Predicated region
    $region18: #{decoder_forward.1} parent=1 // pred_check
      _
    $region19: #{decoder_forward.1} parent=1 // pred_check_branch
      %32 = sbr.rel (0) target = $region21
    $region20: #{decoder_forward.1} parent=1 // pred_region
      _
    $region21: #{decoder_forward.1} parent=1 // pred_fallthru
      _
    // Predicated region
    $region22: #{decoder_forward.1} parent=1 // pred_check
      _
    $region23: #{decoder_forward.1} parent=1 // pred_check_branch
      %34 = sbr.rel (0) target = $region25
    $region24: #{decoder_forward.1} parent=1 // pred_region
      _
    $region25: #{decoder_forward.1} parent=1 // pred_fallthru
      _
    // Predicated region
    $region26: #{decoder_forward.1} parent=1 // pred_check
      _
    $region27: #{decoder_forward.1} parent=1 // pred_check_branch
      %36 = sbr.rel (0) target = $region29
    $region28: #{decoder_forward.1} parent=1 // pred_region
      _
    $region29: #{decoder_forward.1} parent=1 // pred_fallthru
      _
    // Predicated region
    $region30: #{decoder_forward.1} parent=1 // pred_check
      _
    $region31: #{decoder_forward.1} parent=1 // pred_check_branch
      %38 = sbr.rel (0) target = $region33
    $region32: #{decoder_forward.1} parent=1 // pred_region
      _
    $region33: #{decoder_forward.1} parent=1 // pred_fallthru
      _
    // Predicated region
    $region34: #{decoder_forward.1} parent=1 // pred_check
      _
    $region35: #{decoder_forward.1} parent=1 // pred_check_branch
      %40 = sbr.rel (0) target = $region37
    $region36: #{decoder_forward.1} parent=1 // pred_region
      _
    $region37: #{decoder_forward.1} parent=1 // pred_fallthru
      _
    // Predicated region
    $region38: #{decoder_forward.1} parent=1 // pred_check
      _
    $region39: #{decoder_forward.1} parent=1 // pred_check_branch
      %42 = sbr.rel (0) target = $region41
    $region40: #{decoder_forward.1} parent=1 // pred_region
      _
    $region41: #{decoder_forward.1} parent=1 // pred_fallthru
      _
    // Predicated region
    $region42: #{decoder_forward.1} parent=1 // pred_check
      _
    $region43: #{decoder_forward.1} parent=1 // pred_check_branch
      %44 = sbr.rel (0) target = $region45
    $region44: #{decoder_forward.1} parent=1 // pred_region
      _
    $region45: #{decoder_forward.1} parent=1 // pred_fallthru
      _
    // Predicated region
    $region46: #{decoder_forward.1} parent=1 // pred_check
      _
    $region47: #{decoder_forward.1} parent=1 // pred_check_branch
      %46 = sbr.rel (0) target = $region49
    $region48: #{decoder_forward.1} parent=1 // pred_region
      _
    $region49: #{decoder_forward.1} parent=1 // pred_fallthru
      _
    // Predicated region
    $region50: #{decoder_forward.1} parent=1 // pred_check
      _
    $region51: #{decoder_forward.1} parent=1 // pred_check_branch
      %48 = sbr.rel (0) target = $region53
    $region52: #{decoder_forward.1} parent=1 // pred_region
      _
    $region53: #{decoder_forward.1} parent=1 // pred_fallthru
      _
    // Predicated region
    $region54: #{decoder_forward.1} parent=1 // pred_check
      _
    $region55: #{decoder_forward.1} parent=1 // pred_check_branch
      %50 = sbr.rel (0) target = $region57
    $region56: #{decoder_forward.1} parent=1 // pred_region
      _
    $region57: #{decoder_forward.1} parent=1 // pred_fallthru
      _
    // Predicated region
    $region58: #{decoder_forward.1} parent=1 // pred_check
      _
    $region59: #{decoder_forward.1} parent=1 // pred_check_branch
      %52 = sbr.rel (0) target = $region61
    $region60: #{decoder_forward.1} parent=1 // pred_region
      _
    $region61: #{decoder_forward.1} parent=1 // pred_fallthru
      _
    %p54 = scmp.lt.u32.totalorder 384, 8
    %p55 = pneg %p54
    // Predicated region
    $region62: #{decoder_forward.1} parent=1 // pred_check
      _
    $region63: #{decoder_forward.1} parent=1 // pred_check_branch
      %57 = sbr.rel (%p54) target = $region65
    $region64: #{decoder_forward.1} parent=1 // pred_region
      %s72 = sand.u32 384, 7
      %p73 = scmp.eq.s32.totalorder %s72, 0
      // Predicated region
      $region77: #{decoder_forward.1} parent=64 // pred_check
        %p74 = pneg %p73
      $region78: #{decoder_forward.1} parent=64 // pred_check_branch
        %76 = sbr.rel (%p74) target = $region80
      $region79: #{decoder_forward.1} parent=64 // pred_region
        loop: start=0, step=1, limit=1
        $region81: #{decoder_forward.1} parent=79 // loop_pre_header
          _
        $region82: #{decoder_forward.1} parent=79 // loop_header
          %s78 = sphi 0, %s82
          %p79 = scmp.ge.s32.totalorder %s78, 1
          %s83 = sphi %s15, %s15
          %s84 = sphi [#allocation2], [#allocation2]
        $region83: #{decoder_forward.1} parent=79 // loop_header_branch
          %81 = sbr.rel (%p79) target = $region87
        $region84: #{decoder_forward.1} parent=79 // loop_body
          %v85 = vld [vmem:[%s83] sm:$0xff]
          %86 = vst [vmem:[%s84] sm:$0xff] %v85
          %v87 = vld [vmem:[%s83 + $0x8] sm:$0xff]
          %88 = vst [vmem:[%s84 + $0x8] sm:$0xff] %v87
          %v89 = vld [vmem:[%s83 + $0x10] sm:$0xff]
          %90 = vst [vmem:[%s84 + $0x10] sm:$0xff] %v89
          %v91 = vld [vmem:[%s83 + $0x18] sm:$0xff]
          %92 = vst [vmem:[%s84 + $0x18] sm:$0xff] %v91
          %v93 = vld [vmem:[%s83 + $0x20] sm:$0xff]
          %94 = vst [vmem:[%s84 + $0x20] sm:$0xff] %v93
          %v95 = vld [vmem:[%s83 + $0x28] sm:$0xff]
          %96 = vst [vmem:[%s84 + $0x28] sm:$0xff] %v95
          %v97 = vld [vmem:[%s83 + $0x30] sm:$0xff]
          %98 = vst [vmem:[%s84 + $0x30] sm:$0xff] %v97
          %v99 = vld [vmem:[%s83 + $0x38] sm:$0xff]
          %100 = vst [vmem:[%s84 + $0x38] sm:$0xff] %v99
          %v101 = vld [vmem:[%s83 + $0x40] sm:$0xff]
          %102 = vst [vmem:[%s84 + $0x40] sm:$0xff] %v101
          %v103 = vld [vmem:[%s83 + $0x48] sm:$0xff]
          %104 = vst [vmem:[%s84 + $0x48] sm:$0xff] %v103
          %v105 = vld [vmem:[%s83 + $0x50] sm:$0xff]
          %106 = vst [vmem:[%s84 + $0x50] sm:$0xff] %v105
          %v107 = vld [vmem:[%s83 + $0x58] sm:$0xff]
          %108 = vst [vmem:[%s84 + $0x58] sm:$0xff] %v107
          %v109 = vld [vmem:[%s83 + $0x60] sm:$0xff]
          %110 = vst [vmem:[%s84 + $0x60] sm:$0xff] %v109
          %v111 = vld [vmem:[%s83 + $0x68] sm:$0xff]
          %112 = vst [vmem:[%s84 + $0x68] sm:$0xff] %v111
          %v113 = vld [vmem:[%s83 + $0x70] sm:$0xff]
          %114 = vst [vmem:[%s84 + $0x70] sm:$0xff] %v113
          %v115 = vld [vmem:[%s83 + $0x78] sm:$0xff]
          %116 = vst [vmem:[%s84 + $0x78] sm:$0xff] %v115
          %v117 = vld [vmem:[%s83 + $0x80] sm:$0xff]
          %118 = vst [vmem:[%s84 + $0x80] sm:$0xff] %v117
          %v119 = vld [vmem:[%s83 + $0x88] sm:$0xff]
          %120 = vst [vmem:[%s84 + $0x88] sm:$0xff] %v119
          %v121 = vld [vmem:[%s83 + $0x90] sm:$0xff]
          %122 = vst [vmem:[%s84 + $0x90] sm:$0xff] %v121
          %v123 = vld [vmem:[%s83 + $0x98] sm:$0xff]
          %124 = vst [vmem:[%s84 + $0x98] sm:$0xff] %v123
          %v125 = vld [vmem:[%s83 + $0xa0] sm:$0xff]
          %126 = vst [vmem:[%s84 + $0xa0] sm:$0xff] %v125
          %v127 = vld [vmem:[%s83 + $0xa8] sm:$0xff]
          %128 = vst [vmem:[%s84 + $0xa8] sm:$0xff] %v127
          %v129 = vld [vmem:[%s83 + $0xb0] sm:$0xff]
          %130 = vst [vmem:[%s84 + $0xb0] sm:$0xff] %v129
          %v131 = vld [vmem:[%s83 + $0xb8] sm:$0xff]
          %132 = vst [vmem:[%s84 + $0xb8] sm:$0xff] %v131
          %v133 = vld [vmem:[%s83 + $0xc0] sm:$0xff]
          %134 = vst [vmem:[%s84 + $0xc0] sm:$0xff] %v133
          %v135 = vld [vmem:[%s83 + $0xc8] sm:$0xff]
          %136 = vst [vmem:[%s84 + $0xc8] sm:$0xff] %v135
          %v137 = vld [vmem:[%s83 + $0xd0] sm:$0xff]
          %138 = vst [vmem:[%s84 + $0xd0] sm:$0xff] %v137
          %v139 = vld [vmem:[%s83 + $0xd8] sm:$0xff]
          %140 = vst [vmem:[%s84 + $0xd8] sm:$0xff] %v139
          %v141 = vld [vmem:[%s83 + $0xe0] sm:$0xff]
          %142 = vst [vmem:[%s84 + $0xe0] sm:$0xff] %v141
          %v143 = vld [vmem:[%s83 + $0xe8] sm:$0xff]
          %144 = vst [vmem:[%s84 + $0xe8] sm:$0xff] %v143
          %v145 = vld [vmem:[%s83 + $0xf0] sm:$0xff]
          %146 = vst [vmem:[%s84 + $0xf0] sm:$0xff] %v145
          %v147 = vld [vmem:[%s83 + $0xf8] sm:$0xff]
          %148 = vst [vmem:[%s84 + $0xf8] sm:$0xff] %v147
          %v149 = vld [vmem:[%s83 + $0x100] sm:$0xff]
          %150 = vst [vmem:[%s84 + $0x100] sm:$0xff] %v149
          %v151 = vld [vmem:[%s83 + $0x108] sm:$0xff]
          %152 = vst [vmem:[%s84 + $0x108] sm:$0xff] %v151
          %v153 = vld [vmem:[%s83 + $0x110] sm:$0xff]
          %154 = vst [vmem:[%s84 + $0x110] sm:$0xff] %v153
          %v155 = vld [vmem:[%s83 + $0x118] sm:$0xff]
          %156 = vst [vmem:[%s84 + $0x118] sm:$0xff] %v155
          %v157 = vld [vmem:[%s83 + $0x120] sm:$0xff]
          %158 = vst [vmem:[%s84 + $0x120] sm:$0xff] %v157
          %v159 = vld [vmem:[%s83 + $0x128] sm:$0xff]
          %160 = vst [vmem:[%s84 + $0x128] sm:$0xff] %v159
          %v161 = vld [vmem:[%s83 + $0x130] sm:$0xff]
          %162 = vst [vmem:[%s84 + $0x130] sm:$0xff] %v161
          %v163 = vld [vmem:[%s83 + $0x138] sm:$0xff]
          %164 = vst [vmem:[%s84 + $0x138] sm:$0xff] %v163
          %v165 = vld [vmem:[%s83 + $0x140] sm:$0xff]
          %166 = vst [vmem:[%s84 + $0x140] sm:$0xff] %v165
          %v167 = vld [vmem:[%s83 + $0x148] sm:$0xff]
          %168 = vst [vmem:[%s84 + $0x148] sm:$0xff] %v167
          %v169 = vld [vmem:[%s83 + $0x150] sm:$0xff]
          %170 = vst [vmem:[%s84 + $0x150] sm:$0xff] %v169
          %v171 = vld [vmem:[%s83 + $0x158] sm:$0xff]
          %172 = vst [vmem:[%s84 + $0x158] sm:$0xff] %v171
          %v173 = vld [vmem:[%s83 + $0x160] sm:$0xff]
          %174 = vst [vmem:[%s84 + $0x160] sm:$0xff] %v173
          %v175 = vld [vmem:[%s83 + $0x168] sm:$0xff]
          %176 = vst [vmem:[%s84 + $0x168] sm:$0xff] %v175
          %v177 = vld [vmem:[%s83 + $0x170] sm:$0xff]
          %178 = vst [vmem:[%s84 + $0x170] sm:$0xff] %v177
          %v179 = vld [vmem:[%s83 + $0x178] sm:$0xff]
          %180 = vst [vmem:[%s84 + $0x178] sm:$0xff] %v179
        $region85: #{decoder_forward.1} parent=79 // loop_footer
          %s82 = sadd.s32 1, %s78
        $region86: #{decoder_forward.1} parent=79 // loop_footer_branch
          %77 = sbr.rel target = $region82
        $region87: #{decoder_forward.1} parent=79 // loop_exit
          _
      $region80: #{decoder_forward.1} parent=64 // pred_fallthru
        _
      %p181 = pneg %p73
      // Predicated region
      $region88: #{decoder_forward.1} parent=64 // pred_check
        _
      $region89: #{decoder_forward.1} parent=64 // pred_check_branch
        %183 = sbr.rel (%p73) target = $region91
      $region90: #{decoder_forward.1} parent=64 // pred_region
        %s184 = sand.u32 384, 7
      $region91: #{decoder_forward.1} parent=64 // pred_fallthru
        _
    $region65: #{decoder_forward.1} parent=1 // pred_fallthru
      _
    // Predicated region
    $region66: #{decoder_forward.1} parent=1 // pred_check
      %p58 = pneg %p54
    $region67: #{decoder_forward.1} parent=1 // pred_check_branch
      %60 = sbr.rel (%p58) target = $region69
    $region68: #{decoder_forward.1} parent=1 // pred_region
      %s61 = sshllo.u32 0, 384
      loop: start=0, step=1, limit=1
      $region70: #{decoder_forward.1} parent=68 // loop_pre_header
        _
      $region71: #{decoder_forward.1} parent=68 // loop_header
        %s63 = sphi 0, %s67
        %p64 = scmp.ge.s32.totalorder %s63, 1
        %s68 = sphi %s15, %s15
        %s69 = sphi [#allocation2], [#allocation2]
      $region72: #{decoder_forward.1} parent=68 // loop_header_branch
        %66 = sbr.rel (%p64) target = $region76
      $region73: #{decoder_forward.1} parent=68 // loop_body
        %v70 = vld [vmem:[%s68] sm:%s61]
        %71 = vst [vmem:[%s69] sm:%s61] %v70
      $region74: #{decoder_forward.1} parent=68 // loop_footer
        %s67 = sadd.s32 1, %s63
      $region75: #{decoder_forward.1} parent=68 // loop_footer_branch
        %62 = sbr.rel target = $region71
      $region76: #{decoder_forward.1} parent=68 // loop_exit
        _
    $region69: #{decoder_forward.1} parent=1 // pred_fallthru
      _
    // Predicated region
    $region92: #{decoder_forward.1} parent=1 // pred_check
      _
    $region93: #{decoder_forward.1} parent=1 // pred_check_branch
      %187 = sbr.rel (0) target = $region95
    $region94: #{decoder_forward.1} parent=1 // pred_region
      %188 = vsyncadd [#allocation4], 6144
    $region95: #{decoder_forward.1} parent=1 // pred_fallthru
      _
    %s189 = scalar_lea.sflag [#allocation4], 1
    %p191 = scmp.lt.u32.totalorder 2048, 8
    %p192 = pneg %p191
    // Predicated region
    $region96: #{decoder_forward.1} parent=1 // pred_check
      _
    $region97: #{decoder_forward.1} parent=1 // pred_check_branch
      %194 = sbr.rel (%p191) target = $region99
    $region98: #{decoder_forward.1} parent=1 // pred_region
      %s209 = sand.u32 2048, 7
      %p210 = scmp.eq.s32.totalorder %s209, 0
      // Predicated region
      $region111: #{decoder_forward.1} parent=98 // pred_check
        %p211 = pneg %p210
      $region112: #{decoder_forward.1} parent=98 // pred_check_branch
        %213 = sbr.rel (%p211) target = $region114
      $region113: #{decoder_forward.1} parent=98 // pred_region
        loop: start=0, step=1, limit=1
        $region115: #{decoder_forward.1} parent=113 // loop_pre_header
          _
        $region116: #{decoder_forward.1} parent=113 // loop_header
          %s215 = sphi 0, %s219
          %p216 = scmp.ge.s32.totalorder %s215, 1
          %s220 = sphi %s16, %s16
          %s221 = sphi [#allocation3], [#allocation3]
        $region117: #{decoder_forward.1} parent=113 // loop_header_branch
          %218 = sbr.rel (%p216) target = $region121
        $region118: #{decoder_forward.1} parent=113 // loop_body
          %v222 = vld [vmem:[%s220] sm:$0xff]
          %223 = vst [vmem:[%s221] sm:$0xff] %v222
          %v224 = vld [vmem:[%s220 + $0x8] sm:$0xff]
          %225 = vst [vmem:[%s221 + $0x8] sm:$0xff] %v224
          %v226 = vld [vmem:[%s220 + $0x10] sm:$0xff]
          %227 = vst [vmem:[%s221 + $0x10] sm:$0xff] %v226
          %v228 = vld [vmem:[%s220 + $0x18] sm:$0xff]
          %229 = vst [vmem:[%s221 + $0x18] sm:$0xff] %v228
          %v230 = vld [vmem:[%s220 + $0x20] sm:$0xff]
          %231 = vst [vmem:[%s221 + $0x20] sm:$0xff] %v230
          %v232 = vld [vmem:[%s220 + $0x28] sm:$0xff]
          %233 = vst [vmem:[%s221 + $0x28] sm:$0xff] %v232
          %v234 = vld [vmem:[%s220 + $0x30] sm:$0xff]
          %235 = vst [vmem:[%s221 + $0x30] sm:$0xff] %v234
          %v236 = vld [vmem:[%s220 + $0x38] sm:$0xff]
          %237 = vst [vmem:[%s221 + $0x38] sm:$0xff] %v236
          %v238 = vld [vmem:[%s220 + $0x40] sm:$0xff]
          %239 = vst [vmem:[%s221 + $0x40] sm:$0xff] %v238
          %v240 = vld [vmem:[%s220 + $0x48] sm:$0xff]
          %241 = vst [vmem:[%s221 + $0x48] sm:$0xff] %v240
          %v242 = vld [vmem:[%s220 + $0x50] sm:$0xff]
          %243 = vst [vmem:[%s221 + $0x50] sm:$0xff] %v242
          %v244 = vld [vmem:[%s220 + $0x58] sm:$0xff]
          %245 = vst [vmem:[%s221 + $0x58] sm:$0xff] %v244
          %v246 = vld [vmem:[%s220 + $0x60] sm:$0xff]
          %247 = vst [vmem:[%s221 + $0x60] sm:$0xff] %v246
          %v248 = vld [vmem:[%s220 + $0x68] sm:$0xff]
          %249 = vst [vmem:[%s221 + $0x68] sm:$0xff] %v248
          %v250 = vld [vmem:[%s220 + $0x70] sm:$0xff]
          %251 = vst [vmem:[%s221 + $0x70] sm:$0xff] %v250
          %v252 = vld [vmem:[%s220 + $0x78] sm:$0xff]
          %253 = vst [vmem:[%s221 + $0x78] sm:$0xff] %v252
          %v254 = vld [vmem:[%s220 + $0x80] sm:$0xff]
          %255 = vst [vmem:[%s221 + $0x80] sm:$0xff] %v254
          %v256 = vld [vmem:[%s220 + $0x88] sm:$0xff]
          %257 = vst [vmem:[%s221 + $0x88] sm:$0xff] %v256
          %v258 = vld [vmem:[%s220 + $0x90] sm:$0xff]
          %259 = vst [vmem:[%s221 + $0x90] sm:$0xff] %v258
          %v260 = vld [vmem:[%s220 + $0x98] sm:$0xff]
          %261 = vst [vmem:[%s221 + $0x98] sm:$0xff] %v260
          %v262 = vld [vmem:[%s220 + $0xa0] sm:$0xff]
          %263 = vst [vmem:[%s221 + $0xa0] sm:$0xff] %v262
          %v264 = vld [vmem:[%s220 + $0xa8] sm:$0xff]
          %265 = vst [vmem:[%s221 + $0xa8] sm:$0xff] %v264
          %v266 = vld [vmem:[%s220 + $0xb0] sm:$0xff]
          %267 = vst [vmem:[%s221 + $0xb0] sm:$0xff] %v266
          %v268 = vld [vmem:[%s220 + $0xb8] sm:$0xff]
          %269 = vst [vmem:[%s221 + $0xb8] sm:$0xff] %v268
          %v270 = vld [vmem:[%s220 + $0xc0] sm:$0xff]
          %271 = vst [vmem:[%s221 + $0xc0] sm:$0xff] %v270
          %v272 = vld [vmem:[%s220 + $0xc8] sm:$0xff]
          %273 = vst [vmem:[%s221 + $0xc8] sm:$0xff] %v272
          %v274 = vld [vmem:[%s220 + $0xd0] sm:$0xff]
          %275 = vst [vmem:[%s221 + $0xd0] sm:$0xff] %v274
          %v276 = vld [vmem:[%s220 + $0xd8] sm:$0xff]
          %277 = vst [vmem:[%s221 + $0xd8] sm:$0xff] %v276
          %v278 = vld [vmem:[%s220 + $0xe0] sm:$0xff]
          %279 = vst [vmem:[%s221 + $0xe0] sm:$0xff] %v278
          %v280 = vld [vmem:[%s220 + $0xe8] sm:$0xff]
          %281 = vst [vmem:[%s221 + $0xe8] sm:$0xff] %v280
          %v282 = vld [vmem:[%s220 + $0xf0] sm:$0xff]
          %283 = vst [vmem:[%s221 + $0xf0] sm:$0xff] %v282
          %v284 = vld [vmem:[%s220 + $0xf8] sm:$0xff]
          %285 = vst [vmem:[%s221 + $0xf8] sm:$0xff] %v284
          %v286 = vld [vmem:[%s220 + $0x100] sm:$0xff]
          %287 = vst [vmem:[%s221 + $0x100] sm:$0xff] %v286
          %v288 = vld [vmem:[%s220 + $0x108] sm:$0xff]
          %289 = vst [vmem:[%s221 + $0x108] sm:$0xff] %v288
          %v290 = vld [vmem:[%s220 + $0x110] sm:$0xff]
          %291 = vst [vmem:[%s221 + $0x110] sm:$0xff] %v290
          %v292 = vld [vmem:[%s220 + $0x118] sm:$0xff]
          %293 = vst [vmem:[%s221 + $0x118] sm:$0xff] %v292
          %v294 = vld [vmem:[%s220 + $0x120] sm:$0xff]
          %295 = vst [vmem:[%s221 + $0x120] sm:$0xff] %v294
          %v296 = vld [vmem:[%s220 + $0x128] sm:$0xff]
          %297 = vst [vmem:[%s221 + $0x128] sm:$0xff] %v296
          %v298 = vld [vmem:[%s220 + $0x130] sm:$0xff]
          %299 = vst [vmem:[%s221 + $0x130] sm:$0xff] %v298
          %v300 = vld [vmem:[%s220 + $0x138] sm:$0xff]
          %301 = vst [vmem:[%s221 + $0x138] sm:$0xff] %v300
          %v302 = vld [vmem:[%s220 + $0x140] sm:$0xff]
          %303 = vst [vmem:[%s221 + $0x140] sm:$0xff] %v302
          %v304 = vld [vmem:[%s220 + $0x148] sm:$0xff]
          %305 = vst [vmem:[%s221 + $0x148] sm:$0xff] %v304
          %v306 = vld [vmem:[%s220 + $0x150] sm:$0xff]
          %307 = vst [vmem:[%s221 + $0x150] sm:$0xff] %v306
          %v308 = vld [vmem:[%s220 + $0x158] sm:$0xff]
          %309 = vst [vmem:[%s221 + $0x158] sm:$0xff] %v308
          %v310 = vld [vmem:[%s220 + $0x160] sm:$0xff]
          %311 = vst [vmem:[%s221 + $0x160] sm:$0xff] %v310
          %v312 = vld [vmem:[%s220 + $0x168] sm:$0xff]
          %313 = vst [vmem:[%s221 + $0x168] sm:$0xff] %v312
          %v314 = vld [vmem:[%s220 + $0x170] sm:$0xff]
          %315 = vst [vmem:[%s221 + $0x170] sm:$0xff] %v314
          %v316 = vld [vmem:[%s220 + $0x178] sm:$0xff]
          %317 = vst [vmem:[%s221 + $0x178] sm:$0xff] %v316
          %v318 = vld [vmem:[%s220 + $0x180] sm:$0xff]
          %319 = vst [vmem:[%s221 + $0x180] sm:$0xff] %v318
          %v320 = vld [vmem:[%s220 + $0x188] sm:$0xff]
          %321 = vst [vmem:[%s221 + $0x188] sm:$0xff] %v320
          %v322 = vld [vmem:[%s220 + $0x190] sm:$0xff]
          %323 = vst [vmem:[%s221 + $0x190] sm:$0xff] %v322
          %v324 = vld [vmem:[%s220 + $0x198] sm:$0xff]
          %325 = vst [vmem:[%s221 + $0x198] sm:$0xff] %v324
          %v326 = vld [vmem:[%s220 + $0x1a0] sm:$0xff]
          %327 = vst [vmem:[%s221 + $0x1a0] sm:$0xff] %v326
          %v328 = vld [vmem:[%s220 + $0x1a8] sm:$0xff]
          %329 = vst [vmem:[%s221 + $0x1a8] sm:$0xff] %v328
          %v330 = vld [vmem:[%s220 + $0x1b0] sm:$0xff]
          %331 = vst [vmem:[%s221 + $0x1b0] sm:$0xff] %v330
          %v332 = vld [vmem:[%s220 + $0x1b8] sm:$0xff]
          %333 = vst [vmem:[%s221 + $0x1b8] sm:$0xff] %v332
          %v334 = vld [vmem:[%s220 + $0x1c0] sm:$0xff]
          %335 = vst [vmem:[%s221 + $0x1c0] sm:$0xff] %v334
          %v336 = vld [vmem:[%s220 + $0x1c8] sm:$0xff]
          %337 = vst [vmem:[%s221 + $0x1c8] sm:$0xff] %v336
          %v338 = vld [vmem:[%s220 + $0x1d0] sm:$0xff]
          %339 = vst [vmem:[%s221 + $0x1d0] sm:$0xff] %v338
          %v340 = vld [vmem:[%s220 + $0x1d8] sm:$0xff]
          %341 = vst [vmem:[%s221 + $0x1d8] sm:$0xff] %v340
          %v342 = vld [vmem:[%s220 + $0x1e0] sm:$0xff]
          %343 = vst [vmem:[%s221 + $0x1e0] sm:$0xff] %v342
          %v344 = vld [vmem:[%s220 + $0x1e8] sm:$0xff]
          %345 = vst [vmem:[%s221 + $0x1e8] sm:$0xff] %v344
          %v346 = vld [vmem:[%s220 + $0x1f0] sm:$0xff]
          %347 = vst [vmem:[%s221 + $0x1f0] sm:$0xff] %v346
          %v348 = vld [vmem:[%s220 + $0x1f8] sm:$0xff]
          %349 = vst [vmem:[%s221 + $0x1f8] sm:$0xff] %v348
          %v350 = vld [vmem:[%s220 + $0x200] sm:$0xff]
          %351 = vst [vmem:[%s221 + $0x200] sm:$0xff] %v350
          %v352 = vld [vmem:[%s220 + $0x208] sm:$0xff]
          %353 = vst [vmem:[%s221 + $0x208] sm:$0xff] %v352
          %v354 = vld [vmem:[%s220 + $0x210] sm:$0xff]
          %355 = vst [vmem:[%s221 + $0x210] sm:$0xff] %v354
          %v356 = vld [vmem:[%s220 + $0x218] sm:$0xff]
          %357 = vst [vmem:[%s221 + $0x218] sm:$0xff] %v356
          %v358 = vld [vmem:[%s220 + $0x220] sm:$0xff]
          %359 = vst [vmem:[%s221 + $0x220] sm:$0xff] %v358
          %v360 = vld [vmem:[%s220 + $0x228] sm:$0xff]
          %361 = vst [vmem:[%s221 + $0x228] sm:$0xff] %v360
          %v362 = vld [vmem:[%s220 + $0x230] sm:$0xff]
          %363 = vst [vmem:[%s221 + $0x230] sm:$0xff] %v362
          %v364 = vld [vmem:[%s220 + $0x238] sm:$0xff]
          %365 = vst [vmem:[%s221 + $0x238] sm:$0xff] %v364
          %v366 = vld [vmem:[%s220 + $0x240] sm:$0xff]
          %367 = vst [vmem:[%s221 + $0x240] sm:$0xff] %v366
          %v368 = vld [vmem:[%s220 + $0x248] sm:$0xff]
          %369 = vst [vmem:[%s221 + $0x248] sm:$0xff] %v368
          %v370 = vld [vmem:[%s220 + $0x250] sm:$0xff]
          %371 = vst [vmem:[%s221 + $0x250] sm:$0xff] %v370
          %v372 = vld [vmem:[%s220 + $0x258] sm:$0xff]
          %373 = vst [vmem:[%s221 + $0x258] sm:$0xff] %v372
          %v374 = vld [vmem:[%s220 + $0x260] sm:$0xff]
          %375 = vst [vmem:[%s221 + $0x260] sm:$0xff] %v374
          %v376 = vld [vmem:[%s220 + $0x268] sm:$0xff]
          %377 = vst [vmem:[%s221 + $0x268] sm:$0xff] %v376
          %v378 = vld [vmem:[%s220 + $0x270] sm:$0xff]
          %379 = vst [vmem:[%s221 + $0x270] sm:$0xff] %v378
          %v380 = vld [vmem:[%s220 + $0x278] sm:$0xff]
          %381 = vst [vmem:[%s221 + $0x278] sm:$0xff] %v380
          %v382 = vld [vmem:[%s220 + $0x280] sm:$0xff]
          %383 = vst [vmem:[%s221 + $0x280] sm:$0xff] %v382
          %v384 = vld [vmem:[%s220 + $0x288] sm:$0xff]
          %385 = vst [vmem:[%s221 + $0x288] sm:$0xff] %v384
          %v386 = vld [vmem:[%s220 + $0x290] sm:$0xff]
          %387 = vst [vmem:[%s221 + $0x290] sm:$0xff] %v386
          %v388 = vld [vmem:[%s220 + $0x298] sm:$0xff]
          %389 = vst [vmem:[%s221 + $0x298] sm:$0xff] %v388
          %v390 = vld [vmem:[%s220 + $0x2a0] sm:$0xff]
          %391 = vst [vmem:[%s221 + $0x2a0] sm:$0xff] %v390
          %v392 = vld [vmem:[%s220 + $0x2a8] sm:$0xff]
          %393 = vst [vmem:[%s221 + $0x2a8] sm:$0xff] %v392
          %v394 = vld [vmem:[%s220 + $0x2b0] sm:$0xff]
          %395 = vst [vmem:[%s221 + $0x2b0] sm:$0xff] %v394
          %v396 = vld [vmem:[%s220 + $0x2b8] sm:$0xff]
          %397 = vst [vmem:[%s221 + $0x2b8] sm:$0xff] %v396
          %v398 = vld [vmem:[%s220 + $0x2c0] sm:$0xff]
          %399 = vst [vmem:[%s221 + $0x2c0] sm:$0xff] %v398
          %v400 = vld [vmem:[%s220 + $0x2c8] sm:$0xff]
          %401 = vst [vmem:[%s221 + $0x2c8] sm:$0xff] %v400
          %v402 = vld [vmem:[%s220 + $0x2d0] sm:$0xff]
          %403 = vst [vmem:[%s221 + $0x2d0] sm:$0xff] %v402
          %v404 = vld [vmem:[%s220 + $0x2d8] sm:$0xff]
          %405 = vst [vmem:[%s221 + $0x2d8] sm:$0xff] %v404
          %v406 = vld [vmem:[%s220 + $0x2e0] sm:$0xff]
          %407 = vst [vmem:[%s221 + $0x2e0] sm:$0xff] %v406
          %v408 = vld [vmem:[%s220 + $0x2e8] sm:$0xff]
          %409 = vst [vmem:[%s221 + $0x2e8] sm:$0xff] %v408
          %v410 = vld [vmem:[%s220 + $0x2f0] sm:$0xff]
          %411 = vst [vmem:[%s221 + $0x2f0] sm:$0xff] %v410
          %v412 = vld [vmem:[%s220 + $0x2f8] sm:$0xff]
          %413 = vst [vmem:[%s221 + $0x2f8] sm:$0xff] %v412
          %v414 = vld [vmem:[%s220 + $0x300] sm:$0xff]
          %415 = vst [vmem:[%s221 + $0x300] sm:$0xff] %v414
          %v416 = vld [vmem:[%s220 + $0x308] sm:$0xff]
          %417 = vst [vmem:[%s221 + $0x308] sm:$0xff] %v416
          %v418 = vld [vmem:[%s220 + $0x310] sm:$0xff]
          %419 = vst [vmem:[%s221 + $0x310] sm:$0xff] %v418
          %v420 = vld [vmem:[%s220 + $0x318] sm:$0xff]
          %421 = vst [vmem:[%s221 + $0x318] sm:$0xff] %v420
          %v422 = vld [vmem:[%s220 + $0x320] sm:$0xff]
          %423 = vst [vmem:[%s221 + $0x320] sm:$0xff] %v422
          %v424 = vld [vmem:[%s220 + $0x328] sm:$0xff]
          %425 = vst [vmem:[%s221 + $0x328] sm:$0xff] %v424
          %v426 = vld [vmem:[%s220 + $0x330] sm:$0xff]
          %427 = vst [vmem:[%s221 + $0x330] sm:$0xff] %v426
          %v428 = vld [vmem:[%s220 + $0x338] sm:$0xff]
          %429 = vst [vmem:[%s221 + $0x338] sm:$0xff] %v428
          %v430 = vld [vmem:[%s220 + $0x340] sm:$0xff]
          %431 = vst [vmem:[%s221 + $0x340] sm:$0xff] %v430
          %v432 = vld [vmem:[%s220 + $0x348] sm:$0xff]
          %433 = vst [vmem:[%s221 + $0x348] sm:$0xff] %v432
          %v434 = vld [vmem:[%s220 + $0x350] sm:$0xff]
          %435 = vst [vmem:[%s221 + $0x350] sm:$0xff] %v434
          %v436 = vld [vmem:[%s220 + $0x358] sm:$0xff]
          %437 = vst [vmem:[%s221 + $0x358] sm:$0xff] %v436
          %v438 = vld [vmem:[%s220 + $0x360] sm:$0xff]
          %439 = vst [vmem:[%s221 + $0x360] sm:$0xff] %v438
          %v440 = vld [vmem:[%s220 + $0x368] sm:$0xff]
          %441 = vst [vmem:[%s221 + $0x368] sm:$0xff] %v440
          %v442 = vld [vmem:[%s220 + $0x370] sm:$0xff]
          %443 = vst [vmem:[%s221 + $0x370] sm:$0xff] %v442
          %v444 = vld [vmem:[%s220 + $0x378] sm:$0xff]
          %445 = vst [vmem:[%s221 + $0x378] sm:$0xff] %v444
          %v446 = vld [vmem:[%s220 + $0x380] sm:$0xff]
          %447 = vst [vmem:[%s221 + $0x380] sm:$0xff] %v446
          %v448 = vld [vmem:[%s220 + $0x388] sm:$0xff]
          %449 = vst [vmem:[%s221 + $0x388] sm:$0xff] %v448
          %v450 = vld [vmem:[%s220 + $0x390] sm:$0xff]
          %451 = vst [vmem:[%s221 + $0x390] sm:$0xff] %v450
          %v452 = vld [vmem:[%s220 + $0x398] sm:$0xff]
          %453 = vst [vmem:[%s221 + $0x398] sm:$0xff] %v452
          %v454 = vld [vmem:[%s220 + $0x3a0] sm:$0xff]
          %455 = vst [vmem:[%s221 + $0x3a0] sm:$0xff] %v454
          %v456 = vld [vmem:[%s220 + $0x3a8] sm:$0xff]
          %457 = vst [vmem:[%s221 + $0x3a8] sm:$0xff] %v456
          %v458 = vld [vmem:[%s220 + $0x3b0] sm:$0xff]
          %459 = vst [vmem:[%s221 + $0x3b0] sm:$0xff] %v458
          %v460 = vld [vmem:[%s220 + $0x3b8] sm:$0xff]
          %461 = vst [vmem:[%s221 + $0x3b8] sm:$0xff] %v460
          %v462 = vld [vmem:[%s220 + $0x3c0] sm:$0xff]
          %463 = vst [vmem:[%s221 + $0x3c0] sm:$0xff] %v462
          %v464 = vld [vmem:[%s220 + $0x3c8] sm:$0xff]
          %465 = vst [vmem:[%s221 + $0x3c8] sm:$0xff] %v464
          %v466 = vld [vmem:[%s220 + $0x3d0] sm:$0xff]
          %467 = vst [vmem:[%s221 + $0x3d0] sm:$0xff] %v466
          %v468 = vld [vmem:[%s220 + $0x3d8] sm:$0xff]
          %469 = vst [vmem:[%s221 + $0x3d8] sm:$0xff] %v468
          %v470 = vld [vmem:[%s220 + $0x3e0] sm:$0xff]
          %471 = vst [vmem:[%s221 + $0x3e0] sm:$0xff] %v470
          %v472 = vld [vmem:[%s220 + $0x3e8] sm:$0xff]
          %473 = vst [vmem:[%s221 + $0x3e8] sm:$0xff] %v472
          %v474 = vld [vmem:[%s220 + $0x3f0] sm:$0xff]
          %475 = vst [vmem:[%s221 + $0x3f0] sm:$0xff] %v474
          %v476 = vld [vmem:[%s220 + $0x3f8] sm:$0xff]
          %477 = vst [vmem:[%s221 + $0x3f8] sm:$0xff] %v476
          %v478 = vld [vmem:[%s220 + $0x400] sm:$0xff]
          %479 = vst [vmem:[%s221 + $0x400] sm:$0xff] %v478
          %v480 = vld [vmem:[%s220 + $0x408] sm:$0xff]
          %481 = vst [vmem:[%s221 + $0x408] sm:$0xff] %v480
          %v482 = vld [vmem:[%s220 + $0x410] sm:$0xff]
          %483 = vst [vmem:[%s221 + $0x410] sm:$0xff] %v482
          %v484 = vld [vmem:[%s220 + $0x418] sm:$0xff]
          %485 = vst [vmem:[%s221 + $0x418] sm:$0xff] %v484
          %v486 = vld [vmem:[%s220 + $0x420] sm:$0xff]
          %487 = vst [vmem:[%s221 + $0x420] sm:$0xff] %v486
          %v488 = vld [vmem:[%s220 + $0x428] sm:$0xff]
          %489 = vst [vmem:[%s221 + $0x428] sm:$0xff] %v488
          %v490 = vld [vmem:[%s220 + $0x430] sm:$0xff]
          %491 = vst [vmem:[%s221 + $0x430] sm:$0xff] %v490
          %v492 = vld [vmem:[%s220 + $0x438] sm:$0xff]
          %493 = vst [vmem:[%s221 + $0x438] sm:$0xff] %v492
          %v494 = vld [vmem:[%s220 + $0x440] sm:$0xff]
          %495 = vst [vmem:[%s221 + $0x440] sm:$0xff] %v494
          %v496 = vld [vmem:[%s220 + $0x448] sm:$0xff]
          %497 = vst [vmem:[%s221 + $0x448] sm:$0xff] %v496
          %v498 = vld [vmem:[%s220 + $0x450] sm:$0xff]
          %499 = vst [vmem:[%s221 + $0x450] sm:$0xff] %v498
          %v500 = vld [vmem:[%s220 + $0x458] sm:$0xff]
          %501 = vst [vmem:[%s221 + $0x458] sm:$0xff] %v500
          %v502 = vld [vmem:[%s220 + $0x460] sm:$0xff]
          %503 = vst [vmem:[%s221 + $0x460] sm:$0xff] %v502
          %v504 = vld [vmem:[%s220 + $0x468] sm:$0xff]
          %505 = vst [vmem:[%s221 + $0x468] sm:$0xff] %v504
          %v506 = vld [vmem:[%s220 + $0x470] sm:$0xff]
          %507 = vst [vmem:[%s221 + $0x470] sm:$0xff] %v506
          %v508 = vld [vmem:[%s220 + $0x478] sm:$0xff]
          %509 = vst [vmem:[%s221 + $0x478] sm:$0xff] %v508
          %v510 = vld [vmem:[%s220 + $0x480] sm:$0xff]
          %511 = vst [vmem:[%s221 + $0x480] sm:$0xff] %v510
          %v512 = vld [vmem:[%s220 + $0x488] sm:$0xff]
          %513 = vst [vmem:[%s221 + $0x488] sm:$0xff] %v512
          %v514 = vld [vmem:[%s220 + $0x490] sm:$0xff]
          %515 = vst [vmem:[%s221 + $0x490] sm:$0xff] %v514
          %v516 = vld [vmem:[%s220 + $0x498] sm:$0xff]
          %517 = vst [vmem:[%s221 + $0x498] sm:$0xff] %v516
          %v518 = vld [vmem:[%s220 + $0x4a0] sm:$0xff]
          %519 = vst [vmem:[%s221 + $0x4a0] sm:$0xff] %v518
          %v520 = vld [vmem:[%s220 + $0x4a8] sm:$0xff]
          %521 = vst [vmem:[%s221 + $0x4a8] sm:$0xff] %v520
          %v522 = vld [vmem:[%s220 + $0x4b0] sm:$0xff]
          %523 = vst [vmem:[%s221 + $0x4b0] sm:$0xff] %v522
          %v524 = vld [vmem:[%s220 + $0x4b8] sm:$0xff]
          %525 = vst [vmem:[%s221 + $0x4b8] sm:$0xff] %v524
          %v526 = vld [vmem:[%s220 + $0x4c0] sm:$0xff]
          %527 = vst [vmem:[%s221 + $0x4c0] sm:$0xff] %v526
          %v528 = vld [vmem:[%s220 + $0x4c8] sm:$0xff]
          %529 = vst [vmem:[%s221 + $0x4c8] sm:$0xff] %v528
          %v530 = vld [vmem:[%s220 + $0x4d0] sm:$0xff]
          %531 = vst [vmem:[%s221 + $0x4d0] sm:$0xff] %v530
          %v532 = vld [vmem:[%s220 + $0x4d8] sm:$0xff]
          %533 = vst [vmem:[%s221 + $0x4d8] sm:$0xff] %v532
          %v534 = vld [vmem:[%s220 + $0x4e0] sm:$0xff]
          %535 = vst [vmem:[%s221 + $0x4e0] sm:$0xff] %v534
          %v536 = vld [vmem:[%s220 + $0x4e8] sm:$0xff]
          %537 = vst [vmem:[%s221 + $0x4e8] sm:$0xff] %v536
          %v538 = vld [vmem:[%s220 + $0x4f0] sm:$0xff]
          %539 = vst [vmem:[%s221 + $0x4f0] sm:$0xff] %v538
          %v540 = vld [vmem:[%s220 + $0x4f8] sm:$0xff]
          %541 = vst [vmem:[%s221 + $0x4f8] sm:$0xff] %v540
          %v542 = vld [vmem:[%s220 + $0x500] sm:$0xff]
          %543 = vst [vmem:[%s221 + $0x500] sm:$0xff] %v542
          %v544 = vld [vmem:[%s220 + $0x508] sm:$0xff]
          %545 = vst [vmem:[%s221 + $0x508] sm:$0xff] %v544
          %v546 = vld [vmem:[%s220 + $0x510] sm:$0xff]
          %547 = vst [vmem:[%s221 + $0x510] sm:$0xff] %v546
          %v548 = vld [vmem:[%s220 + $0x518] sm:$0xff]
          %549 = vst [vmem:[%s221 + $0x518] sm:$0xff] %v548
          %v550 = vld [vmem:[%s220 + $0x520] sm:$0xff]
          %551 = vst [vmem:[%s221 + $0x520] sm:$0xff] %v550
          %v552 = vld [vmem:[%s220 + $0x528] sm:$0xff]
          %553 = vst [vmem:[%s221 + $0x528] sm:$0xff] %v552
          %v554 = vld [vmem:[%s220 + $0x530] sm:$0xff]
          %555 = vst [vmem:[%s221 + $0x530] sm:$0xff] %v554
          %v556 = vld [vmem:[%s220 + $0x538] sm:$0xff]
          %557 = vst [vmem:[%s221 + $0x538] sm:$0xff] %v556
          %v558 = vld [vmem:[%s220 + $0x540] sm:$0xff]
          %559 = vst [vmem:[%s221 + $0x540] sm:$0xff] %v558
          %v560 = vld [vmem:[%s220 + $0x548] sm:$0xff]
          %561 = vst [vmem:[%s221 + $0x548] sm:$0xff] %v560
          %v562 = vld [vmem:[%s220 + $0x550] sm:$0xff]
          %563 = vst [vmem:[%s221 + $0x550] sm:$0xff] %v562
          %v564 = vld [vmem:[%s220 + $0x558] sm:$0xff]
          %565 = vst [vmem:[%s221 + $0x558] sm:$0xff] %v564
          %v566 = vld [vmem:[%s220 + $0x560] sm:$0xff]
          %567 = vst [vmem:[%s221 + $0x560] sm:$0xff] %v566
          %v568 = vld [vmem:[%s220 + $0x568] sm:$0xff]
          %569 = vst [vmem:[%s221 + $0x568] sm:$0xff] %v568
          %v570 = vld [vmem:[%s220 + $0x570] sm:$0xff]
          %571 = vst [vmem:[%s221 + $0x570] sm:$0xff] %v570
          %v572 = vld [vmem:[%s220 + $0x578] sm:$0xff]
          %573 = vst [vmem:[%s221 + $0x578] sm:$0xff] %v572
          %v574 = vld [vmem:[%s220 + $0x580] sm:$0xff]
          %575 = vst [vmem:[%s221 + $0x580] sm:$0xff] %v574
          %v576 = vld [vmem:[%s220 + $0x588] sm:$0xff]
          %577 = vst [vmem:[%s221 + $0x588] sm:$0xff] %v576
          %v578 = vld [vmem:[%s220 + $0x590] sm:$0xff]
          %579 = vst [vmem:[%s221 + $0x590] sm:$0xff] %v578
          %v580 = vld [vmem:[%s220 + $0x598] sm:$0xff]
          %581 = vst [vmem:[%s221 + $0x598] sm:$0xff] %v580
          %v582 = vld [vmem:[%s220 + $0x5a0] sm:$0xff]
          %583 = vst [vmem:[%s221 + $0x5a0] sm:$0xff] %v582
          %v584 = vld [vmem:[%s220 + $0x5a8] sm:$0xff]
          %585 = vst [vmem:[%s221 + $0x5a8] sm:$0xff] %v584
          %v586 = vld [vmem:[%s220 + $0x5b0] sm:$0xff]
          %587 = vst [vmem:[%s221 + $0x5b0] sm:$0xff] %v586
          %v588 = vld [vmem:[%s220 + $0x5b8] sm:$0xff]
          %589 = vst [vmem:[%s221 + $0x5b8] sm:$0xff] %v588
          %v590 = vld [vmem:[%s220 + $0x5c0] sm:$0xff]
          %591 = vst [vmem:[%s221 + $0x5c0] sm:$0xff] %v590
          %v592 = vld [vmem:[%s220 + $0x5c8] sm:$0xff]
          %593 = vst [vmem:[%s221 + $0x5c8] sm:$0xff] %v592
          %v594 = vld [vmem:[%s220 + $0x5d0] sm:$0xff]
          %595 = vst [vmem:[%s221 + $0x5d0] sm:$0xff] %v594
          %v596 = vld [vmem:[%s220 + $0x5d8] sm:$0xff]
          %597 = vst [vmem:[%s221 + $0x5d8] sm:$0xff] %v596
          %v598 = vld [vmem:[%s220 + $0x5e0] sm:$0xff]
          %599 = vst [vmem:[%s221 + $0x5e0] sm:$0xff] %v598
          %v600 = vld [vmem:[%s220 + $0x5e8] sm:$0xff]
          %601 = vst [vmem:[%s221 + $0x5e8] sm:$0xff] %v600
          %v602 = vld [vmem:[%s220 + $0x5f0] sm:$0xff]
          %603 = vst [vmem:[%s221 + $0x5f0] sm:$0xff] %v602
          %v604 = vld [vmem:[%s220 + $0x5f8] sm:$0xff]
          %605 = vst [vmem:[%s221 + $0x5f8] sm:$0xff] %v604
          %v606 = vld [vmem:[%s220 + $0x600] sm:$0xff]
          %607 = vst [vmem:[%s221 + $0x600] sm:$0xff] %v606
          %v608 = vld [vmem:[%s220 + $0x608] sm:$0xff]
          %609 = vst [vmem:[%s221 + $0x608] sm:$0xff] %v608
          %v610 = vld [vmem:[%s220 + $0x610] sm:$0xff]
          %611 = vst [vmem:[%s221 + $0x610] sm:$0xff] %v610
          %v612 = vld [vmem:[%s220 + $0x618] sm:$0xff]
          %613 = vst [vmem:[%s221 + $0x618] sm:$0xff] %v612
          %v614 = vld [vmem:[%s220 + $0x620] sm:$0xff]
          %615 = vst [vmem:[%s221 + $0x620] sm:$0xff] %v614
          %v616 = vld [vmem:[%s220 + $0x628] sm:$0xff]
          %617 = vst [vmem:[%s221 + $0x628] sm:$0xff] %v616
          %v618 = vld [vmem:[%s220 + $0x630] sm:$0xff]
          %619 = vst [vmem:[%s221 + $0x630] sm:$0xff] %v618
          %v620 = vld [vmem:[%s220 + $0x638] sm:$0xff]
          %621 = vst [vmem:[%s221 + $0x638] sm:$0xff] %v620
          %v622 = vld [vmem:[%s220 + $0x640] sm:$0xff]
          %623 = vst [vmem:[%s221 + $0x640] sm:$0xff] %v622
          %v624 = vld [vmem:[%s220 + $0x648] sm:$0xff]
          %625 = vst [vmem:[%s221 + $0x648] sm:$0xff] %v624
          %v626 = vld [vmem:[%s220 + $0x650] sm:$0xff]
          %627 = vst [vmem:[%s221 + $0x650] sm:$0xff] %v626
          %v628 = vld [vmem:[%s220 + $0x658] sm:$0xff]
          %629 = vst [vmem:[%s221 + $0x658] sm:$0xff] %v628
          %v630 = vld [vmem:[%s220 + $0x660] sm:$0xff]
          %631 = vst [vmem:[%s221 + $0x660] sm:$0xff] %v630
          %v632 = vld [vmem:[%s220 + $0x668] sm:$0xff]
          %633 = vst [vmem:[%s221 + $0x668] sm:$0xff] %v632
          %v634 = vld [vmem:[%s220 + $0x670] sm:$0xff]
          %635 = vst [vmem:[%s221 + $0x670] sm:$0xff] %v634
          %v636 = vld [vmem:[%s220 + $0x678] sm:$0xff]
          %637 = vst [vmem:[%s221 + $0x678] sm:$0xff] %v636
          %v638 = vld [vmem:[%s220 + $0x680] sm:$0xff]
          %639 = vst [vmem:[%s221 + $0x680] sm:$0xff] %v638
          %v640 = vld [vmem:[%s220 + $0x688] sm:$0xff]
          %641 = vst [vmem:[%s221 + $0x688] sm:$0xff] %v640
          %v642 = vld [vmem:[%s220 + $0x690] sm:$0xff]
          %643 = vst [vmem:[%s221 + $0x690] sm:$0xff] %v642
          %v644 = vld [vmem:[%s220 + $0x698] sm:$0xff]
          %645 = vst [vmem:[%s221 + $0x698] sm:$0xff] %v644
          %v646 = vld [vmem:[%s220 + $0x6a0] sm:$0xff]
          %647 = vst [vmem:[%s221 + $0x6a0] sm:$0xff] %v646
          %v648 = vld [vmem:[%s220 + $0x6a8] sm:$0xff]
          %649 = vst [vmem:[%s221 + $0x6a8] sm:$0xff] %v648
          %v650 = vld [vmem:[%s220 + $0x6b0] sm:$0xff]
          %651 = vst [vmem:[%s221 + $0x6b0] sm:$0xff] %v650
          %v652 = vld [vmem:[%s220 + $0x6b8] sm:$0xff]
          %653 = vst [vmem:[%s221 + $0x6b8] sm:$0xff] %v652
          %v654 = vld [vmem:[%s220 + $0x6c0] sm:$0xff]
          %655 = vst [vmem:[%s221 + $0x6c0] sm:$0xff] %v654
          %v656 = vld [vmem:[%s220 + $0x6c8] sm:$0xff]
          %657 = vst [vmem:[%s221 + $0x6c8] sm:$0xff] %v656
          %v658 = vld [vmem:[%s220 + $0x6d0] sm:$0xff]
          %659 = vst [vmem:[%s221 + $0x6d0] sm:$0xff] %v658
          %v660 = vld [vmem:[%s220 + $0x6d8] sm:$0xff]
          %661 = vst [vmem:[%s221 + $0x6d8] sm:$0xff] %v660
          %v662 = vld [vmem:[%s220 + $0x6e0] sm:$0xff]
          %663 = vst [vmem:[%s221 + $0x6e0] sm:$0xff] %v662
          %v664 = vld [vmem:[%s220 + $0x6e8] sm:$0xff]
          %665 = vst [vmem:[%s221 + $0x6e8] sm:$0xff] %v664
          %v666 = vld [vmem:[%s220 + $0x6f0] sm:$0xff]
          %667 = vst [vmem:[%s221 + $0x6f0] sm:$0xff] %v666
          %v668 = vld [vmem:[%s220 + $0x6f8] sm:$0xff]
          %669 = vst [vmem:[%s221 + $0x6f8] sm:$0xff] %v668
          %v670 = vld [vmem:[%s220 + $0x700] sm:$0xff]
          %671 = vst [vmem:[%s221 + $0x700] sm:$0xff] %v670
          %v672 = vld [vmem:[%s220 + $0x708] sm:$0xff]
          %673 = vst [vmem:[%s221 + $0x708] sm:$0xff] %v672
          %v674 = vld [vmem:[%s220 + $0x710] sm:$0xff]
          %675 = vst [vmem:[%s221 + $0x710] sm:$0xff] %v674
          %v676 = vld [vmem:[%s220 + $0x718] sm:$0xff]
          %677 = vst [vmem:[%s221 + $0x718] sm:$0xff] %v676
          %v678 = vld [vmem:[%s220 + $0x720] sm:$0xff]
          %679 = vst [vmem:[%s221 + $0x720] sm:$0xff] %v678
          %v680 = vld [vmem:[%s220 + $0x728] sm:$0xff]
          %681 = vst [vmem:[%s221 + $0x728] sm:$0xff] %v680
          %v682 = vld [vmem:[%s220 + $0x730] sm:$0xff]
          %683 = vst [vmem:[%s221 + $0x730] sm:$0xff] %v682
          %v684 = vld [vmem:[%s220 + $0x738] sm:$0xff]
          %685 = vst [vmem:[%s221 + $0x738] sm:$0xff] %v684
          %v686 = vld [vmem:[%s220 + $0x740] sm:$0xff]
          %687 = vst [vmem:[%s221 + $0x740] sm:$0xff] %v686
          %v688 = vld [vmem:[%s220 + $0x748] sm:$0xff]
          %689 = vst [vmem:[%s221 + $0x748] sm:$0xff] %v688
          %v690 = vld [vmem:[%s220 + $0x750] sm:$0xff]
          %691 = vst [vmem:[%s221 + $0x750] sm:$0xff] %v690
          %v692 = vld [vmem:[%s220 + $0x758] sm:$0xff]
          %693 = vst [vmem:[%s221 + $0x758] sm:$0xff] %v692
          %v694 = vld [vmem:[%s220 + $0x760] sm:$0xff]
          %695 = vst [vmem:[%s221 + $0x760] sm:$0xff] %v694
          %v696 = vld [vmem:[%s220 + $0x768] sm:$0xff]
          %697 = vst [vmem:[%s221 + $0x768] sm:$0xff] %v696
          %v698 = vld [vmem:[%s220 + $0x770] sm:$0xff]
          %699 = vst [vmem:[%s221 + $0x770] sm:$0xff] %v698
          %v700 = vld [vmem:[%s220 + $0x778] sm:$0xff]
          %701 = vst [vmem:[%s221 + $0x778] sm:$0xff] %v700
          %v702 = vld [vmem:[%s220 + $0x780] sm:$0xff]
          %703 = vst [vmem:[%s221 + $0x780] sm:$0xff] %v702
          %v704 = vld [vmem:[%s220 + $0x788] sm:$0xff]
          %705 = vst [vmem:[%s221 + $0x788] sm:$0xff] %v704
          %v706 = vld [vmem:[%s220 + $0x790] sm:$0xff]
          %707 = vst [vmem:[%s221 + $0x790] sm:$0xff] %v706
          %v708 = vld [vmem:[%s220 + $0x798] sm:$0xff]
          %709 = vst [vmem:[%s221 + $0x798] sm:$0xff] %v708
          %v710 = vld [vmem:[%s220 + $0x7a0] sm:$0xff]
          %711 = vst [vmem:[%s221 + $0x7a0] sm:$0xff] %v710
          %v712 = vld [vmem:[%s220 + $0x7a8] sm:$0xff]
          %713 = vst [vmem:[%s221 + $0x7a8] sm:$0xff] %v712
          %v714 = vld [vmem:[%s220 + $0x7b0] sm:$0xff]
          %715 = vst [vmem:[%s221 + $0x7b0] sm:$0xff] %v714
          %v716 = vld [vmem:[%s220 + $0x7b8] sm:$0xff]
          %717 = vst [vmem:[%s221 + $0x7b8] sm:$0xff] %v716
          %v718 = vld [vmem:[%s220 + $0x7c0] sm:$0xff]
          %719 = vst [vmem:[%s221 + $0x7c0] sm:$0xff] %v718
          %v720 = vld [vmem:[%s220 + $0x7c8] sm:$0xff]
          %721 = vst [vmem:[%s221 + $0x7c8] sm:$0xff] %v720
          %v722 = vld [vmem:[%s220 + $0x7d0] sm:$0xff]
          %723 = vst [vmem:[%s221 + $0x7d0] sm:$0xff] %v722
          %v724 = vld [vmem:[%s220 + $0x7d8] sm:$0xff]
          %725 = vst [vmem:[%s221 + $0x7d8] sm:$0xff] %v724
          %v726 = vld [vmem:[%s220 + $0x7e0] sm:$0xff]
          %727 = vst [vmem:[%s221 + $0x7e0] sm:$0xff] %v726
          %v728 = vld [vmem:[%s220 + $0x7e8] sm:$0xff]
          %729 = vst [vmem:[%s221 + $0x7e8] sm:$0xff] %v728
          %v730 = vld [vmem:[%s220 + $0x7f0] sm:$0xff]
          %731 = vst [vmem:[%s221 + $0x7f0] sm:$0xff] %v730
          %v732 = vld [vmem:[%s220 + $0x7f8] sm:$0xff]
          %733 = vst [vmem:[%s221 + $0x7f8] sm:$0xff] %v732
        $region119: #{decoder_forward.1} parent=113 // loop_footer
          %s219 = sadd.s32 1, %s215
        $region120: #{decoder_forward.1} parent=113 // loop_footer_branch
          %214 = sbr.rel target = $region116
        $region121: #{decoder_forward.1} parent=113 // loop_exit
          _
      $region114: #{decoder_forward.1} parent=98 // pred_fallthru
        _
      %p734 = pneg %p210
      // Predicated region
      $region122: #{decoder_forward.1} parent=98 // pred_check
        _
      $region123: #{decoder_forward.1} parent=98 // pred_check_branch
        %736 = sbr.rel (%p210) target = $region125
      $region124: #{decoder_forward.1} parent=98 // pred_region
        %s737 = sand.u32 2048, 7
      $region125: #{decoder_forward.1} parent=98 // pred_fallthru
        _
    $region99: #{decoder_forward.1} parent=1 // pred_fallthru
      _
    // Predicated region
    $region100: #{decoder_forward.1} parent=1 // pred_check
      %p195 = pneg %p191
    $region101: #{decoder_forward.1} parent=1 // pred_check_branch
      %197 = sbr.rel (%p195) target = $region103
    $region102: #{decoder_forward.1} parent=1 // pred_region
      %s198 = sshllo.u32 0, 2048
      loop: start=0, step=1, limit=1
      $region104: #{decoder_forward.1} parent=102 // loop_pre_header
        _
      $region105: #{decoder_forward.1} parent=102 // loop_header
        %s200 = sphi 0, %s204
        %p201 = scmp.ge.s32.totalorder %s200, 1
        %s205 = sphi %s16, %s16
        %s206 = sphi [#allocation3], [#allocation3]
      $region106: #{decoder_forward.1} parent=102 // loop_header_branch
        %203 = sbr.rel (%p201) target = $region110
      $region107: #{decoder_forward.1} parent=102 // loop_body
        %v207 = vld [vmem:[%s205] sm:%s198]
        %208 = vst [vmem:[%s206] sm:%s198] %v207
      $region108: #{decoder_forward.1} parent=102 // loop_footer
        %s204 = sadd.s32 1, %s200
      $region109: #{decoder_forward.1} parent=102 // loop_footer_branch
        %199 = sbr.rel target = $region105
      $region110: #{decoder_forward.1} parent=102 // loop_exit
        _
    $region103: #{decoder_forward.1} parent=1 // pred_fallthru
      _
    // Predicated region
    $region126: #{decoder_forward.1} parent=1 // pred_check
      _
    $region127: #{decoder_forward.1} parent=1 // pred_check_branch
      %740 = sbr.rel (0) target = $region129
    $region128: #{decoder_forward.1} parent=1 // pred_region
      %741 = vsyncadd %s189, 32768
    $region129: #{decoder_forward.1} parent=1 // pred_fallthru
      _
    %v742 = vld [vmem:[%s0] sm:$0xff]
    %v743 = vld [vmem:[%s0 + $0x8] sm:$0xff]
    %v744 = vld [vmem:[%s2] sm:$0xff]
    %v745 = vld [vmem:[%s2 + $0x8] sm:$0xff]
    %v746 = vadd.f32 %v742, %v744
    %v747 = vadd.f32 %v743, %v745
    %v748 = vld [vmem:[%s1] sm:$0xff]
    %v749 = vld [vmem:[%s1 + $0x8] sm:$0xff]
    %v750 = vld [vmem:[%s3] sm:$0xff]
    %v751 = vld [vmem:[%s3 + $0x8] sm:$0xff]
    %v752 = vld [vmem:[%s4] sm:$0xff]
    %v753 = vld [vmem:[%s4 + $0x8] sm:$0xff]
    %v754 = vld [vmem:[%s7] sm:$0xff]
    %v755 = vld [vmem:[%s7 + $0x8] sm:$0xff]
    %v756 = vld [vmem:[%s7 + $0x10] sm:$0xf]
    %v757 = vld [vmem:[%s8] sm:$0x1]
    %v759 = vlaneseq
    %v760 = vshrl.u32 %v759, 7
    %v761 = vsub.s32 0, %v760
    %v762 = vrot.slane %v757, %v761
    %vm764 = vcmask 162816
    %v766 = vsel %vm764, %v746, 0
    %v769 = vsel %vm764, %v747, 0
    %vm771 = vcmask 1043456
    %v773 = vsel %vm771, %v756, 0
    %775 = vmatprep.subr.mxu0 0.0
    %776 = vmatpush1.msra.mxu0 %v754
    %777 = vmatprep.subr.mxu0 0.0
    %778 = vmatpush1.msra.mxu0 %v755
    %779 = vmatprep.subr.mxu0 0.0
    %780 = vmatpush1.msra.mxu0 %v773
    %781 = vmatprep.subr.mxu0 0.0
    %782 = vmatpush1.msra.mxu0 0.0
    %783 = vmatprep.subr.mxu0 0.0
    %784 = vmatpush1.msra.mxu0 0.0
    %785 = vmatprep.subr.mxu0 0.0
    %786 = vmatpush1.msra.mxu0 0.0
    %787 = vmatprep.subr.mxu0 0.0
    %788 = vmatpush1.msra.mxu0 0.0
    %789 = vmatprep.subr.mxu0 0.0
    %790 = vmatpush1.msra.mxu0 0.0
    %791 = vmatprep.subr.mxu0 0.0
    %792 = vmatpush1.msra.mxu0 0.0
    %793 = vmatprep.subr.mxu0 0.0
    %794 = vmatpush1.msra.mxu0 0.0
    %795 = vmatprep.subr.mxu0 0.0
    %796 = vmatpush1.msra.mxu0 0.0
    %797 = vmatprep.subr.mxu0 0.0
    %798 = vmatpush1.msra.mxu0 0.0
    %799 = vmatprep.subr.mxu0 0.0
    %800 = vmatpush1.msra.mxu0 0.0
    %801 = vmatprep.subr.mxu0 0.0
    %802 = vmatpush1.msra.mxu0 0.0
    %803 = vmatprep.subr.mxu0 0.0
    %804 = vmatpush1.msra.mxu0 0.0
    %805 = vmatprep.subr.mxu0 0.0
    %806 = vmatpush1.msra.mxu0 0.0
    %807 = vmatprep.subr.mxu0 0.0
    %808 = vmatpush1.msra.mxu0 0.0
    %809 = vmatprep.subr.mxu0 0.0
    %810 = vmatpush1.msra.mxu0 0.0
    %811 = vmatprep.subr.mxu0 0.0
    %812 = vmatpush1.msra.mxu0 0.0
    %813 = vmatprep.subr.mxu0 0.0
    %814 = vmatpush1.msra.mxu0 0.0
    %815 = vmatprep.subr.mxu0 0.0
    %816 = vmatpush1.msra.mxu0 0.0
    %817 = vmatprep.subr.mxu0 0.0
    %818 = vmatpush1.msra.mxu0 0.0
    %819 = vmatprep.subr.mxu0 0.0
    %820 = vmatpush1.msra.mxu0 0.0
    %821 = vmatprep.subr.mxu0 0.0
    %822 = vmatpush1.msra.mxu0 0.0
    %823 = vmatprep.subr.mxu0 0.0
    %824 = vmatpush1.msra.mxu0 0.0
    %825 = vmatprep.subr.mxu0 0.0
    %826 = vmatpush1.msra.mxu0 0.0
    %827 = vmatprep.subr.mxu0 0.0
    %828 = vmatpush1.msra.mxu0 0.0
    %829 = vmatprep.subr.mxu0 0.0
    %830 = vmatpush1.msra.mxu0 0.0
    %831 = vmatprep.subr.mxu0 0.0
    %832 = vmatpush1.msra.mxu0 0.0
    %833 = vmatprep.subr.mxu0 0.0
    %834 = vmatpush1.msra.mxu0 0.0
    %835 = vmatprep.subr.mxu0 0.0
    %836 = vmatpush1.msra.mxu0 0.0
    %837 = vmatprep.subr.mxu0 0.0
    %838 = vmatpush1.msra.mxu0 0.0
    %839 = vmatprep.mubr.f32.mxu0 0.0
    %840 = vmatmul.mubr.f32.gmra.mrb[0].mxu0 %v766
    %v841 = vpop.f32.mrb[0].mxu0
    %v842 = vadd.f32 %v762, %v841
    %v843 = vpop.f32.mrb[0].mxu0
    %844 = vmatprep.mubr.f32.mxu0 0.0
    %845 = vmatmul.mubr.f32.gmra.mrb[0].mxu0 %v769
    %v846 = vpop.f32.mrb[0].mxu0
    %v847 = vadd.f32 %v762, %v846
    %v848 = vpop.f32.mrb[0].mxu0
    %849 = vdwg.mxu0
    %v850 = vmul.f32 %v750, %v842
    %v851 = vmul.f32 %v751, %v847
    %v852 = vld [vmem:[%s9] sm:$0xff]
    %v853 = vld [vmem:[%s9 + $0x8] sm:$0xff]
    %v854 = vld [vmem:[%s9 + $0x10] sm:$0xf]
    %v855 = vld [vmem:[%s10] sm:$0x1]
    %v857 = vlaneseq
    %v858 = vshrl.u32 %v857, 7
    %v859 = vsub.s32 0, %v858
    %v860 = vrot.slane %v855, %v859
    %v863 = vsel %vm764, %v748, 0
    %v866 = vsel %vm764, %v749, 0
    %v869 = vsel %vm771, %v854, 0
    %871 = vmatprep.subr.mxu0 0.0
    %872 = vmatpush1.msra.mxu0 %v852
    %873 = vmatprep.subr.mxu0 0.0
    %874 = vmatpush1.msra.mxu0 %v853
    %875 = vmatprep.subr.mxu0 0.0
    %876 = vmatpush1.msra.mxu0 %v869
    %877 = vmatprep.subr.mxu0 0.0
    %878 = vmatpush1.msra.mxu0 0.0
    %879 = vmatprep.subr.mxu0 0.0
    %880 = vmatpush1.msra.mxu0 0.0
    %881 = vmatprep.subr.mxu0 0.0
    %882 = vmatpush1.msra.mxu0 0.0
    %883 = vmatprep.subr.mxu0 0.0
    %884 = vmatpush1.msra.mxu0 0.0
    %885 = vmatprep.subr.mxu0 0.0
    %886 = vmatpush1.msra.mxu0 0.0
    %887 = vmatprep.subr.mxu0 0.0
    %888 = vmatpush1.msra.mxu0 0.0
    %889 = vmatprep.subr.mxu0 0.0
    %890 = vmatpush1.msra.mxu0 0.0
    %891 = vmatprep.subr.mxu0 0.0
    %892 = vmatpush1.msra.mxu0 0.0
    %893 = vmatprep.subr.mxu0 0.0
    %894 = vmatpush1.msra.mxu0 0.0
    %895 = vmatprep.subr.mxu0 0.0
    %896 = vmatpush1.msra.mxu0 0.0
    %897 = vmatprep.subr.mxu0 0.0
    %898 = vmatpush1.msra.mxu0 0.0
    %899 = vmatprep.subr.mxu0 0.0
    %900 = vmatpush1.msra.mxu0 0.0
    %901 = vmatprep.subr.mxu0 0.0
    %902 = vmatpush1.msra.mxu0 0.0
    %903 = vmatprep.subr.mxu0 0.0
    %904 = vmatpush1.msra.mxu0 0.0
    %905 = vmatprep.subr.mxu0 0.0
    %906 = vmatpush1.msra.mxu0 0.0
    %907 = vmatprep.subr.mxu0 0.0
    %908 = vmatpush1.msra.mxu0 0.0
    %909 = vmatprep.subr.mxu0 0.0
    %910 = vmatpush1.msra.mxu0 0.0
    %911 = vmatprep.subr.mxu0 0.0
    %912 = vmatpush1.msra.mxu0 0.0
    %913 = vmatprep.subr.mxu0 0.0
    %914 = vmatpush1.msra.mxu0 0.0
    %915 = vmatprep.subr.mxu0 0.0
    %916 = vmatpush1.msra.mxu0 0.0
    %917 = vmatprep.subr.mxu0 0.0
    %918 = vmatpush1.msra.mxu0 0.0
    %919 = vmatprep.subr.mxu0 0.0
    %920 = vmatpush1.msra.mxu0 0.0
    %921 = vmatprep.subr.mxu0 0.0
    %922 = vmatpush1.msra.mxu0 0.0
    %923 = vmatprep.subr.mxu0 0.0
    %924 = vmatpush1.msra.mxu0 0.0
    %925 = vmatprep.subr.mxu0 0.0
    %926 = vmatpush1.msra.mxu0 0.0
    %927 = vmatprep.subr.mxu0 0.0
    %928 = vmatpush1.msra.mxu0 0.0
    %929 = vmatprep.subr.mxu0 0.0
    %930 = vmatpush1.msra.mxu0 0.0
    %931 = vmatprep.subr.mxu0 0.0
    %932 = vmatpush1.msra.mxu0 0.0
    %933 = vmatprep.subr.mxu0 0.0
    %934 = vmatpush1.msra.mxu0 0.0
    %935 = vmatprep.mubr.f32.mxu0 0.0
    %936 = vmatmul.mubr.f32.gmra.mrb[0].mxu0 %v863
    %v937 = vpop.f32.mrb[0].mxu0
    %v938 = vadd.f32 %v860, %v937
    %v939 = vpop.f32.mrb[0].mxu0
    %940 = vmatprep.mubr.f32.mxu0 0.0
    %941 = vmatmul.mubr.f32.gmra.mrb[0].mxu0 %v866
    %v942 = vpop.f32.mrb[0].mxu0
    %v943 = vadd.f32 %v860, %v942
    %v944 = vpop.f32.mrb[0].mxu0
    %945 = vdwg.mxu0
    %s946 = scalar_lea.vmem %s7, 24
    %v947 = vld [vmem:[%s946] sm:$0xff]
    %v948 = vld [vmem:[%s946 + $0x8] sm:$0xff]
    %v949 = vld [vmem:[%s946 + $0x10] sm:$0xf]
    %s950 = scalar_lea.vmem %s8, 1
    %v951 = vld [vmem:[%s950] sm:$0x1]
    %v953 = vlaneseq
    %v954 = vshrl.u32 %v953, 7
    %v955 = vsub.s32 0, %v954
    %v956 = vrot.slane %v951, %v955
    %v959 = vsel %vm771, %v949, 0
    %961 = vmatprep.subr.mxu0 0.0
    %962 = vmatpush1.msra.mxu0 %v947
    %963 = vmatprep.subr.mxu0 0.0
    %964 = vmatpush1.msra.mxu0 %v948
    %965 = vmatprep.subr.mxu0 0.0
    %966 = vmatpush1.msra.mxu0 %v959
    %967 = vmatprep.subr.mxu0 0.0
    %968 = vmatpush1.msra.mxu0 0.0
    %969 = vmatprep.subr.mxu0 0.0
    %970 = vmatpush1.msra.mxu0 0.0
    %971 = vmatprep.subr.mxu0 0.0
    %972 = vmatpush1.msra.mxu0 0.0
    %973 = vmatprep.subr.mxu0 0.0
    %974 = vmatpush1.msra.mxu0 0.0
    %975 = vmatprep.subr.mxu0 0.0
    %976 = vmatpush1.msra.mxu0 0.0
    %977 = vmatprep.subr.mxu0 0.0
    %978 = vmatpush1.msra.mxu0 0.0
    %979 = vmatprep.subr.mxu0 0.0
    %980 = vmatpush1.msra.mxu0 0.0
    %981 = vmatprep.subr.mxu0 0.0
    %982 = vmatpush1.msra.mxu0 0.0
    %983 = vmatprep.subr.mxu0 0.0
    %984 = vmatpush1.msra.mxu0 0.0
    %985 = vmatprep.subr.mxu0 0.0
    %986 = vmatpush1.msra.mxu0 0.0
    %987 = vmatprep.subr.mxu0 0.0
    %988 = vmatpush1.msra.mxu0 0.0
    %989 = vmatprep.subr.mxu0 0.0
    %990 = vmatpush1.msra.mxu0 0.0
    %991 = vmatprep.subr.mxu0 0.0
    %992 = vmatpush1.msra.mxu0 0.0
    %993 = vmatprep.subr.mxu0 0.0
    %994 = vmatpush1.msra.mxu0 0.0
    %995 = vmatprep.subr.mxu0 0.0
    %996 = vmatpush1.msra.mxu0 0.0
    %997 = vmatprep.subr.mxu0 0.0
    %998 = vmatpush1.msra.mxu0 0.0
    %999 = vmatprep.subr.mxu0 0.0
    %1000 = vmatpush1.msra.mxu0 0.0
    %1001 = vmatprep.subr.mxu0 0.0
    %1002 = vmatpush1.msra.mxu0 0.0
    %1003 = vmatprep.subr.mxu0 0.0
    %1004 = vmatpush1.msra.mxu0 0.0
    %1005 = vmatprep.subr.mxu0 0.0
    %1006 = vmatpush1.msra.mxu0 0.0
    %1007 = vmatprep.subr.mxu0 0.0
    %1008 = vmatpush1.msra.mxu0 0.0
    %1009 = vmatprep.subr.mxu0 0.0
    %1010 = vmatpush1.msra.mxu0 0.0
    %1011 = vmatprep.subr.mxu0 0.0
    %1012 = vmatpush1.msra.mxu0 0.0
    %1013 = vmatprep.subr.mxu0 0.0
    %1014 = vmatpush1.msra.mxu0 0.0
    %1015 = vmatprep.subr.mxu0 0.0
    %1016 = vmatpush1.msra.mxu0 0.0
    %1017 = vmatprep.subr.mxu0 0.0
    %1018 = vmatpush1.msra.mxu0 0.0
    %1019 = vmatprep.subr.mxu0 0.0
    %1020 = vmatpush1.msra.mxu0 0.0
    %1021 = vmatprep.subr.mxu0 0.0
    %1022 = vmatpush1.msra.mxu0 0.0
    %1023 = vmatprep.subr.mxu0 0.0
    %1024 = vmatpush1.msra.mxu0 0.0
    %1025 = vmatprep.mubr.f32.mxu0 0.0
    %1026 = vmatmul.mubr.f32.gmra.mrb[0].mxu0 %v766
    %v1027 = vpop.f32.mrb[0].mxu0
    %v1028 = vadd.f32 %v956, %v1027
    %v1029 = vpop.f32.mrb[0].mxu0
    %1030 = vmatprep.mubr.f32.mxu0 0.0
    %1031 = vmatmul.mubr.f32.gmra.mrb[0].mxu0 %v769
    %v1032 = vpop.f32.mrb[0].mxu0
    %v1033 = vadd.f32 %v956, %v1032
    %v1034 = vpop.f32.mrb[0].mxu0
    %1035 = vdwg.mxu0
    %v1036 = vmul.f32 %v750, %v1028
    %v1037 = vmul.f32 %v751, %v1033
    %s1038 = scalar_lea.vmem %s9, 24
    %v1039 = vld [vmem:[%s1038] sm:$0xff]
    %v1040 = vld [vmem:[%s1038 + $0x8] sm:$0xff]
    %v1041 = vld [vmem:[%s1038 + $0x10] sm:$0xf]
    %s1042 = scalar_lea.vmem %s10, 1
    %v1043 = vld [vmem:[%s1042] sm:$0x1]
    %v1045 = vlaneseq
    %v1046 = vshrl.u32 %v1045, 7
    %v1047 = vsub.s32 0, %v1046
    %v1048 = vrot.slane %v1043, %v1047
    %v1051 = vsel %vm771, %v1041, 0
    %1053 = vmatprep.subr.mxu0 0.0
    %1054 = vmatpush1.msra.mxu0 %v1039
    %1055 = vmatprep.subr.mxu0 0.0
    %1056 = vmatpush1.msra.mxu0 %v1040
    %1057 = vmatprep.subr.mxu0 0.0
    %1058 = vmatpush1.msra.mxu0 %v1051
    %1059 = vmatprep.subr.mxu0 0.0
    %1060 = vmatpush1.msra.mxu0 0.0
    %1061 = vmatprep.subr.mxu0 0.0
    %1062 = vmatpush1.msra.mxu0 0.0
    %1063 = vmatprep.subr.mxu0 0.0
    %1064 = vmatpush1.msra.mxu0 0.0
    %1065 = vmatprep.subr.mxu0 0.0
    %1066 = vmatpush1.msra.mxu0 0.0
    %1067 = vmatprep.subr.mxu0 0.0
    %1068 = vmatpush1.msra.mxu0 0.0
    %1069 = vmatprep.subr.mxu0 0.0
    %1070 = vmatpush1.msra.mxu0 0.0
    %1071 = vmatprep.subr.mxu0 0.0
    %1072 = vmatpush1.msra.mxu0 0.0
    %1073 = vmatprep.subr.mxu0 0.0
    %1074 = vmatpush1.msra.mxu0 0.0
    %1075 = vmatprep.subr.mxu0 0.0
    %1076 = vmatpush1.msra.mxu0 0.0
    %1077 = vmatprep.subr.mxu0 0.0
    %1078 = vmatpush1.msra.mxu0 0.0
    %1079 = vmatprep.subr.mxu0 0.0
    %1080 = vmatpush1.msra.mxu0 0.0
    %1081 = vmatprep.subr.mxu0 0.0
    %1082 = vmatpush1.msra.mxu0 0.0
    %1083 = vmatprep.subr.mxu0 0.0
    %1084 = vmatpush1.msra.mxu0 0.0
    %1085 = vmatprep.subr.mxu0 0.0
    %1086 = vmatpush1.msra.mxu0 0.0
    %1087 = vmatprep.subr.mxu0 0.0
    %1088 = vmatpush1.msra.mxu0 0.0
    %1089 = vmatprep.subr.mxu0 0.0
    %1090 = vmatpush1.msra.mxu0 0.0
    %1091 = vmatprep.subr.mxu0 0.0
    %1092 = vmatpush1.msra.mxu0 0.0
    %1093 = vmatprep.subr.mxu0 0.0
    %1094 = vmatpush1.msra.mxu0 0.0
    %1095 = vmatprep.subr.mxu0 0.0
    %1096 = vmatpush1.msra.mxu0 0.0
    %1097 = vmatprep.subr.mxu0 0.0
    %1098 = vmatpush1.msra.mxu0 0.0
    %1099 = vmatprep.subr.mxu0 0.0
    %1100 = vmatpush1.msra.mxu0 0.0
    %1101 = vmatprep.subr.mxu0 0.0
    %1102 = vmatpush1.msra.mxu0 0.0
    %1103 = vmatprep.subr.mxu0 0.0
    %1104 = vmatpush1.msra.mxu0 0.0
    %1105 = vmatprep.subr.mxu0 0.0
    %1106 = vmatpush1.msra.mxu0 0.0
    %1107 = vmatprep.subr.mxu0 0.0
    %1108 = vmatpush1.msra.mxu0 0.0
    %1109 = vmatprep.subr.mxu0 0.0
    %1110 = vmatpush1.msra.mxu0 0.0
    %1111 = vmatprep.subr.mxu0 0.0
    %1112 = vmatpush1.msra.mxu0 0.0
    %1113 = vmatprep.subr.mxu0 0.0
    %1114 = vmatpush1.msra.mxu0 0.0
    %1115 = vmatprep.subr.mxu0 0.0
    %1116 = vmatpush1.msra.mxu0 0.0
    %1117 = vmatprep.mubr.f32.mxu0 0.0
    %1118 = vmatmul.mubr.f32.gmra.mrb[0].mxu0 %v863
    %v1119 = vpop.f32.mrb[0].mxu0
    %v1120 = vadd.f32 %v1048, %v1119
    %v1121 = vpop.f32.mrb[0].mxu0
    %1122 = vmatprep.mubr.f32.mxu0 0.0
    %1123 = vmatmul.mubr.f32.gmra.mrb[0].mxu0 %v866
    %v1124 = vpop.f32.mrb[0].mxu0
    %v1125 = vadd.f32 %v1048, %v1124
    %v1126 = vpop.f32.mrb[0].mxu0
    %1127 = vdwg.mxu0
    %1128 = vxpose.xlu0.b32.start [1/16] %v1036, 128
    %1129 = vxpose.xlu0.b32.cont [2/16] %v1037, 128
    %1130 = vxpose.xlu0.b32.cont [3/16] 0.0, 128
    %1131 = vxpose.xlu0.b32.cont [4/16] 0.0, 128
    %1132 = vxpose.xlu0.b32.cont [5/16] 0.0, 128
    %1133 = vxpose.xlu0.b32.cont [6/16] 0.0, 128
    %1134 = vxpose.xlu0.b32.cont [7/16] 0.0, 128
    %1135 = vxpose.xlu0.b32.cont [8/16] 0.0, 128
    %1136 = vxpose.xlu0.b32.cont [9/16] 0.0, 128
    %1137 = vxpose.xlu0.b32.cont [10/16] 0.0, 128
    %1138 = vxpose.xlu0.b32.cont [11/16] 0.0, 128
    %1139 = vxpose.xlu0.b32.cont [12/16] 0.0, 128
    %1140 = vxpose.xlu0.b32.cont [13/16] 0.0, 128
    %1141 = vxpose.xlu0.b32.cont [14/16] 0.0, 128
    %1142 = vxpose.xlu0.b32.cont [15/16] 0.0, 128
    %1143 = vxpose.xlu0.b32.end [16/16] 0.0, 128
    %v1144 = vpop.trf.xlu0
    %v1145 = vpop.trf.xlu0
    %v1146 = vpop.trf.xlu0
    %v1147 = vpop.trf.xlu0
    %v1148 = vpop.trf.xlu0
    %v1149 = vpop.trf.xlu0
    %v1150 = vpop.trf.xlu0
    %v1151 = vpop.trf.xlu0
    %v1152 = vpop.trf.xlu0
    %v1153 = vpop.trf.xlu0
    %v1154 = vpop.trf.xlu0
    %v1155 = vpop.trf.xlu0
    %v1156 = vpop.trf.xlu0
    %v1157 = vpop.trf.xlu0
    %v1158 = vpop.trf.xlu0
    %v1159 = vpop.trf.xlu0
    %vm1160 = vcmask 130048
    %v1162 = vsel %vm1160, %v1144, 0
    %v1165 = vsel %vm1160, %v1145, 0
    %v1168 = vsel %vm1160, %v1146, 0
    %1170 = vmatprep.subr.mxu0 0.0
    %1171 = vmatpush1.msra.mxu0 %v1120
    %1172 = vmatprep.subr.mxu0 0.0
    %1173 = vmatpush1.msra.mxu0 %v1125
    %1174 = vmatprep.subr.mxu0 0.0
    %1175 = vmatpush1.msra.mxu0 0.0
    %1176 = vmatprep.subr.mxu0 0.0
    %1177 = vmatpush1.msra.mxu0 0.0
    %1178 = vmatprep.subr.mxu0 0.0
    %1179 = vmatpush1.msra.mxu0 0.0
    %1180 = vmatprep.subr.mxu0 0.0
    %1181 = vmatpush1.msra.mxu0 0.0
    %1182 = vmatprep.subr.mxu0 0.0
    %1183 = vmatpush1.msra.mxu0 0.0
    %1184 = vmatprep.subr.mxu0 0.0
    %1185 = vmatpush1.msra.mxu0 0.0
    %1186 = vmatprep.subr.mxu0 0.0
    %1187 = vmatpush1.msra.mxu0 0.0
    %1188 = vmatprep.subr.mxu0 0.0
    %1189 = vmatpush1.msra.mxu0 0.0
    %1190 = vmatprep.subr.mxu0 0.0
    %1191 = vmatpush1.msra.mxu0 0.0
    %1192 = vmatprep.subr.mxu0 0.0
    %1193 = vmatpush1.msra.mxu0 0.0
    %1194 = vmatprep.subr.mxu0 0.0
    %1195 = vmatpush1.msra.mxu0 0.0
    %1196 = vmatprep.subr.mxu0 0.0
    %1197 = vmatpush1.msra.mxu0 0.0
    %1198 = vmatprep.subr.mxu0 0.0
    %1199 = vmatpush1.msra.mxu0 0.0
    %1200 = vmatprep.subr.mxu0 0.0
    %1201 = vmatpush1.msra.mxu0 0.0
    %1202 = vmatprep.subr.mxu0 0.0
    %1203 = vmatpush1.msra.mxu0 0.0
    %1204 = vmatprep.subr.mxu0 0.0
    %1205 = vmatpush1.msra.mxu0 0.0
    %1206 = vmatprep.subr.mxu0 0.0
    %1207 = vmatpush1.msra.mxu0 0.0
    %1208 = vmatprep.subr.mxu0 0.0
    %1209 = vmatpush1.msra.mxu0 0.0
    %1210 = vmatprep.subr.mxu0 0.0
    %1211 = vmatpush1.msra.mxu0 0.0
    %1212 = vmatprep.subr.mxu0 0.0
    %1213 = vmatpush1.msra.mxu0 0.0
    %1214 = vmatprep.subr.mxu0 0.0
    %1215 = vmatpush1.msra.mxu0 0.0
    %1216 = vmatprep.subr.mxu0 0.0
    %1217 = vmatpush1.msra.mxu0 0.0
    %1218 = vmatprep.subr.mxu0 0.0
    %1219 = vmatpush1.msra.mxu0 0.0
    %1220 = vmatprep.subr.mxu0 0.0
    %1221 = vmatpush1.msra.mxu0 0.0
    %1222 = vmatprep.subr.mxu0 0.0
    %1223 = vmatpush1.msra.mxu0 0.0
    %1224 = vmatprep.subr.mxu0 0.0
    %1225 = vmatpush1.msra.mxu0 0.0
    %1226 = vmatprep.subr.mxu0 0.0
    %1227 = vmatpush1.msra.mxu0 0.0
    %1228 = vmatprep.subr.mxu0 0.0
    %1229 = vmatpush1.msra.mxu0 0.0
    %1230 = vmatprep.subr.mxu0 0.0
    %1231 = vmatpush1.msra.mxu0 0.0
    %1232 = vmatprep.subr.mxu0 0.0
    %1233 = vmatpush1.msra.mxu0 0.0
    %1234 = vmatprep.mubr.f32.mxu0 0.0
    %1235 = vmatmul.mubr.f32.gmra.mrb[0].mxu0 %v1162
    %v1236 = vpop.f32.mrb[0].mxu0
    %v1237 = vadd.f32 0.0, %v1236
    %v1238 = vpop.f32.mrb[0].mxu0
    %1239 = vmatprep.mubr.f32.mxu0 0.0
    %1240 = vmatmul.mubr.f32.gmra.mrb[0].mxu0 %v1165
    %v1241 = vpop.f32.mrb[0].mxu0
    %v1242 = vadd.f32 0.0, %v1241
    %v1243 = vpop.f32.mrb[0].mxu0
    %1244 = vmatprep.mubr.f32.mxu0 0.0
    %1245 = vmatmul.mubr.f32.gmra.mrb[0].mxu0 %v1168
    %v1246 = vpop.f32.mrb[0].mxu0
    %v1247 = vadd.f32 0.0, %v1246
    %v1248 = vpop.f32.mrb[0].mxu0
    %1249 = vdwg.mxu0
    %1250 = vxpose.xlu0.b32.start [1/16] %v850, 128
    %1251 = vxpose.xlu0.b32.cont [2/16] %v851, 128
    %1252 = vxpose.xlu0.b32.cont [3/16] 0.0, 128
    %1253 = vxpose.xlu0.b32.cont [4/16] 0.0, 128
    %1254 = vxpose.xlu0.b32.cont [5/16] 0.0, 128
    %1255 = vxpose.xlu0.b32.cont [6/16] 0.0, 128
    %1256 = vxpose.xlu0.b32.cont [7/16] 0.0, 128
    %1257 = vxpose.xlu0.b32.cont [8/16] 0.0, 128
    %1258 = vxpose.xlu0.b32.cont [9/16] 0.0, 128
    %1259 = vxpose.xlu0.b32.cont [10/16] 0.0, 128
    %1260 = vxpose.xlu0.b32.cont [11/16] 0.0, 128
    %1261 = vxpose.xlu0.b32.cont [12/16] 0.0, 128
    %1262 = vxpose.xlu0.b32.cont [13/16] 0.0, 128
    %1263 = vxpose.xlu0.b32.cont [14/16] 0.0, 128
    %1264 = vxpose.xlu0.b32.cont [15/16] 0.0, 128
    %1265 = vxpose.xlu0.b32.end [16/16] 0.0, 128
    %v1266 = vpop.trf.xlu0
    %v1267 = vpop.trf.xlu0
    %v1268 = vpop.trf.xlu0
    %v1269 = vpop.trf.xlu0
    %v1270 = vpop.trf.xlu0
    %v1271 = vpop.trf.xlu0
    %v1272 = vpop.trf.xlu0
    %v1273 = vpop.trf.xlu0
    %v1274 = vpop.trf.xlu0
    %v1275 = vpop.trf.xlu0
    %v1276 = vpop.trf.xlu0
    %v1277 = vpop.trf.xlu0
    %v1278 = vpop.trf.xlu0
    %v1279 = vpop.trf.xlu0
    %v1280 = vpop.trf.xlu0
    %v1281 = vpop.trf.xlu0
    %v1283 = vsel %vm1160, %v1266, 0
    %v1286 = vsel %vm1160, %v1267, 0
    %v1289 = vsel %vm1160, %v1268, 0
    %1291 = vmatprep.subr.mxu0 0.0
    %1292 = vmatpush1.msra.mxu0 %v938
    %1293 = vmatprep.subr.mxu0 0.0
    %1294 = vmatpush1.msra.mxu0 %v943
    %1295 = vmatprep.subr.mxu0 0.0
    %1296 = vmatpush1.msra.mxu0 0.0
    %1297 = vmatprep.subr.mxu0 0.0
    %1298 = vmatpush1.msra.mxu0 0.0
    %1299 = vmatprep.subr.mxu0 0.0
    %1300 = vmatpush1.msra.mxu0 0.0
    %1301 = vmatprep.subr.mxu0 0.0
    %1302 = vmatpush1.msra.mxu0 0.0
    %1303 = vmatprep.subr.mxu0 0.0
    %1304 = vmatpush1.msra.mxu0 0.0
    %1305 = vmatprep.subr.mxu0 0.0
    %1306 = vmatpush1.msra.mxu0 0.0
    %1307 = vmatprep.subr.mxu0 0.0
    %1308 = vmatpush1.msra.mxu0 0.0
    %1309 = vmatprep.subr.mxu0 0.0
    %1310 = vmatpush1.msra.mxu0 0.0
    %1311 = vmatprep.subr.mxu0 0.0
    %1312 = vmatpush1.msra.mxu0 0.0
    %1313 = vmatprep.subr.mxu0 0.0
    %1314 = vmatpush1.msra.mxu0 0.0
    %1315 = vmatprep.subr.mxu0 0.0
    %1316 = vmatpush1.msra.mxu0 0.0
    %1317 = vmatprep.subr.mxu0 0.0
    %1318 = vmatpush1.msra.mxu0 0.0
    %1319 = vmatprep.subr.mxu0 0.0
    %1320 = vmatpush1.msra.mxu0 0.0
    %1321 = vmatprep.subr.mxu0 0.0
    %1322 = vmatpush1.msra.mxu0 0.0
    %1323 = vmatprep.subr.mxu0 0.0
    %1324 = vmatpush1.msra.mxu0 0.0
    %1325 = vmatprep.subr.mxu0 0.0
    %1326 = vmatpush1.msra.mxu0 0.0
    %1327 = vmatprep.subr.mxu0 0.0
    %1328 = vmatpush1.msra.mxu0 0.0
    %1329 = vmatprep.subr.mxu0 0.0
    %1330 = vmatpush1.msra.mxu0 0.0
    %1331 = vmatprep.subr.mxu0 0.0
    %1332 = vmatpush1.msra.mxu0 0.0
    %1333 = vmatprep.subr.mxu0 0.0
    %1334 = vmatpush1.msra.mxu0 0.0
    %1335 = vmatprep.subr.mxu0 0.0
    %1336 = vmatpush1.msra.mxu0 0.0
    %1337 = vmatprep.subr.mxu0 0.0
    %1338 = vmatpush1.msra.mxu0 0.0
    %1339 = vmatprep.subr.mxu0 0.0
    %1340 = vmatpush1.msra.mxu0 0.0
    %1341 = vmatprep.subr.mxu0 0.0
    %1342 = vmatpush1.msra.mxu0 0.0
    %1343 = vmatprep.subr.mxu0 0.0
    %1344 = vmatpush1.msra.mxu0 0.0
    %1345 = vmatprep.subr.mxu0 0.0
    %1346 = vmatpush1.msra.mxu0 0.0
    %1347 = vmatprep.subr.mxu0 0.0
    %1348 = vmatpush1.msra.mxu0 0.0
    %1349 = vmatprep.subr.mxu0 0.0
    %1350 = vmatpush1.msra.mxu0 0.0
    %1351 = vmatprep.subr.mxu0 0.0
    %1352 = vmatpush1.msra.mxu0 0.0
    %1353 = vmatprep.subr.mxu0 0.0
    %1354 = vmatpush1.msra.mxu0 0.0
    %1355 = vmatprep.mubr.f32.mxu0 0.0
    %1356 = vmatmul.mubr.f32.gmra.mrb[0].mxu0 %v1283
    %v1357 = vpop.f32.mrb[0].mxu0
    %v1358 = vadd.f32 %v1237, %v1357
    %v1359 = vpop.f32.mrb[0].mxu0
    %1360 = vmatprep.mubr.f32.mxu0 0.0
    %1361 = vmatmul.mubr.f32.gmra.mrb[0].mxu0 %v1286
    %v1362 = vpop.f32.mrb[0].mxu0
    %v1363 = vadd.f32 %v1242, %v1362
    %v1364 = vpop.f32.mrb[0].mxu0
    %1365 = vmatprep.mubr.f32.mxu0 0.0
    %1366 = vmatmul.mubr.f32.gmra.mrb[0].mxu0 %v1289
    %v1367 = vpop.f32.mrb[0].mxu0
    %v1368 = vadd.f32 %v1247, %v1367
    %v1369 = vpop.f32.mrb[0].mxu0
    %1370 = vdwg.mxu0
    %v1371 = vld [vmem:[%s12] sm:$0x1]
    %v1372 = vld [vmem:[%s5] sm:$0xff]
    %v1373 = vld [vmem:[%s5 + $0x8] sm:$0xff]
    %v1374 = vld [vmem:[%s5 + $0x10] sm:$0xf]
    %v1375 = vld [vmem:[%s6] sm:$0x1]
    %v1377 = vlaneseq
    %v1378 = vshrl.u32 %v1377, 7
    %v1379 = vsub.s32 0, %v1378
    %v1380 = vrot.slane %v1375, %v1379
    %v1383 = vsel %vm771, %v1374, 0
    %1385 = vmatprep.subr.mxu0 0.0
    %1386 = vmatpush1.msra.mxu0 %v1372
    %1387 = vmatprep.subr.mxu0 0.0
    %1388 = vmatpush1.msra.mxu0 %v1373
    %1389 = vmatprep.subr.mxu0 0.0
    %1390 = vmatpush1.msra.mxu0 %v1383
    %1391 = vmatprep.subr.mxu0 0.0
    %1392 = vmatpush1.msra.mxu0 0.0
    %1393 = vmatprep.subr.mxu0 0.0
    %1394 = vmatpush1.msra.mxu0 0.0
    %1395 = vmatprep.subr.mxu0 0.0
    %1396 = vmatpush1.msra.mxu0 0.0
    %1397 = vmatprep.subr.mxu0 0.0
    %1398 = vmatpush1.msra.mxu0 0.0
    %1399 = vmatprep.subr.mxu0 0.0
    %1400 = vmatpush1.msra.mxu0 0.0
    %1401 = vmatprep.subr.mxu0 0.0
    %1402 = vmatpush1.msra.mxu0 0.0
    %1403 = vmatprep.subr.mxu0 0.0
    %1404 = vmatpush1.msra.mxu0 0.0
    %1405 = vmatprep.subr.mxu0 0.0
    %1406 = vmatpush1.msra.mxu0 0.0
    %1407 = vmatprep.subr.mxu0 0.0
    %1408 = vmatpush1.msra.mxu0 0.0
    %1409 = vmatprep.subr.mxu0 0.0
    %1410 = vmatpush1.msra.mxu0 0.0
    %1411 = vmatprep.subr.mxu0 0.0
    %1412 = vmatpush1.msra.mxu0 0.0
    %1413 = vmatprep.subr.mxu0 0.0
    %1414 = vmatpush1.msra.mxu0 0.0
    %1415 = vmatprep.subr.mxu0 0.0
    %1416 = vmatpush1.msra.mxu0 0.0
    %1417 = vmatprep.subr.mxu0 0.0
    %1418 = vmatpush1.msra.mxu0 0.0
    %1419 = vmatprep.subr.mxu0 0.0
    %1420 = vmatpush1.msra.mxu0 0.0
    %1421 = vmatprep.subr.mxu0 0.0
    %1422 = vmatpush1.msra.mxu0 0.0
    %1423 = vmatprep.subr.mxu0 0.0
    %1424 = vmatpush1.msra.mxu0 0.0
    %1425 = vmatprep.subr.mxu0 0.0
    %1426 = vmatpush1.msra.mxu0 0.0
    %1427 = vmatprep.subr.mxu0 0.0
    %1428 = vmatpush1.msra.mxu0 0.0
    %1429 = vmatprep.subr.mxu0 0.0
    %1430 = vmatpush1.msra.mxu0 0.0
    %1431 = vmatprep.subr.mxu0 0.0
    %1432 = vmatpush1.msra.mxu0 0.0
    %1433 = vmatprep.subr.mxu0 0.0
    %1434 = vmatpush1.msra.mxu0 0.0
    %1435 = vmatprep.subr.mxu0 0.0
    %1436 = vmatpush1.msra.mxu0 0.0
    %1437 = vmatprep.subr.mxu0 0.0
    %1438 = vmatpush1.msra.mxu0 0.0
    %1439 = vmatprep.subr.mxu0 0.0
    %1440 = vmatpush1.msra.mxu0 0.0
    %1441 = vmatprep.subr.mxu0 0.0
    %1442 = vmatpush1.msra.mxu0 0.0
    %1443 = vmatprep.subr.mxu0 0.0
    %1444 = vmatpush1.msra.mxu0 0.0
    %1445 = vmatprep.subr.mxu0 0.0
    %1446 = vmatpush1.msra.mxu0 0.0
    %1447 = vmatprep.subr.mxu0 0.0
    %1448 = vmatpush1.msra.mxu0 0.0
    %1449 = vmatprep.mubr.f32.mxu0 0.0
    %1450 = vmatmul.mubr.f32.gmra.mrb[0].mxu0 %v766
    %v1451 = vpop.f32.mrb[0].mxu0
    %v1452 = vadd.f32 %v1380, %v1451
    %v1453 = vpop.f32.mrb[0].mxu0
    %1454 = vmatprep.mubr.f32.mxu0 0.0
    %1455 = vmatmul.mubr.f32.gmra.mrb[0].mxu0 %v769
    %v1456 = vpop.f32.mrb[0].mxu0
    %v1457 = vadd.f32 %v1380, %v1456
    %v1458 = vpop.f32.mrb[0].mxu0
    %1459 = vdwg.mxu0
    %v1460 = vmul.f32 %v750, %v1452
    %v1461 = vmul.f32 %v751, %v1457
    %v1463 = vsel %vm764, %v1460, 0
    %v1466 = vsel %vm764, %v1461, 0
    %v1469 = vsel %vm771, %v1368, 0
    %1471 = vmatprep.subr.mxu0 0.0
    %1472 = vmatpush1.msra.mxu0 %v1358
    %1473 = vmatprep.subr.mxu0 0.0
    %1474 = vmatpush1.msra.mxu0 %v1363
    %1475 = vmatprep.subr.mxu0 0.0
    %1476 = vmatpush1.msra.mxu0 %v1469
    %1477 = vmatprep.subr.mxu0 0.0
    %1478 = vmatpush1.msra.mxu0 0.0
    %1479 = vmatprep.subr.mxu0 0.0
    %1480 = vmatpush1.msra.mxu0 0.0
    %1481 = vmatprep.subr.mxu0 0.0
    %1482 = vmatpush1.msra.mxu0 0.0
    %1483 = vmatprep.subr.mxu0 0.0
    %1484 = vmatpush1.msra.mxu0 0.0
    %1485 = vmatprep.subr.mxu0 0.0
    %1486 = vmatpush1.msra.mxu0 0.0
    %1487 = vmatprep.subr.mxu0 0.0
    %1488 = vmatpush1.msra.mxu0 0.0
    %1489 = vmatprep.subr.mxu0 0.0
    %1490 = vmatpush1.msra.mxu0 0.0
    %1491 = vmatprep.subr.mxu0 0.0
    %1492 = vmatpush1.msra.mxu0 0.0
    %1493 = vmatprep.subr.mxu0 0.0
    %1494 = vmatpush1.msra.mxu0 0.0
    %1495 = vmatprep.subr.mxu0 0.0
    %1496 = vmatpush1.msra.mxu0 0.0
    %1497 = vmatprep.subr.mxu0 0.0
    %1498 = vmatpush1.msra.mxu0 0.0
    %1499 = vmatprep.subr.mxu0 0.0
    %1500 = vmatpush1.msra.mxu0 0.0
    %1501 = vmatprep.subr.mxu0 0.0
    %1502 = vmatpush1.msra.mxu0 0.0
    %1503 = vmatprep.subr.mxu0 0.0
    %1504 = vmatpush1.msra.mxu0 0.0
    %1505 = vmatprep.subr.mxu0 0.0
    %1506 = vmatpush1.msra.mxu0 0.0
    %1507 = vmatprep.subr.mxu0 0.0
    %1508 = vmatpush1.msra.mxu0 0.0
    %1509 = vmatprep.subr.mxu0 0.0
    %1510 = vmatpush1.msra.mxu0 0.0
    %1511 = vmatprep.subr.mxu0 0.0
    %1512 = vmatpush1.msra.mxu0 0.0
    %1513 = vmatprep.subr.mxu0 0.0
    %1514 = vmatpush1.msra.mxu0 0.0
    %1515 = vmatprep.subr.mxu0 0.0
    %1516 = vmatpush1.msra.mxu0 0.0
    %1517 = vmatprep.subr.mxu0 0.0
    %1518 = vmatpush1.msra.mxu0 0.0
    %1519 = vmatprep.subr.mxu0 0.0
    %1520 = vmatpush1.msra.mxu0 0.0
    %1521 = vmatprep.subr.mxu0 0.0
    %1522 = vmatpush1.msra.mxu0 0.0
    %1523 = vmatprep.subr.mxu0 0.0
    %1524 = vmatpush1.msra.mxu0 0.0
    %1525 = vmatprep.subr.mxu0 0.0
    %1526 = vmatpush1.msra.mxu0 0.0
    %1527 = vmatprep.subr.mxu0 0.0
    %1528 = vmatpush1.msra.mxu0 0.0
    %1529 = vmatprep.subr.mxu0 0.0
    %1530 = vmatpush1.msra.mxu0 0.0
    %1531 = vmatprep.subr.mxu0 0.0
    %1532 = vmatpush1.msra.mxu0 0.0
    %1533 = vmatprep.subr.mxu0 0.0
    %1534 = vmatpush1.msra.mxu0 0.0
    %1535 = vmatprep.mubr.f32.mxu0 0.0
    %1536 = vmatmul.mubr.f32.gmra.mrb[0].mxu0 %v1463
    %v1537 = vpop.f32.mrb[0].mxu0
    %v1538 = vadd.f32 0.0, %v1537
    %v1539 = vpop.f32.mrb[0].mxu0
    %1540 = vmatprep.mubr.f32.mxu0 0.0
    %1541 = vmatmul.mubr.f32.gmra.mrb[0].mxu0 %v1466
    %v1542 = vpop.f32.mrb[0].mxu0
    %v1543 = vadd.f32 0.0, %v1542
    %v1544 = vpop.f32.mrb[0].mxu0
    %1545 = vdwg.mxu0
    %v1546 = vld [vmem:[%s11] sm:$0x1f]
    %vm1547 = vcmask 39936
    %v1549 = vsel %vm1547, %v1538, 0
    %v1552 = vsel %vm1547, %v1543, 0
    %vm1554 = vcmask 1044480
    %v1556 = vsel %vm1554, %v1546, 0
    %1558 = vmatprep.subr.mxu0 0.0
    %1559 = vmatpush1.msra.mxu0 %v1556
    %1560 = vmatprep.subr.mxu0 0.0
    %1561 = vmatpush1.msra.mxu0 0.0
    %1562 = vmatprep.subr.mxu0 0.0
    %1563 = vmatpush1.msra.mxu0 0.0
    %1564 = vmatprep.subr.mxu0 0.0
    %1565 = vmatpush1.msra.mxu0 0.0
    %1566 = vmatprep.subr.mxu0 0.0
    %1567 = vmatpush1.msra.mxu0 0.0
    %1568 = vmatprep.subr.mxu0 0.0
    %1569 = vmatpush1.msra.mxu0 0.0
    %1570 = vmatprep.subr.mxu0 0.0
    %1571 = vmatpush1.msra.mxu0 0.0
    %1572 = vmatprep.subr.mxu0 0.0
    %1573 = vmatpush1.msra.mxu0 0.0
    %1574 = vmatprep.subr.mxu0 0.0
    %1575 = vmatpush1.msra.mxu0 0.0
    %1576 = vmatprep.subr.mxu0 0.0
    %1577 = vmatpush1.msra.mxu0 0.0
    %1578 = vmatprep.subr.mxu0 0.0
    %1579 = vmatpush1.msra.mxu0 0.0
    %1580 = vmatprep.subr.mxu0 0.0
    %1581 = vmatpush1.msra.mxu0 0.0
    %1582 = vmatprep.subr.mxu0 0.0
    %1583 = vmatpush1.msra.mxu0 0.0
    %1584 = vmatprep.subr.mxu0 0.0
    %1585 = vmatpush1.msra.mxu0 0.0
    %1586 = vmatprep.subr.mxu0 0.0
    %1587 = vmatpush1.msra.mxu0 0.0
    %1588 = vmatprep.subr.mxu0 0.0
    %1589 = vmatpush1.msra.mxu0 0.0
    %1590 = vmatprep.subr.mxu0 0.0
    %1591 = vmatpush1.msra.mxu0 0.0
    %1592 = vmatprep.subr.mxu0 0.0
    %1593 = vmatpush1.msra.mxu0 0.0
    %1594 = vmatprep.subr.mxu0 0.0
    %1595 = vmatpush1.msra.mxu0 0.0
    %1596 = vmatprep.subr.mxu0 0.0
    %1597 = vmatpush1.msra.mxu0 0.0
    %1598 = vmatprep.subr.mxu0 0.0
    %1599 = vmatpush1.msra.mxu0 0.0
    %1600 = vmatprep.subr.mxu0 0.0
    %1601 = vmatpush1.msra.mxu0 0.0
    %1602 = vmatprep.subr.mxu0 0.0
    %1603 = vmatpush1.msra.mxu0 0.0
    %1604 = vmatprep.subr.mxu0 0.0
    %1605 = vmatpush1.msra.mxu0 0.0
    %1606 = vmatprep.subr.mxu0 0.0
    %1607 = vmatpush1.msra.mxu0 0.0
    %1608 = vmatprep.subr.mxu0 0.0
    %1609 = vmatpush1.msra.mxu0 0.0
    %1610 = vmatprep.subr.mxu0 0.0
    %1611 = vmatpush1.msra.mxu0 0.0
    %1612 = vmatprep.subr.mxu0 0.0
    %1613 = vmatpush1.msra.mxu0 0.0
    %1614 = vmatprep.subr.mxu0 0.0
    %1615 = vmatpush1.msra.mxu0 0.0
    %1616 = vmatprep.subr.mxu0 0.0
    %1617 = vmatpush1.msra.mxu0 0.0
    %1618 = vmatprep.subr.mxu0 0.0
    %1619 = vmatpush1.msra.mxu0 0.0
    %1620 = vmatprep.subr.mxu0 0.0
    %1621 = vmatpush1.msra.mxu0 0.0
    %1622 = vmatprep.mubr.f32.mxu0 0.0
    %1623 = vmatmul.mubr.f32.gmra.mrb[0].mxu0 %v1549
    %v1624 = vpop.f32.mrb[0].mxu0
    %v1625 = vadd.f32 0.0, %v1624
    %v1626 = vpop.f32.mrb[0].mxu0
    %1627 = vmatprep.mubr.f32.mxu0 0.0
    %1628 = vmatmul.mubr.f32.gmra.mrb[0].mxu0 %v1552
    %v1629 = vpop.f32.mrb[0].mxu0
    %v1630 = vadd.f32 0.0, %v1629
    %v1631 = vpop.f32.mrb[0].mxu0
    %1632 = vdwg.mxu0
    %v1634 = vlaneseq
    %v1635 = vshrl.u32 %v1634, 7
    %v1636 = vsub.s32 0, %v1635
    %v1637 = vrot.slane %v1371, %v1636
    %v1639 = vadd.f32 %v1637, %v1625
    %v1640 = vadd.f32 %v1637, %v1630
    %s1641 = scalar_lea.vmem %s5, 24
    %v1642 = vld [vmem:[%s1641] sm:$0xff]
    %v1643 = vld [vmem:[%s1641 + $0x8] sm:$0xff]
    %v1644 = vld [vmem:[%s1641 + $0x10] sm:$0xf]
    %s1645 = scalar_lea.vmem %s6, 1
    %v1646 = vld [vmem:[%s1645] sm:$0x1]
    %v1648 = vlaneseq
    %v1649 = vshrl.u32 %v1648, 7
    %v1650 = vsub.s32 0, %v1649
    %v1651 = vrot.slane %v1646, %v1650
    %v1654 = vsel %vm771, %v1644, 0
    %1656 = vmatprep.subr.mxu0 0.0
    %1657 = vmatpush1.msra.mxu0 %v1642
    %1658 = vmatprep.subr.mxu0 0.0
    %1659 = vmatpush1.msra.mxu0 %v1643
    %1660 = vmatprep.subr.mxu0 0.0
    %1661 = vmatpush1.msra.mxu0 %v1654
    %1662 = vmatprep.subr.mxu0 0.0
    %1663 = vmatpush1.msra.mxu0 0.0
    %1664 = vmatprep.subr.mxu0 0.0
    %1665 = vmatpush1.msra.mxu0 0.0
    %1666 = vmatprep.subr.mxu0 0.0
    %1667 = vmatpush1.msra.mxu0 0.0
    %1668 = vmatprep.subr.mxu0 0.0
    %1669 = vmatpush1.msra.mxu0 0.0
    %1670 = vmatprep.subr.mxu0 0.0
    %1671 = vmatpush1.msra.mxu0 0.0
    %1672 = vmatprep.subr.mxu0 0.0
    %1673 = vmatpush1.msra.mxu0 0.0
    %1674 = vmatprep.subr.mxu0 0.0
    %1675 = vmatpush1.msra.mxu0 0.0
    %1676 = vmatprep.subr.mxu0 0.0
    %1677 = vmatpush1.msra.mxu0 0.0
    %1678 = vmatprep.subr.mxu0 0.0
    %1679 = vmatpush1.msra.mxu0 0.0
    %1680 = vmatprep.subr.mxu0 0.0
    %1681 = vmatpush1.msra.mxu0 0.0
    %1682 = vmatprep.subr.mxu0 0.0
    %1683 = vmatpush1.msra.mxu0 0.0
    %1684 = vmatprep.subr.mxu0 0.0
    %1685 = vmatpush1.msra.mxu0 0.0
    %1686 = vmatprep.subr.mxu0 0.0
    %1687 = vmatpush1.msra.mxu0 0.0
    %1688 = vmatprep.subr.mxu0 0.0
    %1689 = vmatpush1.msra.mxu0 0.0
    %1690 = vmatprep.subr.mxu0 0.0
    %1691 = vmatpush1.msra.mxu0 0.0
    %1692 = vmatprep.subr.mxu0 0.0
    %1693 = vmatpush1.msra.mxu0 0.0
    %1694 = vmatprep.subr.mxu0 0.0
    %1695 = vmatpush1.msra.mxu0 0.0
    %1696 = vmatprep.subr.mxu0 0.0
    %1697 = vmatpush1.msra.mxu0 0.0
    %1698 = vmatprep.subr.mxu0 0.0
    %1699 = vmatpush1.msra.mxu0 0.0
    %1700 = vmatprep.subr.mxu0 0.0
    %1701 = vmatpush1.msra.mxu0 0.0
    %1702 = vmatprep.subr.mxu0 0.0
    %1703 = vmatpush1.msra.mxu0 0.0
    %1704 = vmatprep.subr.mxu0 0.0
    %1705 = vmatpush1.msra.mxu0 0.0
    %1706 = vmatprep.subr.mxu0 0.0
    %1707 = vmatpush1.msra.mxu0 0.0
    %1708 = vmatprep.subr.mxu0 0.0
    %1709 = vmatpush1.msra.mxu0 0.0
    %1710 = vmatprep.subr.mxu0 0.0
    %1711 = vmatpush1.msra.mxu0 0.0
    %1712 = vmatprep.subr.mxu0 0.0
    %1713 = vmatpush1.msra.mxu0 0.0
    %1714 = vmatprep.subr.mxu0 0.0
    %1715 = vmatpush1.msra.mxu0 0.0
    %1716 = vmatprep.subr.mxu0 0.0
    %1717 = vmatpush1.msra.mxu0 0.0
    %1718 = vmatprep.subr.mxu0 0.0
    %1719 = vmatpush1.msra.mxu0 0.0
    %1720 = vmatprep.mubr.f32.mxu0 0.0
    %1721 = vmatmul.mubr.f32.gmra.mrb[0].mxu0 %v766
    %v1722 = vpop.f32.mrb[0].mxu0
    %v1723 = vadd.f32 %v1651, %v1722
    %v1724 = vpop.f32.mrb[0].mxu0
    %1725 = vmatprep.mubr.f32.mxu0 0.0
    %1726 = vmatmul.mubr.f32.gmra.mrb[0].mxu0 %v769
    %v1727 = vpop.f32.mrb[0].mxu0
    %v1728 = vadd.f32 %v1651, %v1727
    %v1729 = vpop.f32.mrb[0].mxu0
    %1730 = vdwg.mxu0
    %v1731 = vmul.f32 %v750, %v1723
    %v1732 = vmul.f32 %v751, %v1728
    %v1734 = vsel %vm764, %v1731, 0
    %v1737 = vsel %vm764, %v1732, 0
    %1739 = vmatprep.subr.mxu0 0.0
    %1740 = vmatpush1.msra.mxu0 %v1358
    %1741 = vmatprep.subr.mxu0 0.0
    %1742 = vmatpush1.msra.mxu0 %v1363
    %1743 = vmatprep.subr.mxu0 0.0
    %1744 = vmatpush1.msra.mxu0 %v1469
    %1745 = vmatprep.subr.mxu0 0.0
    %1746 = vmatpush1.msra.mxu0 0.0
    %1747 = vmatprep.subr.mxu0 0.0
    %1748 = vmatpush1.msra.mxu0 0.0
    %1749 = vmatprep.subr.mxu0 0.0
    %1750 = vmatpush1.msra.mxu0 0.0
    %1751 = vmatprep.subr.mxu0 0.0
    %1752 = vmatpush1.msra.mxu0 0.0
    %1753 = vmatprep.subr.mxu0 0.0
    %1754 = vmatpush1.msra.mxu0 0.0
    %1755 = vmatprep.subr.mxu0 0.0
    %1756 = vmatpush1.msra.mxu0 0.0
    %1757 = vmatprep.subr.mxu0 0.0
    %1758 = vmatpush1.msra.mxu0 0.0
    %1759 = vmatprep.subr.mxu0 0.0
    %1760 = vmatpush1.msra.mxu0 0.0
    %1761 = vmatprep.subr.mxu0 0.0
    %1762 = vmatpush1.msra.mxu0 0.0
    %1763 = vmatprep.subr.mxu0 0.0
    %1764 = vmatpush1.msra.mxu0 0.0
    %1765 = vmatprep.subr.mxu0 0.0
    %1766 = vmatpush1.msra.mxu0 0.0
    %1767 = vmatprep.subr.mxu0 0.0
    %1768 = vmatpush1.msra.mxu0 0.0
    %1769 = vmatprep.subr.mxu0 0.0
    %1770 = vmatpush1.msra.mxu0 0.0
    %1771 = vmatprep.subr.mxu0 0.0
    %1772 = vmatpush1.msra.mxu0 0.0
    %1773 = vmatprep.subr.mxu0 0.0
    %1774 = vmatpush1.msra.mxu0 0.0
    %1775 = vmatprep.subr.mxu0 0.0
    %1776 = vmatpush1.msra.mxu0 0.0
    %1777 = vmatprep.subr.mxu0 0.0
    %1778 = vmatpush1.msra.mxu0 0.0
    %1779 = vmatprep.subr.mxu0 0.0
    %1780 = vmatpush1.msra.mxu0 0.0
    %1781 = vmatprep.subr.mxu0 0.0
    %1782 = vmatpush1.msra.mxu0 0.0
    %1783 = vmatprep.subr.mxu0 0.0
    %1784 = vmatpush1.msra.mxu0 0.0
    %1785 = vmatprep.subr.mxu0 0.0
    %1786 = vmatpush1.msra.mxu0 0.0
    %1787 = vmatprep.subr.mxu0 0.0
    %1788 = vmatpush1.msra.mxu0 0.0
    %1789 = vmatprep.subr.mxu0 0.0
    %1790 = vmatpush1.msra.mxu0 0.0
    %1791 = vmatprep.subr.mxu0 0.0
    %1792 = vmatpush1.msra.mxu0 0.0
    %1793 = vmatprep.subr.mxu0 0.0
    %1794 = vmatpush1.msra.mxu0 0.0
    %1795 = vmatprep.subr.mxu0 0.0
    %1796 = vmatpush1.msra.mxu0 0.0
    %1797 = vmatprep.subr.mxu0 0.0
    %1798 = vmatpush1.msra.mxu0 0.0
    %1799 = vmatprep.subr.mxu0 0.0
    %1800 = vmatpush1.msra.mxu0 0.0
    %1801 = vmatprep.subr.mxu0 0.0
    %1802 = vmatpush1.msra.mxu0 0.0
    %1803 = vmatprep.mubr.f32.mxu0 0.0
    %1804 = vmatmul.mubr.f32.gmra.mrb[0].mxu0 %v1734
    %v1805 = vpop.f32.mrb[0].mxu0
    %v1806 = vadd.f32 0.0, %v1805
    %v1807 = vpop.f32.mrb[0].mxu0
    %1808 = vmatprep.mubr.f32.mxu0 0.0
    %1809 = vmatmul.mubr.f32.gmra.mrb[0].mxu0 %v1737
    %v1810 = vpop.f32.mrb[0].mxu0
    %v1811 = vadd.f32 0.0, %v1810
    %v1812 = vpop.f32.mrb[0].mxu0
    %1813 = vdwg.mxu0
    %s1814 = scalar_lea.vmem %s11, 8
    %v1815 = vld [vmem:[%s1814] sm:$0x1f]
    %v1817 = vsel %vm1547, %v1806, 0
    %v1820 = vsel %vm1547, %v1811, 0
    %v1823 = vsel %vm1554, %v1815, 0
    %1825 = vmatprep.subr.mxu0 0.0
    %1826 = vmatpush1.msra.mxu0 %v1823
    %1827 = vmatprep.subr.mxu0 0.0
    %1828 = vmatpush1.msra.mxu0 0.0
    %1829 = vmatprep.subr.mxu0 0.0
    %1830 = vmatpush1.msra.mxu0 0.0
    %1831 = vmatprep.subr.mxu0 0.0
    %1832 = vmatpush1.msra.mxu0 0.0
    %1833 = vmatprep.subr.mxu0 0.0
    %1834 = vmatpush1.msra.mxu0 0.0
    %1835 = vmatprep.subr.mxu0 0.0
    %1836 = vmatpush1.msra.mxu0 0.0
    %1837 = vmatprep.subr.mxu0 0.0
    %1838 = vmatpush1.msra.mxu0 0.0
    %1839 = vmatprep.subr.mxu0 0.0
    %1840 = vmatpush1.msra.mxu0 0.0
    %1841 = vmatprep.subr.mxu0 0.0
    %1842 = vmatpush1.msra.mxu0 0.0
    %1843 = vmatprep.subr.mxu0 0.0
    %1844 = vmatpush1.msra.mxu0 0.0
    %1845 = vmatprep.subr.mxu0 0.0
    %1846 = vmatpush1.msra.mxu0 0.0
    %1847 = vmatprep.subr.mxu0 0.0
    %1848 = vmatpush1.msra.mxu0 0.0
    %1849 = vmatprep.subr.mxu0 0.0
    %1850 = vmatpush1.msra.mxu0 0.0
    %1851 = vmatprep.subr.mxu0 0.0
    %1852 = vmatpush1.msra.mxu0 0.0
    %1853 = vmatprep.subr.mxu0 0.0
    %1854 = vmatpush1.msra.mxu0 0.0
    %1855 = vmatprep.subr.mxu0 0.0
    %1856 = vmatpush1.msra.mxu0 0.0
    %1857 = vmatprep.subr.mxu0 0.0
    %1858 = vmatpush1.msra.mxu0 0.0
    %1859 = vmatprep.subr.mxu0 0.0
    %1860 = vmatpush1.msra.mxu0 0.0
    %1861 = vmatprep.subr.mxu0 0.0
    %1862 = vmatpush1.msra.mxu0 0.0
    %1863 = vmatprep.subr.mxu0 0.0
    %1864 = vmatpush1.msra.mxu0 0.0
    %1865 = vmatprep.subr.mxu0 0.0
    %1866 = vmatpush1.msra.mxu0 0.0
    %1867 = vmatprep.subr.mxu0 0.0
    %1868 = vmatpush1.msra.mxu0 0.0
    %1869 = vmatprep.subr.mxu0 0.0
    %1870 = vmatpush1.msra.mxu0 0.0
    %1871 = vmatprep.subr.mxu0 0.0
    %1872 = vmatpush1.msra.mxu0 0.0
    %1873 = vmatprep.subr.mxu0 0.0
    %1874 = vmatpush1.msra.mxu0 0.0
    %1875 = vmatprep.subr.mxu0 0.0
    %1876 = vmatpush1.msra.mxu0 0.0
    %1877 = vmatprep.subr.mxu0 0.0
    %1878 = vmatpush1.msra.mxu0 0.0
    %1879 = vmatprep.subr.mxu0 0.0
    %1880 = vmatpush1.msra.mxu0 0.0
    %1881 = vmatprep.subr.mxu0 0.0
    %1882 = vmatpush1.msra.mxu0 0.0
    %1883 = vmatprep.subr.mxu0 0.0
    %1884 = vmatpush1.msra.mxu0 0.0
    %1885 = vmatprep.subr.mxu0 0.0
    %1886 = vmatpush1.msra.mxu0 0.0
    %1887 = vmatprep.subr.mxu0 0.0
    %1888 = vmatpush1.msra.mxu0 0.0
    %1889 = vmatprep.mubr.f32.mxu0 0.0
    %1890 = vmatmul.mubr.f32.gmra.mrb[0].mxu0 %v1817
    %v1891 = vpop.f32.mrb[0].mxu0
    %v1892 = vadd.f32 0.0, %v1891
    %v1893 = vpop.f32.mrb[0].mxu0
    %1894 = vmatprep.mubr.f32.mxu0 0.0
    %1895 = vmatmul.mubr.f32.gmra.mrb[0].mxu0 %v1820
    %v1896 = vpop.f32.mrb[0].mxu0
    %v1897 = vadd.f32 0.0, %v1896
    %v1898 = vpop.f32.mrb[0].mxu0
    %1899 = vdwg.mxu0
    %v1900 = vadd.f32 %v1639, %v1892
    %v1901 = vadd.f32 %v1640, %v1897
    %v1902 = vadd.f32 %v746, %v1900
    %v1903 = vadd.f32 %v747, %v1901
    %v1905 = vsel %vm1160, %v752, 0
    %v1908 = vsel %vm1160, %v753, 0
    %1910 = vmatprep.subr.mxu0 0.0
    %1911 = vmatpush1.msra.mxu0 %v1902
    %1912 = vmatprep.subr.mxu0 0.0
    %1913 = vmatpush1.msra.mxu0 %v1903
    %1914 = vmatprep.subr.mxu0 0.0
    %1915 = vmatpush1.msra.mxu0 0.0
    %1916 = vmatprep.subr.mxu0 0.0
    %1917 = vmatpush1.msra.mxu0 0.0
    %1918 = vmatprep.subr.mxu0 0.0
    %1919 = vmatpush1.msra.mxu0 0.0
    %1920 = vmatprep.subr.mxu0 0.0
    %1921 = vmatpush1.msra.mxu0 0.0
    %1922 = vmatprep.subr.mxu0 0.0
    %1923 = vmatpush1.msra.mxu0 0.0
    %1924 = vmatprep.subr.mxu0 0.0
    %1925 = vmatpush1.msra.mxu0 0.0
    %1926 = vmatprep.subr.mxu0 0.0
    %1927 = vmatpush1.msra.mxu0 0.0
    %1928 = vmatprep.subr.mxu0 0.0
    %1929 = vmatpush1.msra.mxu0 0.0
    %1930 = vmatprep.subr.mxu0 0.0
    %1931 = vmatpush1.msra.mxu0 0.0
    %1932 = vmatprep.subr.mxu0 0.0
    %1933 = vmatpush1.msra.mxu0 0.0
    %1934 = vmatprep.subr.mxu0 0.0
    %1935 = vmatpush1.msra.mxu0 0.0
    %1936 = vmatprep.subr.mxu0 0.0
    %1937 = vmatpush1.msra.mxu0 0.0
    %1938 = vmatprep.subr.mxu0 0.0
    %1939 = vmatpush1.msra.mxu0 0.0
    %1940 = vmatprep.subr.mxu0 0.0
    %1941 = vmatpush1.msra.mxu0 0.0
    %1942 = vmatprep.subr.mxu0 0.0
    %1943 = vmatpush1.msra.mxu0 0.0
    %1944 = vmatprep.subr.mxu0 0.0
    %1945 = vmatpush1.msra.mxu0 0.0
    %1946 = vmatprep.subr.mxu0 0.0
    %1947 = vmatpush1.msra.mxu0 0.0
    %1948 = vmatprep.subr.mxu0 0.0
    %1949 = vmatpush1.msra.mxu0 0.0
    %1950 = vmatprep.subr.mxu0 0.0
    %1951 = vmatpush1.msra.mxu0 0.0
    %1952 = vmatprep.subr.mxu0 0.0
    %1953 = vmatpush1.msra.mxu0 0.0
    %1954 = vmatprep.subr.mxu0 0.0
    %1955 = vmatpush1.msra.mxu0 0.0
    %1956 = vmatprep.subr.mxu0 0.0
    %1957 = vmatpush1.msra.mxu0 0.0
    %1958 = vmatprep.subr.mxu0 0.0
    %1959 = vmatpush1.msra.mxu0 0.0
    %1960 = vmatprep.subr.mxu0 0.0
    %1961 = vmatpush1.msra.mxu0 0.0
    %1962 = vmatprep.subr.mxu0 0.0
    %1963 = vmatpush1.msra.mxu0 0.0
    %1964 = vmatprep.subr.mxu0 0.0
    %1965 = vmatpush1.msra.mxu0 0.0
    %1966 = vmatprep.subr.mxu0 0.0
    %1967 = vmatpush1.msra.mxu0 0.0
    %1968 = vmatprep.subr.mxu0 0.0
    %1969 = vmatpush1.msra.mxu0 0.0
    %1970 = vmatprep.subr.mxu0 0.0
    %1971 = vmatpush1.msra.mxu0 0.0
    %1972 = vmatprep.subr.mxu0 0.0
    %1973 = vmatpush1.msra.mxu0 0.0
    %1974 = vmatprep.mubr.f32.mxu0 0.0
    %1975 = vmatmul.mubr.f32.gmra.mrb[0].mxu0 %v1905
    %v1976 = vpop.f32.mrb[0].mxu0
    %v1977 = vadd.f32 0.0, %v1976
    %v1978 = vpop.f32.mrb[0].mxu0
    %1979 = vmatprep.mubr.f32.mxu0 0.0
    %1980 = vmatmul.mubr.f32.gmra.mrb[0].mxu0 %v1908
    %v1981 = vpop.f32.mrb[0].mxu0
    %v1982 = vadd.f32 0.0, %v1981
    %v1983 = vpop.f32.mrb[0].mxu0
    %1984 = vdwg.mxu0
    %v1985 = vsel %vm764, %v1977, 0.0
    %1986 = vadd.xlane.f32.xlu0 %v1985
    %v1987 = vpop.xlane.xlu0 %1986
    %v1988 = vsel %vm764, %v1982, 0.0
    %1989 = vadd.xlane.f32.xlu0 %v1988
    %v1990 = vpop.xlane.xlu0 %1989
    %v1991 = vsub.f32 %v1902, %v1987
    %v1992 = vsub.f32 %v1903, %v1990
    %v1993 = vmul.f32 %v1991, %v1991
    %v1994 = vmul.f32 %v1992, %v1992
    %1995 = vmatprep.subr.mxu0 0.0
    %1996 = vmatpush1.msra.mxu0 %v1993
    %1997 = vmatprep.subr.mxu0 0.0
    %1998 = vmatpush1.msra.mxu0 %v1994
    %1999 = vmatprep.subr.mxu0 0.0
    %2000 = vmatpush1.msra.mxu0 0.0
    %2001 = vmatprep.subr.mxu0 0.0
    %2002 = vmatpush1.msra.mxu0 0.0
    %2003 = vmatprep.subr.mxu0 0.0
    %2004 = vmatpush1.msra.mxu0 0.0
    %2005 = vmatprep.subr.mxu0 0.0
    %2006 = vmatpush1.msra.mxu0 0.0
    %2007 = vmatprep.subr.mxu0 0.0
    %2008 = vmatpush1.msra.mxu0 0.0
    %2009 = vmatprep.subr.mxu0 0.0
    %2010 = vmatpush1.msra.mxu0 0.0
    %2011 = vmatprep.subr.mxu0 0.0
    %2012 = vmatpush1.msra.mxu0 0.0
    %2013 = vmatprep.subr.mxu0 0.0
    %2014 = vmatpush1.msra.mxu0 0.0
    %2015 = vmatprep.subr.mxu0 0.0
    %2016 = vmatpush1.msra.mxu0 0.0
    %2017 = vmatprep.subr.mxu0 0.0
    %2018 = vmatpush1.msra.mxu0 0.0
    %2019 = vmatprep.subr.mxu0 0.0
    %2020 = vmatpush1.msra.mxu0 0.0
    %2021 = vmatprep.subr.mxu0 0.0
    %2022 = vmatpush1.msra.mxu0 0.0
    %2023 = vmatprep.subr.mxu0 0.0
    %2024 = vmatpush1.msra.mxu0 0.0
    %2025 = vmatprep.subr.mxu0 0.0
    %2026 = vmatpush1.msra.mxu0 0.0
    %2027 = vmatprep.subr.mxu0 0.0
    %2028 = vmatpush1.msra.mxu0 0.0
    %2029 = vmatprep.subr.mxu0 0.0
    %2030 = vmatpush1.msra.mxu0 0.0
    %2031 = vmatprep.subr.mxu0 0.0
    %2032 = vmatpush1.msra.mxu0 0.0
    %2033 = vmatprep.subr.mxu0 0.0
    %2034 = vmatpush1.msra.mxu0 0.0
    %2035 = vmatprep.subr.mxu0 0.0
    %2036 = vmatpush1.msra.mxu0 0.0
    %2037 = vmatprep.subr.mxu0 0.0
    %2038 = vmatpush1.msra.mxu0 0.0
    %2039 = vmatprep.subr.mxu0 0.0
    %2040 = vmatpush1.msra.mxu0 0.0
    %2041 = vmatprep.subr.mxu0 0.0
    %2042 = vmatpush1.msra.mxu0 0.0
    %2043 = vmatprep.subr.mxu0 0.0
    %2044 = vmatpush1.msra.mxu0 0.0
    %2045 = vmatprep.subr.mxu0 0.0
    %2046 = vmatpush1.msra.mxu0 0.0
    %2047 = vmatprep.subr.mxu0 0.0
    %2048 = vmatpush1.msra.mxu0 0.0
    %2049 = vmatprep.subr.mxu0 0.0
    %2050 = vmatpush1.msra.mxu0 0.0
    %2051 = vmatprep.subr.mxu0 0.0
    %2052 = vmatpush1.msra.mxu0 0.0
    %2053 = vmatprep.subr.mxu0 0.0
    %2054 = vmatpush1.msra.mxu0 0.0
    %2055 = vmatprep.subr.mxu0 0.0
    %2056 = vmatpush1.msra.mxu0 0.0
    %2057 = vmatprep.subr.mxu0 0.0
    %2058 = vmatpush1.msra.mxu0 0.0
    %2059 = vmatprep.mubr.f32.mxu0 0.0
    %2060 = vmatmul.mubr.f32.gmra.mrb[0].mxu0 %v1905
    %v2061 = vpop.f32.mrb[0].mxu0
    %v2062 = vadd.f32 0.0, %v2061
    %v2063 = vpop.f32.mrb[0].mxu0
    %2064 = vmatprep.mubr.f32.mxu0 0.0
    %2065 = vmatmul.mubr.f32.gmra.mrb[0].mxu0 %v1908
    %v2066 = vpop.f32.mrb[0].mxu0
    %v2067 = vadd.f32 0.0, %v2066
    %v2068 = vpop.f32.mrb[0].mxu0
    %2069 = vdwg.mxu0
    %v2070 = vsel %vm764, %v2062, 0.0
    %2071 = vadd.xlane.f32.xlu0 %v2070
    %v2072 = vpop.xlane.xlu0 %2071
    %v2073 = vsel %vm764, %v2067, 0.0
    %2074 = vadd.xlane.f32.xlu0 %v2073
    %v2075 = vpop.xlane.xlu0 %2074
    %v2076 = vadd.f32 %v2072, 1e-05
    %v2077 = vadd.f32 %v2075, 1e-05
    %v2078 = vrsqrt.pop %v2076
    %v2079 = vrsqrt.pop %v2077
    %v2080 = vmul.f32 %v1991, %v2078
    %v2081 = vmul.f32 %v1992, %v2079
    %s2082 = smul.u32 8, 3
    %s2083 = smul.u32 %s2082, 16
    %s2084 = sshll.u32 %s2083, 4
    %2085 = dma.done [#allocation4], %s2084
    %s2086 = smul.u32 2048, 1
    %s2087 = sshll.u32 %s2086, 4
    %2088 = dma.done %s189, %s2087
    %v2089 = vld [vmem:[#allocation2] sm:$0xff]
    %v2090 = vld [vmem:[#allocation2 + $0x8] sm:$0xff]
    %v2091 = vld [vmem:[#allocation2 + $0x10] sm:$0xff]
    %v2092 = vld [vmem:[#allocation2 + $0x18] sm:$0xff]
    %v2093 = vld [vmem:[#allocation2 + $0x20] sm:$0xff]
    %v2094 = vld [vmem:[#allocation2 + $0x28] sm:$0xff]
    %v2095 = vld [vmem:[#allocation2 + $0x30] sm:$0xff]
    %v2096 = vld [vmem:[#allocation2 + $0x38] sm:$0xff]
    %v2097 = vld [vmem:[#allocation2 + $0x40] sm:$0xff]
    %v2098 = vld [vmem:[#allocation2 + $0x48] sm:$0xff]
    %v2099 = vld [vmem:[#allocation2 + $0x50] sm:$0xff]
    %v2100 = vld [vmem:[#allocation2 + $0x58] sm:$0xff]
    %v2101 = vld [vmem:[#allocation2 + $0x60] sm:$0xff]
    %v2102 = vld [vmem:[#allocation2 + $0x68] sm:$0xff]
    %v2103 = vld [vmem:[#allocation2 + $0x70] sm:$0xff]
    %v2104 = vld [vmem:[#allocation2 + $0x78] sm:$0xff]
    %v2105 = vld [vmem:[#allocation2 + $0x80] sm:$0xff]
    %v2106 = vld [vmem:[#allocation2 + $0x88] sm:$0xff]
    %v2107 = vld [vmem:[#allocation2 + $0x90] sm:$0xff]
    %v2108 = vld [vmem:[#allocation2 + $0x98] sm:$0xff]
    %v2109 = vld [vmem:[#allocation2 + $0xa0] sm:$0xff]
    %v2110 = vld [vmem:[#allocation2 + $0xa8] sm:$0xff]
    %v2111 = vld [vmem:[#allocation2 + $0xb0] sm:$0xff]
    %v2112 = vld [vmem:[#allocation2 + $0xb8] sm:$0xff]
    %v2113 = vld [vmem:[#allocation2 + $0xc0] sm:$0xff]
    %v2114 = vld [vmem:[#allocation2 + $0xc8] sm:$0xff]
    %v2115 = vld [vmem:[#allocation2 + $0xd0] sm:$0xff]
    %v2116 = vld [vmem:[#allocation2 + $0xd8] sm:$0xff]
    %v2117 = vld [vmem:[#allocation2 + $0xe0] sm:$0xff]
    %v2118 = vld [vmem:[#allocation2 + $0xe8] sm:$0xff]
    %v2119 = vld [vmem:[#allocation2 + $0xf0] sm:$0xff]
    %v2120 = vld [vmem:[#allocation2 + $0xf8] sm:$0xff]
    %v2121 = vld [vmem:[#allocation2 + $0x100] sm:$0xf]
    %v2122 = vld [vmem:[#allocation2 + $0x108] sm:$0xf]
    %v2123 = vld [vmem:[#allocation2 + $0x110] sm:$0xf]
    %v2124 = vld [vmem:[#allocation2 + $0x118] sm:$0xf]
    %v2125 = vld [vmem:[#allocation2 + $0x120] sm:$0xf]
    %v2126 = vld [vmem:[#allocation2 + $0x128] sm:$0xf]
    %v2127 = vld [vmem:[#allocation2 + $0x130] sm:$0xf]
    %v2128 = vld [vmem:[#allocation2 + $0x138] sm:$0xf]
    %v2129 = vld [vmem:[#allocation2 + $0x140] sm:$0xf]
    %v2130 = vld [vmem:[#allocation2 + $0x148] sm:$0xf]
    %v2131 = vld [vmem:[#allocation2 + $0x150] sm:$0xf]
    %v2132 = vld [vmem:[#allocation2 + $0x158] sm:$0xf]
    %v2133 = vld [vmem:[#allocation2 + $0x160] sm:$0xf]
    %v2134 = vld [vmem:[#allocation2 + $0x168] sm:$0xf]
    %v2135 = vld [vmem:[#allocation2 + $0x170] sm:$0xf]
    %v2136 = vld [vmem:[#allocation2 + $0x178] sm:$0xf]
    %v2137 = vld [vmem:[%s13] sm:$0xff]
    %v2138 = vld [vmem:[%s13 + $0x8] sm:$0xff]
    %v2141 = vlaneseq
    %v2142 = vshrl.u32 %v2141, 7
    %v2143 = vsub.s32 0, %v2142
    %v2144 = vrot.slane %v2137, %v2143
    %v2145 = vlaneseq
    %v2146 = vshrl.u32 %v2145, 7
    %v2147 = vsub.s32 1, %v2146
    %v2148 = vrot.slane %v2137, %v2147
    %v2149 = vlaneseq
    %v2150 = vshrl.u32 %v2149, 7
    %v2151 = vsub.s32 2, %v2150
    %v2152 = vrot.slane %v2137, %v2151
    %v2153 = vlaneseq
    %v2154 = vshrl.u32 %v2153, 7
    %v2155 = vsub.s32 3, %v2154
    %v2156 = vrot.slane %v2137, %v2155
    %v2157 = vlaneseq
    %v2158 = vshrl.u32 %v2157, 7
    %v2159 = vsub.s32 4, %v2158
    %v2160 = vrot.slane %v2137, %v2159
    %v2161 = vlaneseq
    %v2162 = vshrl.u32 %v2161, 7
    %v2163 = vsub.s32 5, %v2162
    %v2164 = vrot.slane %v2137, %v2163
    %v2165 = vlaneseq
    %v2166 = vshrl.u32 %v2165, 7
    %v2167 = vsub.s32 6, %v2166
    %v2168 = vrot.slane %v2137, %v2167
    %v2169 = vlaneseq
    %v2170 = vshrl.u32 %v2169, 7
    %v2171 = vsub.s32 7, %v2170
    %v2172 = vrot.slane %v2137, %v2171
    %v2173 = vlaneseq
    %v2174 = vshrl.u32 %v2173, 7
    %v2175 = vsub.s32 0, %v2174
    %v2176 = vrot.slane %v2138, %v2175
    %v2177 = vlaneseq
    %v2178 = vshrl.u32 %v2177, 7
    %v2179 = vsub.s32 1, %v2178
    %v2180 = vrot.slane %v2138, %v2179
    %v2181 = vlaneseq
    %v2182 = vshrl.u32 %v2181, 7
    %v2183 = vsub.s32 2, %v2182
    %v2184 = vrot.slane %v2138, %v2183
    %v2185 = vlaneseq
    %v2186 = vshrl.u32 %v2185, 7
    %v2187 = vsub.s32 3, %v2186
    %v2188 = vrot.slane %v2138, %v2187
    %v2189 = vlaneseq
    %v2190 = vshrl.u32 %v2189, 7
    %v2191 = vsub.s32 4, %v2190
    %v2192 = vrot.slane %v2138, %v2191
    %v2193 = vlaneseq
    %v2194 = vshrl.u32 %v2193, 7
    %v2195 = vsub.s32 5, %v2194
    %v2196 = vrot.slane %v2138, %v2195
    %v2197 = vlaneseq
    %v2198 = vshrl.u32 %v2197, 7
    %v2199 = vsub.s32 6, %v2198
    %v2200 = vrot.slane %v2138, %v2199
    %v2201 = vlaneseq
    %v2202 = vshrl.u32 %v2201, 7
    %v2203 = vsub.s32 7, %v2202
    %v2204 = vrot.slane %v2138, %v2203
    %v2222 = vsel %vm764, %v2080, 0
    %v2225 = vsel %vm764, %v2081, 0
    %v2228 = vsel %vm771, %v2121, 0
    %v2231 = vsel %vm771, %v2122, 0
    %v2234 = vsel %vm771, %v2123, 0
    %v2237 = vsel %vm771, %v2124, 0
    %v2240 = vsel %vm771, %v2125, 0
    %v2243 = vsel %vm771, %v2126, 0
    %v2246 = vsel %vm771, %v2127, 0
    %v2249 = vsel %vm771, %v2128, 0
    %v2252 = vsel %vm771, %v2129, 0
    %v2255 = vsel %vm771, %v2130, 0
    %v2258 = vsel %vm771, %v2131, 0
    %v2261 = vsel %vm771, %v2132, 0
    %v2264 = vsel %vm771, %v2133, 0
    %v2267 = vsel %vm771, %v2134, 0
    %v2270 = vsel %vm771, %v2135, 0
    %v2273 = vsel %vm771, %v2136, 0
    %2275 = vmatprep.subr.mxu0 %v2090
    %2276 = vmatpush1.msra.mxu0 %v2089
    %2277 = vmatprep.subr.mxu0 %v2106
    %2278 = vmatpush1.msra.mxu0 %v2105
    %2279 = vmatprep.subr.mxu0 %v2231
    %2280 = vmatpush1.msra.mxu0 %v2228
    %2281 = vmatprep.subr.mxu0 0.0
    %2282 = vmatpush1.msra.mxu0 0.0
    %2283 = vmatprep.subr.mxu0 0.0
    %2284 = vmatpush1.msra.mxu0 0.0
    %2285 = vmatprep.subr.mxu0 0.0
    %2286 = vmatpush1.msra.mxu0 0.0
    %2287 = vmatprep.subr.mxu0 0.0
    %2288 = vmatpush1.msra.mxu0 0.0
    %2289 = vmatprep.subr.mxu0 0.0
    %2290 = vmatpush1.msra.mxu0 0.0
    %2291 = vmatprep.subr.mxu0 0.0
    %2292 = vmatpush1.msra.mxu0 0.0
    %2293 = vmatprep.subr.mxu0 0.0
    %2294 = vmatpush1.msra.mxu0 0.0
    %2295 = vmatprep.subr.mxu0 0.0
    %2296 = vmatpush1.msra.mxu0 0.0
    %2297 = vmatprep.subr.mxu0 0.0
    %2298 = vmatpush1.msra.mxu0 0.0
    %2299 = vmatprep.subr.mxu0 0.0
    %2300 = vmatpush1.msra.mxu0 0.0
    %2301 = vmatprep.subr.mxu0 0.0
    %2302 = vmatpush1.msra.mxu0 0.0
    %2303 = vmatprep.subr.mxu0 0.0
    %2304 = vmatpush1.msra.mxu0 0.0
    %2305 = vmatprep.subr.mxu0 0.0
    %2306 = vmatpush1.msra.mxu0 0.0
    %2307 = vmatprep.subr.mxu0 0.0
    %2308 = vmatpush1.msra.mxu0 0.0
    %2309 = vmatprep.subr.mxu0 0.0
    %2310 = vmatpush1.msra.mxu0 0.0
    %2311 = vmatprep.subr.mxu0 0.0
    %2312 = vmatpush1.msra.mxu0 0.0
    %2313 = vmatprep.subr.mxu0 0.0
    %2314 = vmatpush1.msra.mxu0 0.0
    %2315 = vmatprep.subr.mxu0 0.0
    %2316 = vmatpush1.msra.mxu0 0.0
    %2317 = vmatprep.subr.mxu0 0.0
    %2318 = vmatpush1.msra.mxu0 0.0
    %2319 = vmatprep.subr.mxu0 0.0
    %2320 = vmatpush1.msra.mxu0 0.0
    %2321 = vmatprep.subr.mxu0 0.0
    %2322 = vmatpush1.msra.mxu0 0.0
    %2323 = vmatprep.subr.mxu0 0.0
    %2324 = vmatpush1.msra.mxu0 0.0
    %2325 = vmatprep.subr.mxu0 0.0
    %2326 = vmatpush1.msra.mxu0 0.0
    %2327 = vmatprep.subr.mxu0 0.0
    %2328 = vmatpush1.msra.mxu0 0.0
    %2329 = vmatprep.subr.mxu0 0.0
    %2330 = vmatpush1.msra.mxu0 0.0
    %2331 = vmatprep.subr.mxu0 0.0
    %2332 = vmatpush1.msra.mxu0 0.0
    %2333 = vmatprep.subr.mxu0 0.0
    %2334 = vmatpush1.msra.mxu0 0.0
    %2335 = vmatprep.subr.mxu0 0.0
    %2336 = vmatpush1.msra.mxu0 0.0
    %2337 = vmatprep.subr.mxu0 0.0
    %2338 = vmatpush1.msra.mxu0 0.0
    %2339 = vmatprep.mubr.f32.mxu0 0.0
    %2340 = vmatmul.mubr.f32.gmra.mrb[0].mxu0 %v2222
    %v2341 = vpop.f32.mrb[0].mxu0
    %v2342 = vadd.f32 %v2144, %v2341
    %v2343 = vpop.f32.mrb[0].mxu0
    %v2344 = vadd.f32 %v2148, %v2343
    %2345 = vmatprep.mubr.f32.mxu0 0.0
    %2346 = vmatmul.mubr.f32.gmra.mrb[0].mxu0 %v2225
    %v2347 = vpop.f32.mrb[0].mxu0
    %v2348 = vadd.f32 %v2144, %v2347
    %v2349 = vpop.f32.mrb[0].mxu0
    %v2350 = vadd.f32 %v2148, %v2349
    %2351 = vdwg.mxu0
    %2352 = vmatprep.subr.mxu0 %v2092
    %2353 = vmatpush1.msra.mxu0 %v2091
    %2354 = vmatprep.subr.mxu0 %v2108
    %2355 = vmatpush1.msra.mxu0 %v2107
    %2356 = vmatprep.subr.mxu0 %v2237
    %2357 = vmatpush1.msra.mxu0 %v2234
    %2358 = vmatprep.subr.mxu0 0.0
    %2359 = vmatpush1.msra.mxu0 0.0
    %2360 = vmatprep.subr.mxu0 0.0
    %2361 = vmatpush1.msra.mxu0 0.0
    %2362 = vmatprep.subr.mxu0 0.0
    %2363 = vmatpush1.msra.mxu0 0.0
    %2364 = vmatprep.subr.mxu0 0.0
    %2365 = vmatpush1.msra.mxu0 0.0
    %2366 = vmatprep.subr.mxu0 0.0
    %2367 = vmatpush1.msra.mxu0 0.0
    %2368 = vmatprep.subr.mxu0 0.0
    %2369 = vmatpush1.msra.mxu0 0.0
    %2370 = vmatprep.subr.mxu0 0.0
    %2371 = vmatpush1.msra.mxu0 0.0
    %2372 = vmatprep.subr.mxu0 0.0
    %2373 = vmatpush1.msra.mxu0 0.0
    %2374 = vmatprep.subr.mxu0 0.0
    %2375 = vmatpush1.msra.mxu0 0.0
    %2376 = vmatprep.subr.mxu0 0.0
    %2377 = vmatpush1.msra.mxu0 0.0
    %2378 = vmatprep.subr.mxu0 0.0
    %2379 = vmatpush1.msra.mxu0 0.0
    %2380 = vmatprep.subr.mxu0 0.0
    %2381 = vmatpush1.msra.mxu0 0.0
    %2382 = vmatprep.subr.mxu0 0.0
    %2383 = vmatpush1.msra.mxu0 0.0
    %2384 = vmatprep.subr.mxu0 0.0
    %2385 = vmatpush1.msra.mxu0 0.0
    %2386 = vmatprep.subr.mxu0 0.0
    %2387 = vmatpush1.msra.mxu0 0.0
    %2388 = vmatprep.subr.mxu0 0.0
    %2389 = vmatpush1.msra.mxu0 0.0
    %2390 = vmatprep.subr.mxu0 0.0
    %2391 = vmatpush1.msra.mxu0 0.0
    %2392 = vmatprep.subr.mxu0 0.0
    %2393 = vmatpush1.msra.mxu0 0.0
    %2394 = vmatprep.subr.mxu0 0.0
    %2395 = vmatpush1.msra.mxu0 0.0
    %2396 = vmatprep.subr.mxu0 0.0
    %2397 = vmatpush1.msra.mxu0 0.0
    %2398 = vmatprep.subr.mxu0 0.0
    %2399 = vmatpush1.msra.mxu0 0.0
    %2400 = vmatprep.subr.mxu0 0.0
    %2401 = vmatpush1.msra.mxu0 0.0
    %2402 = vmatprep.subr.mxu0 0.0
    %2403 = vmatpush1.msra.mxu0 0.0
    %2404 = vmatprep.subr.mxu0 0.0
    %2405 = vmatpush1.msra.mxu0 0.0
    %2406 = vmatprep.subr.mxu0 0.0
    %2407 = vmatpush1.msra.mxu0 0.0
    %2408 = vmatprep.subr.mxu0 0.0
    %2409 = vmatpush1.msra.mxu0 0.0
    %2410 = vmatprep.subr.mxu0 0.0
    %2411 = vmatpush1.msra.mxu0 0.0
    %2412 = vmatprep.subr.mxu0 0.0
    %2413 = vmatpush1.msra.mxu0 0.0
    %2414 = vmatprep.subr.mxu0 0.0
    %2415 = vmatpush1.msra.mxu0 0.0
    %2416 = vmatprep.mubr.f32.mxu0 0.0
    %2417 = vmatmul.mubr.f32.gmra.mrb[0].mxu0 %v2222
    %v2418 = vpop.f32.mrb[0].mxu0
    %v2419 = vadd.f32 %v2152, %v2418
    %v2420 = vpop.f32.mrb[0].mxu0
    %v2421 = vadd.f32 %v2156, %v2420
    %2422 = vmatprep.mubr.f32.mxu0 0.0
    %2423 = vmatmul.mubr.f32.gmra.mrb[0].mxu0 %v2225
    %v2424 = vpop.f32.mrb[0].mxu0
    %v2425 = vadd.f32 %v2152, %v2424
    %v2426 = vpop.f32.mrb[0].mxu0
    %v2427 = vadd.f32 %v2156, %v2426
    %2428 = vdwg.mxu0
    %2429 = vmatprep.subr.mxu0 %v2094
    %2430 = vmatpush1.msra.mxu0 %v2093
    %2431 = vmatprep.subr.mxu0 %v2110
    %2432 = vmatpush1.msra.mxu0 %v2109
    %2433 = vmatprep.subr.mxu0 %v2243
    %2434 = vmatpush1.msra.mxu0 %v2240
    %2435 = vmatprep.subr.mxu0 0.0
    %2436 = vmatpush1.msra.mxu0 0.0
    %2437 = vmatprep.subr.mxu0 0.0
    %2438 = vmatpush1.msra.mxu0 0.0
    %2439 = vmatprep.subr.mxu0 0.0
    %2440 = vmatpush1.msra.mxu0 0.0
    %2441 = vmatprep.subr.mxu0 0.0
    %2442 = vmatpush1.msra.mxu0 0.0
    %2443 = vmatprep.subr.mxu0 0.0
    %2444 = vmatpush1.msra.mxu0 0.0
    %2445 = vmatprep.subr.mxu0 0.0
    %2446 = vmatpush1.msra.mxu0 0.0
    %2447 = vmatprep.subr.mxu0 0.0
    %2448 = vmatpush1.msra.mxu0 0.0
    %2449 = vmatprep.subr.mxu0 0.0
    %2450 = vmatpush1.msra.mxu0 0.0
    %2451 = vmatprep.subr.mxu0 0.0
    %2452 = vmatpush1.msra.mxu0 0.0
    %2453 = vmatprep.subr.mxu0 0.0
    %2454 = vmatpush1.msra.mxu0 0.0
    %2455 = vmatprep.subr.mxu0 0.0
    %2456 = vmatpush1.msra.mxu0 0.0
    %2457 = vmatprep.subr.mxu0 0.0
    %2458 = vmatpush1.msra.mxu0 0.0
    %2459 = vmatprep.subr.mxu0 0.0
    %2460 = vmatpush1.msra.mxu0 0.0
    %2461 = vmatprep.subr.mxu0 0.0
    %2462 = vmatpush1.msra.mxu0 0.0
    %2463 = vmatprep.subr.mxu0 0.0
    %2464 = vmatpush1.msra.mxu0 0.0
    %2465 = vmatprep.subr.mxu0 0.0
    %2466 = vmatpush1.msra.mxu0 0.0
    %2467 = vmatprep.subr.mxu0 0.0
    %2468 = vmatpush1.msra.mxu0 0.0
    %2469 = vmatprep.subr.mxu0 0.0
    %2470 = vmatpush1.msra.mxu0 0.0
    %2471 = vmatprep.subr.mxu0 0.0
    %2472 = vmatpush1.msra.mxu0 0.0
    %2473 = vmatprep.subr.mxu0 0.0
    %2474 = vmatpush1.msra.mxu0 0.0
    %2475 = vmatprep.subr.mxu0 0.0
    %2476 = vmatpush1.msra.mxu0 0.0
    %2477 = vmatprep.subr.mxu0 0.0
    %2478 = vmatpush1.msra.mxu0 0.0
    %2479 = vmatprep.subr.mxu0 0.0
    %2480 = vmatpush1.msra.mxu0 0.0
    %2481 = vmatprep.subr.mxu0 0.0
    %2482 = vmatpush1.msra.mxu0 0.0
    %2483 = vmatprep.subr.mxu0 0.0
    %2484 = vmatpush1.msra.mxu0 0.0
    %2485 = vmatprep.subr.mxu0 0.0
    %2486 = vmatpush1.msra.mxu0 0.0
    %2487 = vmatprep.subr.mxu0 0.0
    %2488 = vmatpush1.msra.mxu0 0.0
    %2489 = vmatprep.subr.mxu0 0.0
    %2490 = vmatpush1.msra.mxu0 0.0
    %2491 = vmatprep.subr.mxu0 0.0
    %2492 = vmatpush1.msra.mxu0 0.0
    %2493 = vmatprep.mubr.f32.mxu0 0.0
    %2494 = vmatmul.mubr.f32.gmra.mrb[0].mxu0 %v2222
    %v2495 = vpop.f32.mrb[0].mxu0
    %v2496 = vadd.f32 %v2160, %v2495
    %v2497 = vpop.f32.mrb[0].mxu0
    %v2498 = vadd.f32 %v2164, %v2497
    %2499 = vmatprep.mubr.f32.mxu0 0.0
    %2500 = vmatmul.mubr.f32.gmra.mrb[0].mxu0 %v2225
    %v2501 = vpop.f32.mrb[0].mxu0
    %v2502 = vadd.f32 %v2160, %v2501
    %v2503 = vpop.f32.mrb[0].mxu0
    %v2504 = vadd.f32 %v2164, %v2503
    %2505 = vdwg.mxu0
    %2506 = vmatprep.subr.mxu0 %v2096
    %2507 = vmatpush1.msra.mxu0 %v2095
    %2508 = vmatprep.subr.mxu0 %v2112
    %2509 = vmatpush1.msra.mxu0 %v2111
    %2510 = vmatprep.subr.mxu0 %v2249
    %2511 = vmatpush1.msra.mxu0 %v2246
    %2512 = vmatprep.subr.mxu0 0.0
    %2513 = vmatpush1.msra.mxu0 0.0
    %2514 = vmatprep.subr.mxu0 0.0
    %2515 = vmatpush1.msra.mxu0 0.0
    %2516 = vmatprep.subr.mxu0 0.0
    %2517 = vmatpush1.msra.mxu0 0.0
    %2518 = vmatprep.subr.mxu0 0.0
    %2519 = vmatpush1.msra.mxu0 0.0
    %2520 = vmatprep.subr.mxu0 0.0
    %2521 = vmatpush1.msra.mxu0 0.0
    %2522 = vmatprep.subr.mxu0 0.0
    %2523 = vmatpush1.msra.mxu0 0.0
    %2524 = vmatprep.subr.mxu0 0.0
    %2525 = vmatpush1.msra.mxu0 0.0
    %2526 = vmatprep.subr.mxu0 0.0
    %2527 = vmatpush1.msra.mxu0 0.0
    %2528 = vmatprep.subr.mxu0 0.0
    %2529 = vmatpush1.msra.mxu0 0.0
    %2530 = vmatprep.subr.mxu0 0.0
    %2531 = vmatpush1.msra.mxu0 0.0
    %2532 = vmatprep.subr.mxu0 0.0
    %2533 = vmatpush1.msra.mxu0 0.0
    %2534 = vmatprep.subr.mxu0 0.0
    %2535 = vmatpush1.msra.mxu0 0.0
    %2536 = vmatprep.subr.mxu0 0.0
    %2537 = vmatpush1.msra.mxu0 0.0
    %2538 = vmatprep.subr.mxu0 0.0
    %2539 = vmatpush1.msra.mxu0 0.0
    %2540 = vmatprep.subr.mxu0 0.0
    %2541 = vmatpush1.msra.mxu0 0.0
    %2542 = vmatprep.subr.mxu0 0.0
    %2543 = vmatpush1.msra.mxu0 0.0
    %2544 = vmatprep.subr.mxu0 0.0
    %2545 = vmatpush1.msra.mxu0 0.0
    %2546 = vmatprep.subr.mxu0 0.0
    %2547 = vmatpush1.msra.mxu0 0.0
    %2548 = vmatprep.subr.mxu0 0.0
    %2549 = vmatpush1.msra.mxu0 0.0
    %2550 = vmatprep.subr.mxu0 0.0
    %2551 = vmatpush1.msra.mxu0 0.0
    %2552 = vmatprep.subr.mxu0 0.0
    %2553 = vmatpush1.msra.mxu0 0.0
    %2554 = vmatprep.subr.mxu0 0.0
    %2555 = vmatpush1.msra.mxu0 0.0
    %2556 = vmatprep.subr.mxu0 0.0
    %2557 = vmatpush1.msra.mxu0 0.0
    %2558 = vmatprep.subr.mxu0 0.0
    %2559 = vmatpush1.msra.mxu0 0.0
    %2560 = vmatprep.subr.mxu0 0.0
    %2561 = vmatpush1.msra.mxu0 0.0
    %2562 = vmatprep.subr.mxu0 0.0
    %2563 = vmatpush1.msra.mxu0 0.0
    %2564 = vmatprep.subr.mxu0 0.0
    %2565 = vmatpush1.msra.mxu0 0.0
    %2566 = vmatprep.subr.mxu0 0.0
    %2567 = vmatpush1.msra.mxu0 0.0
    %2568 = vmatprep.subr.mxu0 0.0
    %2569 = vmatpush1.msra.mxu0 0.0
    %2570 = vmatprep.mubr.f32.mxu0 0.0
    %2571 = vmatmul.mubr.f32.gmra.mrb[0].mxu0 %v2222
    %v2572 = vpop.f32.mrb[0].mxu0
    %v2573 = vadd.f32 %v2168, %v2572
    %v2574 = vpop.f32.mrb[0].mxu0
    %v2575 = vadd.f32 %v2172, %v2574
    %2576 = vmatprep.mubr.f32.mxu0 0.0
    %2577 = vmatmul.mubr.f32.gmra.mrb[0].mxu0 %v2225
    %v2578 = vpop.f32.mrb[0].mxu0
    %v2579 = vadd.f32 %v2168, %v2578
    %v2580 = vpop.f32.mrb[0].mxu0
    %v2581 = vadd.f32 %v2172, %v2580
    %2582 = vdwg.mxu0
    %2583 = vmatprep.subr.mxu0 %v2098
    %2584 = vmatpush1.msra.mxu0 %v2097
    %2585 = vmatprep.subr.mxu0 %v2114
    %2586 = vmatpush1.msra.mxu0 %v2113
    %2587 = vmatprep.subr.mxu0 %v2255
    %2588 = vmatpush1.msra.mxu0 %v2252
    %2589 = vmatprep.subr.mxu0 0.0
    %2590 = vmatpush1.msra.mxu0 0.0
    %2591 = vmatprep.subr.mxu0 0.0
    %2592 = vmatpush1.msra.mxu0 0.0
    %2593 = vmatprep.subr.mxu0 0.0
    %2594 = vmatpush1.msra.mxu0 0.0
    %2595 = vmatprep.subr.mxu0 0.0
    %2596 = vmatpush1.msra.mxu0 0.0
    %2597 = vmatprep.subr.mxu0 0.0
    %2598 = vmatpush1.msra.mxu0 0.0
    %2599 = vmatprep.subr.mxu0 0.0
    %2600 = vmatpush1.msra.mxu0 0.0
    %2601 = vmatprep.subr.mxu0 0.0
    %2602 = vmatpush1.msra.mxu0 0.0
    %2603 = vmatprep.subr.mxu0 0.0
    %2604 = vmatpush1.msra.mxu0 0.0
    %2605 = vmatprep.subr.mxu0 0.0
    %2606 = vmatpush1.msra.mxu0 0.0
    %2607 = vmatprep.subr.mxu0 0.0
    %2608 = vmatpush1.msra.mxu0 0.0
    %2609 = vmatprep.subr.mxu0 0.0
    %2610 = vmatpush1.msra.mxu0 0.0
    %2611 = vmatprep.subr.mxu0 0.0
    %2612 = vmatpush1.msra.mxu0 0.0
    %2613 = vmatprep.subr.mxu0 0.0
    %2614 = vmatpush1.msra.mxu0 0.0
    %2615 = vmatprep.subr.mxu0 0.0
    %2616 = vmatpush1.msra.mxu0 0.0
    %2617 = vmatprep.subr.mxu0 0.0
    %2618 = vmatpush1.msra.mxu0 0.0
    %2619 = vmatprep.subr.mxu0 0.0
    %2620 = vmatpush1.msra.mxu0 0.0
    %2621 = vmatprep.subr.mxu0 0.0
    %2622 = vmatpush1.msra.mxu0 0.0
    %2623 = vmatprep.subr.mxu0 0.0
    %2624 = vmatpush1.msra.mxu0 0.0
    %2625 = vmatprep.subr.mxu0 0.0
    %2626 = vmatpush1.msra.mxu0 0.0
    %2627 = vmatprep.subr.mxu0 0.0
    %2628 = vmatpush1.msra.mxu0 0.0
    %2629 = vmatprep.subr.mxu0 0.0
    %2630 = vmatpush1.msra.mxu0 0.0
    %2631 = vmatprep.subr.mxu0 0.0
    %2632 = vmatpush1.msra.mxu0 0.0
    %2633 = vmatprep.subr.mxu0 0.0
    %2634 = vmatpush1.msra.mxu0 0.0
    %2635 = vmatprep.subr.mxu0 0.0
    %2636 = vmatpush1.msra.mxu0 0.0
    %2637 = vmatprep.subr.mxu0 0.0
    %2638 = vmatpush1.msra.mxu0 0.0
    %2639 = vmatprep.subr.mxu0 0.0
    %2640 = vmatpush1.msra.mxu0 0.0
    %2641 = vmatprep.subr.mxu0 0.0
    %2642 = vmatpush1.msra.mxu0 0.0
    %2643 = vmatprep.subr.mxu0 0.0
    %2644 = vmatpush1.msra.mxu0 0.0
    %2645 = vmatprep.subr.mxu0 0.0
    %2646 = vmatpush1.msra.mxu0 0.0
    %2647 = vmatprep.mubr.f32.mxu0 0.0
    %2648 = vmatmul.mubr.f32.gmra.mrb[0].mxu0 %v2222
    %v2649 = vpop.f32.mrb[0].mxu0
    %v2650 = vadd.f32 %v2176, %v2649
    %v2651 = vpop.f32.mrb[0].mxu0
    %v2652 = vadd.f32 %v2180, %v2651
    %2653 = vmatprep.mubr.f32.mxu0 0.0
    %2654 = vmatmul.mubr.f32.gmra.mrb[0].mxu0 %v2225
    %v2655 = vpop.f32.mrb[0].mxu0
    %v2656 = vadd.f32 %v2176, %v2655
    %v2657 = vpop.f32.mrb[0].mxu0
    %v2658 = vadd.f32 %v2180, %v2657
    %2659 = vdwg.mxu0
    %2660 = vmatprep.subr.mxu0 %v2100
    %2661 = vmatpush1.msra.mxu0 %v2099
    %2662 = vmatprep.subr.mxu0 %v2116
    %2663 = vmatpush1.msra.mxu0 %v2115
    %2664 = vmatprep.subr.mxu0 %v2261
    %2665 = vmatpush1.msra.mxu0 %v2258
    %2666 = vmatprep.subr.mxu0 0.0
    %2667 = vmatpush1.msra.mxu0 0.0
    %2668 = vmatprep.subr.mxu0 0.0
    %2669 = vmatpush1.msra.mxu0 0.0
    %2670 = vmatprep.subr.mxu0 0.0
    %2671 = vmatpush1.msra.mxu0 0.0
    %2672 = vmatprep.subr.mxu0 0.0
    %2673 = vmatpush1.msra.mxu0 0.0
    %2674 = vmatprep.subr.mxu0 0.0
    %2675 = vmatpush1.msra.mxu0 0.0
    %2676 = vmatprep.subr.mxu0 0.0
    %2677 = vmatpush1.msra.mxu0 0.0
    %2678 = vmatprep.subr.mxu0 0.0
    %2679 = vmatpush1.msra.mxu0 0.0
    %2680 = vmatprep.subr.mxu0 0.0
    %2681 = vmatpush1.msra.mxu0 0.0
    %2682 = vmatprep.subr.mxu0 0.0
    %2683 = vmatpush1.msra.mxu0 0.0
    %2684 = vmatprep.subr.mxu0 0.0
    %2685 = vmatpush1.msra.mxu0 0.0
    %2686 = vmatprep.subr.mxu0 0.0
    %2687 = vmatpush1.msra.mxu0 0.0
    %2688 = vmatprep.subr.mxu0 0.0
    %2689 = vmatpush1.msra.mxu0 0.0
    %2690 = vmatprep.subr.mxu0 0.0
    %2691 = vmatpush1.msra.mxu0 0.0
    %2692 = vmatprep.subr.mxu0 0.0
    %2693 = vmatpush1.msra.mxu0 0.0
    %2694 = vmatprep.subr.mxu0 0.0
    %2695 = vmatpush1.msra.mxu0 0.0
    %2696 = vmatprep.subr.mxu0 0.0
    %2697 = vmatpush1.msra.mxu0 0.0
    %2698 = vmatprep.subr.mxu0 0.0
    %2699 = vmatpush1.msra.mxu0 0.0
    %2700 = vmatprep.subr.mxu0 0.0
    %2701 = vmatpush1.msra.mxu0 0.0
    %2702 = vmatprep.subr.mxu0 0.0
    %2703 = vmatpush1.msra.mxu0 0.0
    %2704 = vmatprep.subr.mxu0 0.0
    %2705 = vmatpush1.msra.mxu0 0.0
    %2706 = vmatprep.subr.mxu0 0.0
    %2707 = vmatpush1.msra.mxu0 0.0
    %2708 = vmatprep.subr.mxu0 0.0
    %2709 = vmatpush1.msra.mxu0 0.0
    %2710 = vmatprep.subr.mxu0 0.0
    %2711 = vmatpush1.msra.mxu0 0.0
    %2712 = vmatprep.subr.mxu0 0.0
    %2713 = vmatpush1.msra.mxu0 0.0
    %2714 = vmatprep.subr.mxu0 0.0
    %2715 = vmatpush1.msra.mxu0 0.0
    %2716 = vmatprep.subr.mxu0 0.0
    %2717 = vmatpush1.msra.mxu0 0.0
    %2718 = vmatprep.subr.mxu0 0.0
    %2719 = vmatpush1.msra.mxu0 0.0
    %2720 = vmatprep.subr.mxu0 0.0
    %2721 = vmatpush1.msra.mxu0 0.0
    %2722 = vmatprep.subr.mxu0 0.0
    %2723 = vmatpush1.msra.mxu0 0.0
    %2724 = vmatprep.mubr.f32.mxu0 0.0
    %2725 = vmatmul.mubr.f32.gmra.mrb[0].mxu0 %v2222
    %v2726 = vpop.f32.mrb[0].mxu0
    %v2727 = vadd.f32 %v2184, %v2726
    %v2728 = vpop.f32.mrb[0].mxu0
    %v2729 = vadd.f32 %v2188, %v2728
    %2730 = vmatprep.mubr.f32.mxu0 0.0
    %2731 = vmatmul.mubr.f32.gmra.mrb[0].mxu0 %v2225
    %v2732 = vpop.f32.mrb[0].mxu0
    %v2733 = vadd.f32 %v2184, %v2732
    %v2734 = vpop.f32.mrb[0].mxu0
    %v2735 = vadd.f32 %v2188, %v2734
    %2736 = vdwg.mxu0
    %2737 = vmatprep.subr.mxu0 %v2102
    %2738 = vmatpush1.msra.mxu0 %v2101
    %2739 = vmatprep.subr.mxu0 %v2118
    %2740 = vmatpush1.msra.mxu0 %v2117
    %2741 = vmatprep.subr.mxu0 %v2267
    %2742 = vmatpush1.msra.mxu0 %v2264
    %2743 = vmatprep.subr.mxu0 0.0
    %2744 = vmatpush1.msra.mxu0 0.0
    %2745 = vmatprep.subr.mxu0 0.0
    %2746 = vmatpush1.msra.mxu0 0.0
    %2747 = vmatprep.subr.mxu0 0.0
    %2748 = vmatpush1.msra.mxu0 0.0
    %2749 = vmatprep.subr.mxu0 0.0
    %2750 = vmatpush1.msra.mxu0 0.0
    %2751 = vmatprep.subr.mxu0 0.0
    %2752 = vmatpush1.msra.mxu0 0.0
    %2753 = vmatprep.subr.mxu0 0.0
    %2754 = vmatpush1.msra.mxu0 0.0
    %2755 = vmatprep.subr.mxu0 0.0
    %2756 = vmatpush1.msra.mxu0 0.0
    %2757 = vmatprep.subr.mxu0 0.0
    %2758 = vmatpush1.msra.mxu0 0.0
    %2759 = vmatprep.subr.mxu0 0.0
    %2760 = vmatpush1.msra.mxu0 0.0
    %2761 = vmatprep.subr.mxu0 0.0
    %2762 = vmatpush1.msra.mxu0 0.0
    %2763 = vmatprep.subr.mxu0 0.0
    %2764 = vmatpush1.msra.mxu0 0.0
    %2765 = vmatprep.subr.mxu0 0.0
    %2766 = vmatpush1.msra.mxu0 0.0
    %2767 = vmatprep.subr.mxu0 0.0
    %2768 = vmatpush1.msra.mxu0 0.0
    %2769 = vmatprep.subr.mxu0 0.0
    %2770 = vmatpush1.msra.mxu0 0.0
    %2771 = vmatprep.subr.mxu0 0.0
    %2772 = vmatpush1.msra.mxu0 0.0
    %2773 = vmatprep.subr.mxu0 0.0
    %2774 = vmatpush1.msra.mxu0 0.0
    %2775 = vmatprep.subr.mxu0 0.0
    %2776 = vmatpush1.msra.mxu0 0.0
    %2777 = vmatprep.subr.mxu0 0.0
    %2778 = vmatpush1.msra.mxu0 0.0
    %2779 = vmatprep.subr.mxu0 0.0
    %2780 = vmatpush1.msra.mxu0 0.0
    %2781 = vmatprep.subr.mxu0 0.0
    %2782 = vmatpush1.msra.mxu0 0.0
    %2783 = vmatprep.subr.mxu0 0.0
    %2784 = vmatpush1.msra.mxu0 0.0
    %2785 = vmatprep.subr.mxu0 0.0
    %2786 = vmatpush1.msra.mxu0 0.0
    %2787 = vmatprep.subr.mxu0 0.0
    %2788 = vmatpush1.msra.mxu0 0.0
    %2789 = vmatprep.subr.mxu0 0.0
    %2790 = vmatpush1.msra.mxu0 0.0
    %2791 = vmatprep.subr.mxu0 0.0
    %2792 = vmatpush1.msra.mxu0 0.0
    %2793 = vmatprep.subr.mxu0 0.0
    %2794 = vmatpush1.msra.mxu0 0.0
    %2795 = vmatprep.subr.mxu0 0.0
    %2796 = vmatpush1.msra.mxu0 0.0
    %2797 = vmatprep.subr.mxu0 0.0
    %2798 = vmatpush1.msra.mxu0 0.0
    %2799 = vmatprep.subr.mxu0 0.0
    %2800 = vmatpush1.msra.mxu0 0.0
    %2801 = vmatprep.mubr.f32.mxu0 0.0
    %2802 = vmatmul.mubr.f32.gmra.mrb[0].mxu0 %v2222
    %v2803 = vpop.f32.mrb[0].mxu0
    %v2804 = vadd.f32 %v2192, %v2803
    %v2805 = vpop.f32.mrb[0].mxu0
    %v2806 = vadd.f32 %v2196, %v2805
    %2807 = vmatprep.mubr.f32.mxu0 0.0
    %2808 = vmatmul.mubr.f32.gmra.mrb[0].mxu0 %v2225
    %v2809 = vpop.f32.mrb[0].mxu0
    %v2810 = vadd.f32 %v2192, %v2809
    %v2811 = vpop.f32.mrb[0].mxu0
    %v2812 = vadd.f32 %v2196, %v2811
    %2813 = vdwg.mxu0
    %2814 = vmatprep.subr.mxu0 %v2104
    %2815 = vmatpush1.msra.mxu0 %v2103
    %2816 = vmatprep.subr.mxu0 %v2120
    %2817 = vmatpush1.msra.mxu0 %v2119
    %2818 = vmatprep.subr.mxu0 %v2273
    %2819 = vmatpush1.msra.mxu0 %v2270
    %2820 = vmatprep.subr.mxu0 0.0
    %2821 = vmatpush1.msra.mxu0 0.0
    %2822 = vmatprep.subr.mxu0 0.0
    %2823 = vmatpush1.msra.mxu0 0.0
    %2824 = vmatprep.subr.mxu0 0.0
    %2825 = vmatpush1.msra.mxu0 0.0
    %2826 = vmatprep.subr.mxu0 0.0
    %2827 = vmatpush1.msra.mxu0 0.0
    %2828 = vmatprep.subr.mxu0 0.0
    %2829 = vmatpush1.msra.mxu0 0.0
    %2830 = vmatprep.subr.mxu0 0.0
    %2831 = vmatpush1.msra.mxu0 0.0
    %2832 = vmatprep.subr.mxu0 0.0
    %2833 = vmatpush1.msra.mxu0 0.0
    %2834 = vmatprep.subr.mxu0 0.0
    %2835 = vmatpush1.msra.mxu0 0.0
    %2836 = vmatprep.subr.mxu0 0.0
    %2837 = vmatpush1.msra.mxu0 0.0
    %2838 = vmatprep.subr.mxu0 0.0
    %2839 = vmatpush1.msra.mxu0 0.0
    %2840 = vmatprep.subr.mxu0 0.0
    %2841 = vmatpush1.msra.mxu0 0.0
    %2842 = vmatprep.subr.mxu0 0.0
    %2843 = vmatpush1.msra.mxu0 0.0
    %2844 = vmatprep.subr.mxu0 0.0
    %2845 = vmatpush1.msra.mxu0 0.0
    %2846 = vmatprep.subr.mxu0 0.0
    %2847 = vmatpush1.msra.mxu0 0.0
    %2848 = vmatprep.subr.mxu0 0.0
    %2849 = vmatpush1.msra.mxu0 0.0
    %2850 = vmatprep.subr.mxu0 0.0
    %2851 = vmatpush1.msra.mxu0 0.0
    %2852 = vmatprep.subr.mxu0 0.0
    %2853 = vmatpush1.msra.mxu0 0.0
    %2854 = vmatprep.subr.mxu0 0.0
    %2855 = vmatpush1.msra.mxu0 0.0
    %2856 = vmatprep.subr.mxu0 0.0
    %2857 = vmatpush1.msra.mxu0 0.0
    %2858 = vmatprep.subr.mxu0 0.0
    %2859 = vmatpush1.msra.mxu0 0.0
    %2860 = vmatprep.subr.mxu0 0.0
    %2861 = vmatpush1.msra.mxu0 0.0
    %2862 = vmatprep.subr.mxu0 0.0
    %2863 = vmatpush1.msra.mxu0 0.0
    %2864 = vmatprep.subr.mxu0 0.0
    %2865 = vmatpush1.msra.mxu0 0.0
    %2866 = vmatprep.subr.mxu0 0.0
    %2867 = vmatpush1.msra.mxu0 0.0
    %2868 = vmatprep.subr.mxu0 0.0
    %2869 = vmatpush1.msra.mxu0 0.0
    %2870 = vmatprep.subr.mxu0 0.0
    %2871 = vmatpush1.msra.mxu0 0.0
    %2872 = vmatprep.subr.mxu0 0.0
    %2873 = vmatpush1.msra.mxu0 0.0
    %2874 = vmatprep.subr.mxu0 0.0
    %2875 = vmatpush1.msra.mxu0 0.0
    %2876 = vmatprep.subr.mxu0 0.0
    %2877 = vmatpush1.msra.mxu0 0.0
    %2878 = vmatprep.mubr.f32.mxu0 0.0
    %2879 = vmatmul.mubr.f32.gmra.mrb[0].mxu0 %v2222
    %v2880 = vpop.f32.mrb[0].mxu0
    %v2881 = vadd.f32 %v2200, %v2880
    %v2882 = vpop.f32.mrb[0].mxu0
    %v2883 = vadd.f32 %v2204, %v2882
    %2884 = vmatprep.mubr.f32.mxu0 0.0
    %2885 = vmatmul.mubr.f32.gmra.mrb[0].mxu0 %v2225
    %v2886 = vpop.f32.mrb[0].mxu0
    %v2887 = vadd.f32 %v2200, %v2886
    %v2888 = vpop.f32.mrb[0].mxu0
    %v2889 = vadd.f32 %v2204, %v2888
    %2890 = vdwg.mxu0
    %v2891 = vmax.f32 %v2342, 0.0
    %v2892 = vmax.f32 %v2344, 0.0
    %v2893 = vmax.f32 %v2419, 0.0
    %v2894 = vmax.f32 %v2421, 0.0
    %v2895 = vmax.f32 %v2496, 0.0
    %v2896 = vmax.f32 %v2498, 0.0
    %v2897 = vmax.f32 %v2573, 0.0
    %v2898 = vmax.f32 %v2575, 0.0
    %v2899 = vmax.f32 %v2650, 0.0
    %v2900 = vmax.f32 %v2652, 0.0
    %v2901 = vmax.f32 %v2727, 0.0
    %v2902 = vmax.f32 %v2729, 0.0
    %v2903 = vmax.f32 %v2804, 0.0
    %v2904 = vmax.f32 %v2806, 0.0
    %v2905 = vmax.f32 %v2881, 0.0
    %v2906 = vmax.f32 %v2883, 0.0
    %v2907 = vmax.f32 %v2348, 0.0
    %v2908 = vmax.f32 %v2350, 0.0
    %v2909 = vmax.f32 %v2425, 0.0
    %v2910 = vmax.f32 %v2427, 0.0
    %v2911 = vmax.f32 %v2502, 0.0
    %v2912 = vmax.f32 %v2504, 0.0
    %v2913 = vmax.f32 %v2579, 0.0
    %v2914 = vmax.f32 %v2581, 0.0
    %v2915 = vmax.f32 %v2656, 0.0
    %v2916 = vmax.f32 %v2658, 0.0
    %v2917 = vmax.f32 %v2733, 0.0
    %v2918 = vmax.f32 %v2735, 0.0
    %v2919 = vmax.f32 %v2810, 0.0
    %v2920 = vmax.f32 %v2812, 0.0
    %v2921 = vmax.f32 %v2887, 0.0
    %v2922 = vmax.f32 %v2889, 0.0
    %v2923 = vld [vmem:[#allocation3] sm:$0xff]
    %v2924 = vld [vmem:[#allocation3 + $0x8] sm:$0xff]
    %v2925 = vld [vmem:[#allocation3 + $0x10] sm:$0xff]
    %v2926 = vld [vmem:[#allocation3 + $0x18] sm:$0xff]
    %v2927 = vld [vmem:[#allocation3 + $0x20] sm:$0xff]
    %v2928 = vld [vmem:[#allocation3 + $0x28] sm:$0xff]
    %v2929 = vld [vmem:[#allocation3 + $0x30] sm:$0xff]
    %v2930 = vld [vmem:[#allocation3 + $0x38] sm:$0xff]
    %v2931 = vld [vmem:[#allocation3 + $0x40] sm:$0xff]
    %v2932 = vld [vmem:[#allocation3 + $0x48] sm:$0xff]
    %v2933 = vld [vmem:[#allocation3 + $0x50] sm:$0xff]
    %v2934 = vld [vmem:[#allocation3 + $0x58] sm:$0xff]
    %v2935 = vld [vmem:[#allocation3 + $0x60] sm:$0xff]
    %v2936 = vld [vmem:[#allocation3 + $0x68] sm:$0xff]
    %v2937 = vld [vmem:[#allocation3 + $0x70] sm:$0xff]
    %v2938 = vld [vmem:[#allocation3 + $0x78] sm:$0xff]
    %v2939 = vld [vmem:[#allocation3 + $0x80] sm:$0xff]
    %v2940 = vld [vmem:[#allocation3 + $0x88] sm:$0xff]
    %v2941 = vld [vmem:[#allocation3 + $0x90] sm:$0xff]
    %v2942 = vld [vmem:[#allocation3 + $0x98] sm:$0xff]
    %v2943 = vld [vmem:[#allocation3 + $0xa0] sm:$0xff]
    %v2944 = vld [vmem:[#allocation3 + $0xa8] sm:$0xff]
    %v2945 = vld [vmem:[#allocation3 + $0xb0] sm:$0xff]
    %v2946 = vld [vmem:[#allocation3 + $0xb8] sm:$0xff]
    %v2947 = vld [vmem:[#allocation3 + $0xc0] sm:$0xff]
    %v2948 = vld [vmem:[#allocation3 + $0xc8] sm:$0xff]
    %v2949 = vld [vmem:[#allocation3 + $0xd0] sm:$0xff]
    %v2950 = vld [vmem:[#allocation3 + $0xd8] sm:$0xff]
    %v2951 = vld [vmem:[#allocation3 + $0xe0] sm:$0xff]
    %v2952 = vld [vmem:[#allocation3 + $0xe8] sm:$0xff]
    %v2953 = vld [vmem:[#allocation3 + $0xf0] sm:$0xff]
    %v2954 = vld [vmem:[#allocation3 + $0xf8] sm:$0xff]
    %v2955 = vld [vmem:[#allocation3 + $0x100] sm:$0xff]
    %v2956 = vld [vmem:[#allocation3 + $0x108] sm:$0xff]
    %v2957 = vld [vmem:[#allocation3 + $0x110] sm:$0xff]
    %v2958 = vld [vmem:[#allocation3 + $0x118] sm:$0xff]
    %v2959 = vld [vmem:[#allocation3 + $0x120] sm:$0xff]
    %v2960 = vld [vmem:[#allocation3 + $0x128] sm:$0xff]
    %v2961 = vld [vmem:[#allocation3 + $0x130] sm:$0xff]
    %v2962 = vld [vmem:[#allocation3 + $0x138] sm:$0xff]
    %v2963 = vld [vmem:[#allocation3 + $0x140] sm:$0xff]
    %v2964 = vld [vmem:[#allocation3 + $0x148] sm:$0xff]
    %v2965 = vld [vmem:[#allocation3 + $0x150] sm:$0xff]
    %v2966 = vld [vmem:[#allocation3 + $0x158] sm:$0xff]
    %v2967 = vld [vmem:[#allocation3 + $0x160] sm:$0xff]
    %v2968 = vld [vmem:[#allocation3 + $0x168] sm:$0xff]
    %v2969 = vld [vmem:[#allocation3 + $0x170] sm:$0xff]
    %v2970 = vld [vmem:[#allocation3 + $0x178] sm:$0xff]
    %v2971 = vld [vmem:[#allocation3 + $0x180] sm:$0xff]
    %v2972 = vld [vmem:[#allocation3 + $0x188] sm:$0xff]
    %v2973 = vld [vmem:[#allocation3 + $0x190] sm:$0xff]
    %v2974 = vld [vmem:[#allocation3 + $0x198] sm:$0xff]
    %v2975 = vld [vmem:[#allocation3 + $0x1a0] sm:$0xff]
    %v2976 = vld [vmem:[#allocation3 + $0x1a8] sm:$0xff]
    %v2977 = vld [vmem:[#allocation3 + $0x1b0] sm:$0xff]
    %v2978 = vld [vmem:[#allocation3 + $0x1b8] sm:$0xff]
    %v2979 = vld [vmem:[#allocation3 + $0x1c0] sm:$0xff]
    %v2980 = vld [vmem:[#allocation3 + $0x1c8] sm:$0xff]
    %v2981 = vld [vmem:[#allocation3 + $0x1d0] sm:$0xff]
    %v2982 = vld [vmem:[#allocation3 + $0x1d8] sm:$0xff]
    %v2983 = vld [vmem:[#allocation3 + $0x1e0] sm:$0xff]
    %v2984 = vld [vmem:[#allocation3 + $0x1e8] sm:$0xff]
    %v2985 = vld [vmem:[#allocation3 + $0x1f0] sm:$0xff]
    %v2986 = vld [vmem:[#allocation3 + $0x1f8] sm:$0xff]
    %v2987 = vld [vmem:[#allocation3 + $0x200] sm:$0xff]
    %v2988 = vld [vmem:[#allocation3 + $0x208] sm:$0xff]
    %v2989 = vld [vmem:[#allocation3 + $0x210] sm:$0xff]
    %v2990 = vld [vmem:[#allocation3 + $0x218] sm:$0xff]
    %v2991 = vld [vmem:[#allocation3 + $0x220] sm:$0xff]
    %v2992 = vld [vmem:[#allocation3 + $0x228] sm:$0xff]
    %v2993 = vld [vmem:[#allocation3 + $0x230] sm:$0xff]
    %v2994 = vld [vmem:[#allocation3 + $0x238] sm:$0xff]
    %v2995 = vld [vmem:[#allocation3 + $0x240] sm:$0xff]
    %v2996 = vld [vmem:[#allocation3 + $0x248] sm:$0xff]
    %v2997 = vld [vmem:[#allocation3 + $0x250] sm:$0xff]
    %v2998 = vld [vmem:[#allocation3 + $0x258] sm:$0xff]
    %v2999 = vld [vmem:[#allocation3 + $0x260] sm:$0xff]
    %v3000 = vld [vmem:[#allocation3 + $0x268] sm:$0xff]
    %v3001 = vld [vmem:[#allocation3 + $0x270] sm:$0xff]
    %v3002 = vld [vmem:[#allocation3 + $0x278] sm:$0xff]
    %v3003 = vld [vmem:[#allocation3 + $0x280] sm:$0xff]
    %v3004 = vld [vmem:[#allocation3 + $0x288] sm:$0xff]
    %v3005 = vld [vmem:[#allocation3 + $0x290] sm:$0xff]
    %v3006 = vld [vmem:[#allocation3 + $0x298] sm:$0xff]
    %v3007 = vld [vmem:[#allocation3 + $0x2a0] sm:$0xff]
    %v3008 = vld [vmem:[#allocation3 + $0x2a8] sm:$0xff]
    %v3009 = vld [vmem:[#allocation3 + $0x2b0] sm:$0xff]
    %v3010 = vld [vmem:[#allocation3 + $0x2b8] sm:$0xff]
    %v3011 = vld [vmem:[#allocation3 + $0x2c0] sm:$0xff]
    %v3012 = vld [vmem:[#allocation3 + $0x2c8] sm:$0xff]
    %v3013 = vld [vmem:[#allocation3 + $0x2d0] sm:$0xff]
    %v3014 = vld [vmem:[#allocation3 + $0x2d8] sm:$0xff]
    %v3015 = vld [vmem:[#allocation3 + $0x2e0] sm:$0xff]
    %v3016 = vld [vmem:[#allocation3 + $0x2e8] sm:$0xff]
    %v3017 = vld [vmem:[#allocation3 + $0x2f0] sm:$0xff]
    %v3018 = vld [vmem:[#allocation3 + $0x2f8] sm:$0xff]
    %v3019 = vld [vmem:[#allocation3 + $0x300] sm:$0xff]
    %v3020 = vld [vmem:[#allocation3 + $0x308] sm:$0xff]
    %v3021 = vld [vmem:[#allocation3 + $0x310] sm:$0xff]
    %v3022 = vld [vmem:[#allocation3 + $0x318] sm:$0xff]
    %v3023 = vld [vmem:[#allocation3 + $0x320] sm:$0xff]
    %v3024 = vld [vmem:[#allocation3 + $0x328] sm:$0xff]
    %v3025 = vld [vmem:[#allocation3 + $0x330] sm:$0xff]
    %v3026 = vld [vmem:[#allocation3 + $0x338] sm:$0xff]
    %v3027 = vld [vmem:[#allocation3 + $0x340] sm:$0xff]
    %v3028 = vld [vmem:[#allocation3 + $0x348] sm:$0xff]
    %v3029 = vld [vmem:[#allocation3 + $0x350] sm:$0xff]
    %v3030 = vld [vmem:[#allocation3 + $0x358] sm:$0xff]
    %v3031 = vld [vmem:[#allocation3 + $0x360] sm:$0xff]
    %v3032 = vld [vmem:[#allocation3 + $0x368] sm:$0xff]
    %v3033 = vld [vmem:[#allocation3 + $0x370] sm:$0xff]
    %v3034 = vld [vmem:[#allocation3 + $0x378] sm:$0xff]
    %v3035 = vld [vmem:[#allocation3 + $0x380] sm:$0xff]
    %v3036 = vld [vmem:[#allocation3 + $0x388] sm:$0xff]
    %v3037 = vld [vmem:[#allocation3 + $0x390] sm:$0xff]
    %v3038 = vld [vmem:[#allocation3 + $0x398] sm:$0xff]
    %v3039 = vld [vmem:[#allocation3 + $0x3a0] sm:$0xff]
    %v3040 = vld [vmem:[#allocation3 + $0x3a8] sm:$0xff]
    %v3041 = vld [vmem:[#allocation3 + $0x3b0] sm:$0xff]
    %v3042 = vld [vmem:[#allocation3 + $0x3b8] sm:$0xff]
    %v3043 = vld [vmem:[#allocation3 + $0x3c0] sm:$0xff]
    %v3044 = vld [vmem:[#allocation3 + $0x3c8] sm:$0xff]
    %v3045 = vld [vmem:[#allocation3 + $0x3d0] sm:$0xff]
    %v3046 = vld [vmem:[#allocation3 + $0x3d8] sm:$0xff]
    %v3047 = vld [vmem:[#allocation3 + $0x3e0] sm:$0xff]
    %v3048 = vld [vmem:[#allocation3 + $0x3e8] sm:$0xff]
    %v3049 = vld [vmem:[#allocation3 + $0x3f0] sm:$0xff]
    %v3050 = vld [vmem:[#allocation3 + $0x3f8] sm:$0xff]
    %v3051 = vld [vmem:[#allocation3 + $0x400] sm:$0xff]
    %v3052 = vld [vmem:[#allocation3 + $0x408] sm:$0xff]
    %v3053 = vld [vmem:[#allocation3 + $0x410] sm:$0xff]
    %v3054 = vld [vmem:[#allocation3 + $0x418] sm:$0xff]
    %v3055 = vld [vmem:[#allocation3 + $0x420] sm:$0xff]
    %v3056 = vld [vmem:[#allocation3 + $0x428] sm:$0xff]
    %v3057 = vld [vmem:[#allocation3 + $0x430] sm:$0xff]
    %v3058 = vld [vmem:[#allocation3 + $0x438] sm:$0xff]
    %v3059 = vld [vmem:[#allocation3 + $0x440] sm:$0xff]
    %v3060 = vld [vmem:[#allocation3 + $0x448] sm:$0xff]
    %v3061 = vld [vmem:[#allocation3 + $0x450] sm:$0xff]
    %v3062 = vld [vmem:[#allocation3 + $0x458] sm:$0xff]
    %v3063 = vld [vmem:[#allocation3 + $0x460] sm:$0xff]
    %v3064 = vld [vmem:[#allocation3 + $0x468] sm:$0xff]
    %v3065 = vld [vmem:[#allocation3 + $0x470] sm:$0xff]
    %v3066 = vld [vmem:[#allocation3 + $0x478] sm:$0xff]
    %v3067 = vld [vmem:[#allocation3 + $0x480] sm:$0xff]
    %v3068 = vld [vmem:[#allocation3 + $0x488] sm:$0xff]
    %v3069 = vld [vmem:[#allocation3 + $0x490] sm:$0xff]
    %v3070 = vld [vmem:[#allocation3 + $0x498] sm:$0xff]
    %v3071 = vld [vmem:[#allocation3 + $0x4a0] sm:$0xff]
    %v3072 = vld [vmem:[#allocation3 + $0x4a8] sm:$0xff]
    %v3073 = vld [vmem:[#allocation3 + $0x4b0] sm:$0xff]
    %v3074 = vld [vmem:[#allocation3 + $0x4b8] sm:$0xff]
    %v3075 = vld [vmem:[#allocation3 + $0x4c0] sm:$0xff]
    %v3076 = vld [vmem:[#allocation3 + $0x4c8] sm:$0xff]
    %v3077 = vld [vmem:[#allocation3 + $0x4d0] sm:$0xff]
    %v3078 = vld [vmem:[#allocation3 + $0x4d8] sm:$0xff]
    %v3079 = vld [vmem:[#allocation3 + $0x4e0] sm:$0xff]
    %v3080 = vld [vmem:[#allocation3 + $0x4e8] sm:$0xff]
    %v3081 = vld [vmem:[#allocation3 + $0x4f0] sm:$0xff]
    %v3082 = vld [vmem:[#allocation3 + $0x4f8] sm:$0xff]
    %v3083 = vld [vmem:[#allocation3 + $0x500] sm:$0xff]
    %v3084 = vld [vmem:[#allocation3 + $0x508] sm:$0xff]
    %v3085 = vld [vmem:[#allocation3 + $0x510] sm:$0xff]
    %v3086 = vld [vmem:[#allocation3 + $0x518] sm:$0xff]
    %v3087 = vld [vmem:[#allocation3 + $0x520] sm:$0xff]
    %v3088 = vld [vmem:[#allocation3 + $0x528] sm:$0xff]
    %v3089 = vld [vmem:[#allocation3 + $0x530] sm:$0xff]
    %v3090 = vld [vmem:[#allocation3 + $0x538] sm:$0xff]
    %v3091 = vld [vmem:[#allocation3 + $0x540] sm:$0xff]
    %v3092 = vld [vmem:[#allocation3 + $0x548] sm:$0xff]
    %v3093 = vld [vmem:[#allocation3 + $0x550] sm:$0xff]
    %v3094 = vld [vmem:[#allocation3 + $0x558] sm:$0xff]
    %v3095 = vld [vmem:[#allocation3 + $0x560] sm:$0xff]
    %v3096 = vld [vmem:[#allocation3 + $0x568] sm:$0xff]
    %v3097 = vld [vmem:[#allocation3 + $0x570] sm:$0xff]
    %v3098 = vld [vmem:[#allocation3 + $0x578] sm:$0xff]
    %v3099 = vld [vmem:[#allocation3 + $0x580] sm:$0xff]
    %v3100 = vld [vmem:[#allocation3 + $0x588] sm:$0xff]
    %v3101 = vld [vmem:[#allocation3 + $0x590] sm:$0xff]
    %v3102 = vld [vmem:[#allocation3 + $0x598] sm:$0xff]
    %v3103 = vld [vmem:[#allocation3 + $0x5a0] sm:$0xff]
    %v3104 = vld [vmem:[#allocation3 + $0x5a8] sm:$0xff]
    %v3105 = vld [vmem:[#allocation3 + $0x5b0] sm:$0xff]
    %v3106 = vld [vmem:[#allocation3 + $0x5b8] sm:$0xff]
    %v3107 = vld [vmem:[#allocation3 + $0x5c0] sm:$0xff]
    %v3108 = vld [vmem:[#allocation3 + $0x5c8] sm:$0xff]
    %v3109 = vld [vmem:[#allocation3 + $0x5d0] sm:$0xff]
    %v3110 = vld [vmem:[#allocation3 + $0x5d8] sm:$0xff]
    %v3111 = vld [vmem:[#allocation3 + $0x5e0] sm:$0xff]
    %v3112 = vld [vmem:[#allocation3 + $0x5e8] sm:$0xff]
    %v3113 = vld [vmem:[#allocation3 + $0x5f0] sm:$0xff]
    %v3114 = vld [vmem:[#allocation3 + $0x5f8] sm:$0xff]
    %v3115 = vld [vmem:[#allocation3 + $0x600] sm:$0xff]
    %v3116 = vld [vmem:[#allocation3 + $0x608] sm:$0xff]
    %v3117 = vld [vmem:[#allocation3 + $0x610] sm:$0xff]
    %v3118 = vld [vmem:[#allocation3 + $0x618] sm:$0xff]
    %v3119 = vld [vmem:[#allocation3 + $0x620] sm:$0xff]
    %v3120 = vld [vmem:[#allocation3 + $0x628] sm:$0xff]
    %v3121 = vld [vmem:[#allocation3 + $0x630] sm:$0xff]
    %v3122 = vld [vmem:[#allocation3 + $0x638] sm:$0xff]
    %v3123 = vld [vmem:[#allocation3 + $0x640] sm:$0xff]
    %v3124 = vld [vmem:[#allocation3 + $0x648] sm:$0xff]
    %v3125 = vld [vmem:[#allocation3 + $0x650] sm:$0xff]
    %v3126 = vld [vmem:[#allocation3 + $0x658] sm:$0xff]
    %v3127 = vld [vmem:[#allocation3 + $0x660] sm:$0xff]
    %v3128 = vld [vmem:[#allocation3 + $0x668] sm:$0xff]
    %v3129 = vld [vmem:[#allocation3 + $0x670] sm:$0xff]
    %v3130 = vld [vmem:[#allocation3 + $0x678] sm:$0xff]
    %v3131 = vld [vmem:[#allocation3 + $0x680] sm:$0xff]
    %v3132 = vld [vmem:[#allocation3 + $0x688] sm:$0xff]
    %v3133 = vld [vmem:[#allocation3 + $0x690] sm:$0xff]
    %v3134 = vld [vmem:[#allocation3 + $0x698] sm:$0xff]
    %v3135 = vld [vmem:[#allocation3 + $0x6a0] sm:$0xff]
    %v3136 = vld [vmem:[#allocation3 + $0x6a8] sm:$0xff]
    %v3137 = vld [vmem:[#allocation3 + $0x6b0] sm:$0xff]
    %v3138 = vld [vmem:[#allocation3 + $0x6b8] sm:$0xff]
    %v3139 = vld [vmem:[#allocation3 + $0x6c0] sm:$0xff]
    %v3140 = vld [vmem:[#allocation3 + $0x6c8] sm:$0xff]
    %v3141 = vld [vmem:[#allocation3 + $0x6d0] sm:$0xff]
    %v3142 = vld [vmem:[#allocation3 + $0x6d8] sm:$0xff]
    %v3143 = vld [vmem:[#allocation3 + $0x6e0] sm:$0xff]
    %v3144 = vld [vmem:[#allocation3 + $0x6e8] sm:$0xff]
    %v3145 = vld [vmem:[#allocation3 + $0x6f0] sm:$0xff]
    %v3146 = vld [vmem:[#allocation3 + $0x6f8] sm:$0xff]
    %v3147 = vld [vmem:[#allocation3 + $0x700] sm:$0xff]
    %v3148 = vld [vmem:[#allocation3 + $0x708] sm:$0xff]
    %v3149 = vld [vmem:[#allocation3 + $0x710] sm:$0xff]
    %v3150 = vld [vmem:[#allocation3 + $0x718] sm:$0xff]
    %v3151 = vld [vmem:[#allocation3 + $0x720] sm:$0xff]
    %v3152 = vld [vmem:[#allocation3 + $0x728] sm:$0xff]
    %v3153 = vld [vmem:[#allocation3 + $0x730] sm:$0xff]
    %v3154 = vld [vmem:[#allocation3 + $0x738] sm:$0xff]
    %v3155 = vld [vmem:[#allocation3 + $0x740] sm:$0xff]
    %v3156 = vld [vmem:[#allocation3 + $0x748] sm:$0xff]
    %v3157 = vld [vmem:[#allocation3 + $0x750] sm:$0xff]
    %v3158 = vld [vmem:[#allocation3 + $0x758] sm:$0xff]
    %v3159 = vld [vmem:[#allocation3 + $0x760] sm:$0xff]
    %v3160 = vld [vmem:[#allocation3 + $0x768] sm:$0xff]
    %v3161 = vld [vmem:[#allocation3 + $0x770] sm:$0xff]
    %v3162 = vld [vmem:[#allocation3 + $0x778] sm:$0xff]
    %v3163 = vld [vmem:[#allocation3 + $0x780] sm:$0xff]
    %v3164 = vld [vmem:[#allocation3 + $0x788] sm:$0xff]
    %v3165 = vld [vmem:[#allocation3 + $0x790] sm:$0xff]
    %v3166 = vld [vmem:[#allocation3 + $0x798] sm:$0xff]
    %v3167 = vld [vmem:[#allocation3 + $0x7a0] sm:$0xff]
    %v3168 = vld [vmem:[#allocation3 + $0x7a8] sm:$0xff]
    %v3169 = vld [vmem:[#allocation3 + $0x7b0] sm:$0xff]
    %v3170 = vld [vmem:[#allocation3 + $0x7b8] sm:$0xff]
    %v3171 = vld [vmem:[#allocation3 + $0x7c0] sm:$0xff]
    %v3172 = vld [vmem:[#allocation3 + $0x7c8] sm:$0xff]
    %v3173 = vld [vmem:[#allocation3 + $0x7d0] sm:$0xff]
    %v3174 = vld [vmem:[#allocation3 + $0x7d8] sm:$0xff]
    %v3175 = vld [vmem:[#allocation3 + $0x7e0] sm:$0xff]
    %v3176 = vld [vmem:[#allocation3 + $0x7e8] sm:$0xff]
    %v3177 = vld [vmem:[#allocation3 + $0x7f0] sm:$0xff]
    %v3178 = vld [vmem:[#allocation3 + $0x7f8] sm:$0xff]
    %v3179 = vld [vmem:[%s14] sm:$0x1]
    %v3181 = vlaneseq
    %v3182 = vshrl.u32 %v3181, 7
    %v3183 = vsub.s32 0, %v3182
    %v3184 = vrot.slane %v3179, %v3183
    %3186 = vmatprep.subr.mxu0 0.0
    %3187 = vmatpush1.msra.mxu0 %v2923
    %3188 = vmatprep.subr.mxu0 0.0
    %3189 = vmatpush1.msra.mxu0 %v2924
    %3190 = vmatprep.subr.mxu0 0.0
    %3191 = vmatpush1.msra.mxu0 %v2925
    %3192 = vmatprep.subr.mxu0 0.0
    %3193 = vmatpush1.msra.mxu0 %v2926
    %3194 = vmatprep.subr.mxu0 0.0
    %3195 = vmatpush1.msra.mxu0 %v2927
    %3196 = vmatprep.subr.mxu0 0.0
    %3197 = vmatpush1.msra.mxu0 %v2928
    %3198 = vmatprep.subr.mxu0 0.0
    %3199 = vmatpush1.msra.mxu0 %v2929
    %3200 = vmatprep.subr.mxu0 0.0
    %3201 = vmatpush1.msra.mxu0 %v2930
    %3202 = vmatprep.subr.mxu0 0.0
    %3203 = vmatpush1.msra.mxu0 %v2931
    %3204 = vmatprep.subr.mxu0 0.0
    %3205 = vmatpush1.msra.mxu0 %v2932
    %3206 = vmatprep.subr.mxu0 0.0
    %3207 = vmatpush1.msra.mxu0 %v2933
    %3208 = vmatprep.subr.mxu0 0.0
    %3209 = vmatpush1.msra.mxu0 %v2934
    %3210 = vmatprep.subr.mxu0 0.0
    %3211 = vmatpush1.msra.mxu0 %v2935
    %3212 = vmatprep.subr.mxu0 0.0
    %3213 = vmatpush1.msra.mxu0 %v2936
    %3214 = vmatprep.subr.mxu0 0.0
    %3215 = vmatpush1.msra.mxu0 %v2937
    %3216 = vmatprep.subr.mxu0 0.0
    %3217 = vmatpush1.msra.mxu0 %v2938
    %3218 = vmatprep.subr.mxu0 0.0
    %3219 = vmatpush1.msra.mxu0 %v2939
    %3220 = vmatprep.subr.mxu0 0.0
    %3221 = vmatpush1.msra.mxu0 %v2940
    %3222 = vmatprep.subr.mxu0 0.0
    %3223 = vmatpush1.msra.mxu0 %v2941
    %3224 = vmatprep.subr.mxu0 0.0
    %3225 = vmatpush1.msra.mxu0 %v2942
    %3226 = vmatprep.subr.mxu0 0.0
    %3227 = vmatpush1.msra.mxu0 %v2943
    %3228 = vmatprep.subr.mxu0 0.0
    %3229 = vmatpush1.msra.mxu0 %v2944
    %3230 = vmatprep.subr.mxu0 0.0
    %3231 = vmatpush1.msra.mxu0 %v2945
    %3232 = vmatprep.subr.mxu0 0.0
    %3233 = vmatpush1.msra.mxu0 %v2946
    %3234 = vmatprep.subr.mxu0 0.0
    %3235 = vmatpush1.msra.mxu0 %v2947
    %3236 = vmatprep.subr.mxu0 0.0
    %3237 = vmatpush1.msra.mxu0 %v2948
    %3238 = vmatprep.subr.mxu0 0.0
    %3239 = vmatpush1.msra.mxu0 %v2949
    %3240 = vmatprep.subr.mxu0 0.0
    %3241 = vmatpush1.msra.mxu0 %v2950
    %3242 = vmatprep.subr.mxu0 0.0
    %3243 = vmatpush1.msra.mxu0 %v2951
    %3244 = vmatprep.subr.mxu0 0.0
    %3245 = vmatpush1.msra.mxu0 %v2952
    %3246 = vmatprep.subr.mxu0 0.0
    %3247 = vmatpush1.msra.mxu0 %v2953
    %3248 = vmatprep.subr.mxu0 0.0
    %3249 = vmatpush1.msra.mxu0 %v2954
    %3250 = vmatprep.mubr.f32.mxu0 %v2892
    %3251 = vmatmul.mubr.f32.gmra.mrb[0].mxu0 %v2891
    %v3252 = vpop.f32.mrb[0].mxu0
    %v3253 = vadd.f32 %v3184, %v3252
    %v3254 = vpop.f32.mrb[0].mxu0
    %3255 = vmatprep.mubr.f32.mxu0 %v2908
    %3256 = vmatmul.mubr.f32.gmra.mrb[0].mxu0 %v2907
    %v3257 = vpop.f32.mrb[0].mxu0
    %v3258 = vadd.f32 %v3184, %v3257
    %v3259 = vpop.f32.mrb[0].mxu0
    %3260 = vdwg.mxu0
    %3261 = vmatprep.subr.mxu0 0.0
    %3262 = vmatpush1.msra.mxu0 %v2955
    %3263 = vmatprep.subr.mxu0 0.0
    %3264 = vmatpush1.msra.mxu0 %v2956
    %3265 = vmatprep.subr.mxu0 0.0
    %3266 = vmatpush1.msra.mxu0 %v2957
    %3267 = vmatprep.subr.mxu0 0.0
    %3268 = vmatpush1.msra.mxu0 %v2958
    %3269 = vmatprep.subr.mxu0 0.0
    %3270 = vmatpush1.msra.mxu0 %v2959
    %3271 = vmatprep.subr.mxu0 0.0
    %3272 = vmatpush1.msra.mxu0 %v2960
    %3273 = vmatprep.subr.mxu0 0.0
    %3274 = vmatpush1.msra.mxu0 %v2961
    %3275 = vmatprep.subr.mxu0 0.0
    %3276 = vmatpush1.msra.mxu0 %v2962
    %3277 = vmatprep.subr.mxu0 0.0
    %3278 = vmatpush1.msra.mxu0 %v2963
    %3279 = vmatprep.subr.mxu0 0.0
    %3280 = vmatpush1.msra.mxu0 %v2964
    %3281 = vmatprep.subr.mxu0 0.0
    %3282 = vmatpush1.msra.mxu0 %v2965
    %3283 = vmatprep.subr.mxu0 0.0
    %3284 = vmatpush1.msra.mxu0 %v2966
    %3285 = vmatprep.subr.mxu0 0.0
    %3286 = vmatpush1.msra.mxu0 %v2967
    %3287 = vmatprep.subr.mxu0 0.0
    %3288 = vmatpush1.msra.mxu0 %v2968
    %3289 = vmatprep.subr.mxu0 0.0
    %3290 = vmatpush1.msra.mxu0 %v2969
    %3291 = vmatprep.subr.mxu0 0.0
    %3292 = vmatpush1.msra.mxu0 %v2970
    %3293 = vmatprep.subr.mxu0 0.0
    %3294 = vmatpush1.msra.mxu0 %v2971
    %3295 = vmatprep.subr.mxu0 0.0
    %3296 = vmatpush1.msra.mxu0 %v2972
    %3297 = vmatprep.subr.mxu0 0.0
    %3298 = vmatpush1.msra.mxu0 %v2973
    %3299 = vmatprep.subr.mxu0 0.0
    %3300 = vmatpush1.msra.mxu0 %v2974
    %3301 = vmatprep.subr.mxu0 0.0
    %3302 = vmatpush1.msra.mxu0 %v2975
    %3303 = vmatprep.subr.mxu0 0.0
    %3304 = vmatpush1.msra.mxu0 %v2976
    %3305 = vmatprep.subr.mxu0 0.0
    %3306 = vmatpush1.msra.mxu0 %v2977
    %3307 = vmatprep.subr.mxu0 0.0
    %3308 = vmatpush1.msra.mxu0 %v2978
    %3309 = vmatprep.subr.mxu0 0.0
    %3310 = vmatpush1.msra.mxu0 %v2979
    %3311 = vmatprep.subr.mxu0 0.0
    %3312 = vmatpush1.msra.mxu0 %v2980
    %3313 = vmatprep.subr.mxu0 0.0
    %3314 = vmatpush1.msra.mxu0 %v2981
    %3315 = vmatprep.subr.mxu0 0.0
    %3316 = vmatpush1.msra.mxu0 %v2982
    %3317 = vmatprep.subr.mxu0 0.0
    %3318 = vmatpush1.msra.mxu0 %v2983
    %3319 = vmatprep.subr.mxu0 0.0
    %3320 = vmatpush1.msra.mxu0 %v2984
    %3321 = vmatprep.subr.mxu0 0.0
    %3322 = vmatpush1.msra.mxu0 %v2985
    %3323 = vmatprep.subr.mxu0 0.0
    %3324 = vmatpush1.msra.mxu0 %v2986
    %3325 = vmatprep.mubr.f32.mxu0 %v2894
    %3326 = vmatmul.mubr.f32.gmra.mrb[0].mxu0 %v2893
    %v3327 = vpop.f32.mrb[0].mxu0
    %v3328 = vadd.f32 %v3253, %v3327
    %v3329 = vpop.f32.mrb[0].mxu0
    %3330 = vmatprep.mubr.f32.mxu0 %v2910
    %3331 = vmatmul.mubr.f32.gmra.mrb[0].mxu0 %v2909
    %v3332 = vpop.f32.mrb[0].mxu0
    %v3333 = vadd.f32 %v3258, %v3332
    %v3334 = vpop.f32.mrb[0].mxu0
    %3335 = vdwg.mxu0
    %3336 = vmatprep.subr.mxu0 0.0
    %3337 = vmatpush1.msra.mxu0 %v2987
    %3338 = vmatprep.subr.mxu0 0.0
    %3339 = vmatpush1.msra.mxu0 %v2988
    %3340 = vmatprep.subr.mxu0 0.0
    %3341 = vmatpush1.msra.mxu0 %v2989
    %3342 = vmatprep.subr.mxu0 0.0
    %3343 = vmatpush1.msra.mxu0 %v2990
    %3344 = vmatprep.subr.mxu0 0.0
    %3345 = vmatpush1.msra.mxu0 %v2991
    %3346 = vmatprep.subr.mxu0 0.0
    %3347 = vmatpush1.msra.mxu0 %v2992
    %3348 = vmatprep.subr.mxu0 0.0
    %3349 = vmatpush1.msra.mxu0 %v2993
    %3350 = vmatprep.subr.mxu0 0.0
    %3351 = vmatpush1.msra.mxu0 %v2994
    %3352 = vmatprep.subr.mxu0 0.0
    %3353 = vmatpush1.msra.mxu0 %v2995
    %3354 = vmatprep.subr.mxu0 0.0
    %3355 = vmatpush1.msra.mxu0 %v2996
    %3356 = vmatprep.subr.mxu0 0.0
    %3357 = vmatpush1.msra.mxu0 %v2997
    %3358 = vmatprep.subr.mxu0 0.0
    %3359 = vmatpush1.msra.mxu0 %v2998
    %3360 = vmatprep.subr.mxu0 0.0
    %3361 = vmatpush1.msra.mxu0 %v2999
    %3362 = vmatprep.subr.mxu0 0.0
    %3363 = vmatpush1.msra.mxu0 %v3000
    %3364 = vmatprep.subr.mxu0 0.0
    %3365 = vmatpush1.msra.mxu0 %v3001
    %3366 = vmatprep.subr.mxu0 0.0
    %3367 = vmatpush1.msra.mxu0 %v3002
    %3368 = vmatprep.subr.mxu0 0.0
    %3369 = vmatpush1.msra.mxu0 %v3003
    %3370 = vmatprep.subr.mxu0 0.0
    %3371 = vmatpush1.msra.mxu0 %v3004
    %3372 = vmatprep.subr.mxu0 0.0
    %3373 = vmatpush1.msra.mxu0 %v3005
    %3374 = vmatprep.subr.mxu0 0.0
    %3375 = vmatpush1.msra.mxu0 %v3006
    %3376 = vmatprep.subr.mxu0 0.0
    %3377 = vmatpush1.msra.mxu0 %v3007
    %3378 = vmatprep.subr.mxu0 0.0
    %3379 = vmatpush1.msra.mxu0 %v3008
    %3380 = vmatprep.subr.mxu0 0.0
    %3381 = vmatpush1.msra.mxu0 %v3009
    %3382 = vmatprep.subr.mxu0 0.0
    %3383 = vmatpush1.msra.mxu0 %v3010
    %3384 = vmatprep.subr.mxu0 0.0
    %3385 = vmatpush1.msra.mxu0 %v3011
    %3386 = vmatprep.subr.mxu0 0.0
    %3387 = vmatpush1.msra.mxu0 %v3012
    %3388 = vmatprep.subr.mxu0 0.0
    %3389 = vmatpush1.msra.mxu0 %v3013
    %3390 = vmatprep.subr.mxu0 0.0
    %3391 = vmatpush1.msra.mxu0 %v3014
    %3392 = vmatprep.subr.mxu0 0.0
    %3393 = vmatpush1.msra.mxu0 %v3015
    %3394 = vmatprep.subr.mxu0 0.0
    %3395 = vmatpush1.msra.mxu0 %v3016
    %3396 = vmatprep.subr.mxu0 0.0
    %3397 = vmatpush1.msra.mxu0 %v3017
    %3398 = vmatprep.subr.mxu0 0.0
    %3399 = vmatpush1.msra.mxu0 %v3018
    %3400 = vmatprep.mubr.f32.mxu0 %v2896
    %3401 = vmatmul.mubr.f32.gmra.mrb[0].mxu0 %v2895
    %v3402 = vpop.f32.mrb[0].mxu0
    %v3403 = vadd.f32 %v3328, %v3402
    %v3404 = vpop.f32.mrb[0].mxu0
    %3405 = vmatprep.mubr.f32.mxu0 %v2912
    %3406 = vmatmul.mubr.f32.gmra.mrb[0].mxu0 %v2911
    %v3407 = vpop.f32.mrb[0].mxu0
    %v3408 = vadd.f32 %v3333, %v3407
    %v3409 = vpop.f32.mrb[0].mxu0
    %3410 = vdwg.mxu0
    %3411 = vmatprep.subr.mxu0 0.0
    %3412 = vmatpush1.msra.mxu0 %v3019
    %3413 = vmatprep.subr.mxu0 0.0
    %3414 = vmatpush1.msra.mxu0 %v3020
    %3415 = vmatprep.subr.mxu0 0.0
    %3416 = vmatpush1.msra.mxu0 %v3021
    %3417 = vmatprep.subr.mxu0 0.0
    %3418 = vmatpush1.msra.mxu0 %v3022
    %3419 = vmatprep.subr.mxu0 0.0
    %3420 = vmatpush1.msra.mxu0 %v3023
    %3421 = vmatprep.subr.mxu0 0.0
    %3422 = vmatpush1.msra.mxu0 %v3024
    %3423 = vmatprep.subr.mxu0 0.0
    %3424 = vmatpush1.msra.mxu0 %v3025
    %3425 = vmatprep.subr.mxu0 0.0
    %3426 = vmatpush1.msra.mxu0 %v3026
    %3427 = vmatprep.subr.mxu0 0.0
    %3428 = vmatpush1.msra.mxu0 %v3027
    %3429 = vmatprep.subr.mxu0 0.0
    %3430 = vmatpush1.msra.mxu0 %v3028
    %3431 = vmatprep.subr.mxu0 0.0
    %3432 = vmatpush1.msra.mxu0 %v3029
    %3433 = vmatprep.subr.mxu0 0.0
    %3434 = vmatpush1.msra.mxu0 %v3030
    %3435 = vmatprep.subr.mxu0 0.0
    %3436 = vmatpush1.msra.mxu0 %v3031
    %3437 = vmatprep.subr.mxu0 0.0
    %3438 = vmatpush1.msra.mxu0 %v3032
    %3439 = vmatprep.subr.mxu0 0.0
    %3440 = vmatpush1.msra.mxu0 %v3033
    %3441 = vmatprep.subr.mxu0 0.0
    %3442 = vmatpush1.msra.mxu0 %v3034
    %3443 = vmatprep.subr.mxu0 0.0
    %3444 = vmatpush1.msra.mxu0 %v3035
    %3445 = vmatprep.subr.mxu0 0.0
    %3446 = vmatpush1.msra.mxu0 %v3036
    %3447 = vmatprep.subr.mxu0 0.0
    %3448 = vmatpush1.msra.mxu0 %v3037
    %3449 = vmatprep.subr.mxu0 0.0
    %3450 = vmatpush1.msra.mxu0 %v3038
    %3451 = vmatprep.subr.mxu0 0.0
    %3452 = vmatpush1.msra.mxu0 %v3039
    %3453 = vmatprep.subr.mxu0 0.0
    %3454 = vmatpush1.msra.mxu0 %v3040
    %3455 = vmatprep.subr.mxu0 0.0
    %3456 = vmatpush1.msra.mxu0 %v3041
    %3457 = vmatprep.subr.mxu0 0.0
    %3458 = vmatpush1.msra.mxu0 %v3042
    %3459 = vmatprep.subr.mxu0 0.0
    %3460 = vmatpush1.msra.mxu0 %v3043
    %3461 = vmatprep.subr.mxu0 0.0
    %3462 = vmatpush1.msra.mxu0 %v3044
    %3463 = vmatprep.subr.mxu0 0.0
    %3464 = vmatpush1.msra.mxu0 %v3045
    %3465 = vmatprep.subr.mxu0 0.0
    %3466 = vmatpush1.msra.mxu0 %v3046
    %3467 = vmatprep.subr.mxu0 0.0
    %3468 = vmatpush1.msra.mxu0 %v3047
    %3469 = vmatprep.subr.mxu0 0.0
    %3470 = vmatpush1.msra.mxu0 %v3048
    %3471 = vmatprep.subr.mxu0 0.0
    %3472 = vmatpush1.msra.mxu0 %v3049
    %3473 = vmatprep.subr.mxu0 0.0
    %3474 = vmatpush1.msra.mxu0 %v3050
    %3475 = vmatprep.mubr.f32.mxu0 %v2898
    %3476 = vmatmul.mubr.f32.gmra.mrb[0].mxu0 %v2897
    %v3477 = vpop.f32.mrb[0].mxu0
    %v3478 = vadd.f32 %v3403, %v3477
    %v3479 = vpop.f32.mrb[0].mxu0
    %3480 = vmatprep.mubr.f32.mxu0 %v2914
    %3481 = vmatmul.mubr.f32.gmra.mrb[0].mxu0 %v2913
    %v3482 = vpop.f32.mrb[0].mxu0
    %v3483 = vadd.f32 %v3408, %v3482
    %v3484 = vpop.f32.mrb[0].mxu0
    %3485 = vdwg.mxu0
    %3486 = vmatprep.subr.mxu0 0.0
    %3487 = vmatpush1.msra.mxu0 %v3051
    %3488 = vmatprep.subr.mxu0 0.0
    %3489 = vmatpush1.msra.mxu0 %v3052
    %3490 = vmatprep.subr.mxu0 0.0
    %3491 = vmatpush1.msra.mxu0 %v3053
    %3492 = vmatprep.subr.mxu0 0.0
    %3493 = vmatpush1.msra.mxu0 %v3054
    %3494 = vmatprep.subr.mxu0 0.0
    %3495 = vmatpush1.msra.mxu0 %v3055
    %3496 = vmatprep.subr.mxu0 0.0
    %3497 = vmatpush1.msra.mxu0 %v3056
    %3498 = vmatprep.subr.mxu0 0.0
    %3499 = vmatpush1.msra.mxu0 %v3057
    %3500 = vmatprep.subr.mxu0 0.0
    %3501 = vmatpush1.msra.mxu0 %v3058
    %3502 = vmatprep.subr.mxu0 0.0
    %3503 = vmatpush1.msra.mxu0 %v3059
    %3504 = vmatprep.subr.mxu0 0.0
    %3505 = vmatpush1.msra.mxu0 %v3060
    %3506 = vmatprep.subr.mxu0 0.0
    %3507 = vmatpush1.msra.mxu0 %v3061
    %3508 = vmatprep.subr.mxu0 0.0
    %3509 = vmatpush1.msra.mxu0 %v3062
    %3510 = vmatprep.subr.mxu0 0.0
    %3511 = vmatpush1.msra.mxu0 %v3063
    %3512 = vmatprep.subr.mxu0 0.0
    %3513 = vmatpush1.msra.mxu0 %v3064
    %3514 = vmatprep.subr.mxu0 0.0
    %3515 = vmatpush1.msra.mxu0 %v3065
    %3516 = vmatprep.subr.mxu0 0.0
    %3517 = vmatpush1.msra.mxu0 %v3066
    %3518 = vmatprep.subr.mxu0 0.0
    %3519 = vmatpush1.msra.mxu0 %v3067
    %3520 = vmatprep.subr.mxu0 0.0
    %3521 = vmatpush1.msra.mxu0 %v3068
    %3522 = vmatprep.subr.mxu0 0.0
    %3523 = vmatpush1.msra.mxu0 %v3069
    %3524 = vmatprep.subr.mxu0 0.0
    %3525 = vmatpush1.msra.mxu0 %v3070
    %3526 = vmatprep.subr.mxu0 0.0
    %3527 = vmatpush1.msra.mxu0 %v3071
    %3528 = vmatprep.subr.mxu0 0.0
    %3529 = vmatpush1.msra.mxu0 %v3072
    %3530 = vmatprep.subr.mxu0 0.0
    %3531 = vmatpush1.msra.mxu0 %v3073
    %3532 = vmatprep.subr.mxu0 0.0
    %3533 = vmatpush1.msra.mxu0 %v3074
    %3534 = vmatprep.subr.mxu0 0.0
    %3535 = vmatpush1.msra.mxu0 %v3075
    %3536 = vmatprep.subr.mxu0 0.0
    %3537 = vmatpush1.msra.mxu0 %v3076
    %3538 = vmatprep.subr.mxu0 0.0
    %3539 = vmatpush1.msra.mxu0 %v3077
    %3540 = vmatprep.subr.mxu0 0.0
    %3541 = vmatpush1.msra.mxu0 %v3078
    %3542 = vmatprep.subr.mxu0 0.0
    %3543 = vmatpush1.msra.mxu0 %v3079
    %3544 = vmatprep.subr.mxu0 0.0
    %3545 = vmatpush1.msra.mxu0 %v3080
    %3546 = vmatprep.subr.mxu0 0.0
    %3547 = vmatpush1.msra.mxu0 %v3081
    %3548 = vmatprep.subr.mxu0 0.0
    %3549 = vmatpush1.msra.mxu0 %v3082
    %3550 = vmatprep.mubr.f32.mxu0 %v2900
    %3551 = vmatmul.mubr.f32.gmra.mrb[0].mxu0 %v2899
    %v3552 = vpop.f32.mrb[0].mxu0
    %v3553 = vadd.f32 %v3478, %v3552
    %v3554 = vpop.f32.mrb[0].mxu0
    %3555 = vmatprep.mubr.f32.mxu0 %v2916
    %3556 = vmatmul.mubr.f32.gmra.mrb[0].mxu0 %v2915
    %v3557 = vpop.f32.mrb[0].mxu0
    %v3558 = vadd.f32 %v3483, %v3557
    %v3559 = vpop.f32.mrb[0].mxu0
    %3560 = vdwg.mxu0
    %3561 = vmatprep.subr.mxu0 0.0
    %3562 = vmatpush1.msra.mxu0 %v3083
    %3563 = vmatprep.subr.mxu0 0.0
    %3564 = vmatpush1.msra.mxu0 %v3084
    %3565 = vmatprep.subr.mxu0 0.0
    %3566 = vmatpush1.msra.mxu0 %v3085
    %3567 = vmatprep.subr.mxu0 0.0
    %3568 = vmatpush1.msra.mxu0 %v3086
    %3569 = vmatprep.subr.mxu0 0.0
    %3570 = vmatpush1.msra.mxu0 %v3087
    %3571 = vmatprep.subr.mxu0 0.0
    %3572 = vmatpush1.msra.mxu0 %v3088
    %3573 = vmatprep.subr.mxu0 0.0
    %3574 = vmatpush1.msra.mxu0 %v3089
    %3575 = vmatprep.subr.mxu0 0.0
    %3576 = vmatpush1.msra.mxu0 %v3090
    %3577 = vmatprep.subr.mxu0 0.0
    %3578 = vmatpush1.msra.mxu0 %v3091
    %3579 = vmatprep.subr.mxu0 0.0
    %3580 = vmatpush1.msra.mxu0 %v3092
    %3581 = vmatprep.subr.mxu0 0.0
    %3582 = vmatpush1.msra.mxu0 %v3093
    %3583 = vmatprep.subr.mxu0 0.0
    %3584 = vmatpush1.msra.mxu0 %v3094
    %3585 = vmatprep.subr.mxu0 0.0
    %3586 = vmatpush1.msra.mxu0 %v3095
    %3587 = vmatprep.subr.mxu0 0.0
    %3588 = vmatpush1.msra.mxu0 %v3096
    %3589 = vmatprep.subr.mxu0 0.0
    %3590 = vmatpush1.msra.mxu0 %v3097
    %3591 = vmatprep.subr.mxu0 0.0
    %3592 = vmatpush1.msra.mxu0 %v3098
    %3593 = vmatprep.subr.mxu0 0.0
    %3594 = vmatpush1.msra.mxu0 %v3099
    %3595 = vmatprep.subr.mxu0 0.0
    %3596 = vmatpush1.msra.mxu0 %v3100
    %3597 = vmatprep.subr.mxu0 0.0
    %3598 = vmatpush1.msra.mxu0 %v3101
    %3599 = vmatprep.subr.mxu0 0.0
    %3600 = vmatpush1.msra.mxu0 %v3102
    %3601 = vmatprep.subr.mxu0 0.0
    %3602 = vmatpush1.msra.mxu0 %v3103
    %3603 = vmatprep.subr.mxu0 0.0
    %3604 = vmatpush1.msra.mxu0 %v3104
    %3605 = vmatprep.subr.mxu0 0.0
    %3606 = vmatpush1.msra.mxu0 %v3105
    %3607 = vmatprep.subr.mxu0 0.0
    %3608 = vmatpush1.msra.mxu0 %v3106
    %3609 = vmatprep.subr.mxu0 0.0
    %3610 = vmatpush1.msra.mxu0 %v3107
    %3611 = vmatprep.subr.mxu0 0.0
    %3612 = vmatpush1.msra.mxu0 %v3108
    %3613 = vmatprep.subr.mxu0 0.0
    %3614 = vmatpush1.msra.mxu0 %v3109
    %3615 = vmatprep.subr.mxu0 0.0
    %3616 = vmatpush1.msra.mxu0 %v3110
    %3617 = vmatprep.subr.mxu0 0.0
    %3618 = vmatpush1.msra.mxu0 %v3111
    %3619 = vmatprep.subr.mxu0 0.0
    %3620 = vmatpush1.msra.mxu0 %v3112
    %3621 = vmatprep.subr.mxu0 0.0
    %3622 = vmatpush1.msra.mxu0 %v3113
    %3623 = vmatprep.subr.mxu0 0.0
    %3624 = vmatpush1.msra.mxu0 %v3114
    %3625 = vmatprep.mubr.f32.mxu0 %v2902
    %3626 = vmatmul.mubr.f32.gmra.mrb[0].mxu0 %v2901
    %v3627 = vpop.f32.mrb[0].mxu0
    %v3628 = vadd.f32 %v3553, %v3627
    %v3629 = vpop.f32.mrb[0].mxu0
    %3630 = vmatprep.mubr.f32.mxu0 %v2918
    %3631 = vmatmul.mubr.f32.gmra.mrb[0].mxu0 %v2917
    %v3632 = vpop.f32.mrb[0].mxu0
    %v3633 = vadd.f32 %v3558, %v3632
    %v3634 = vpop.f32.mrb[0].mxu0
    %3635 = vdwg.mxu0
    %3636 = vmatprep.subr.mxu0 0.0
    %3637 = vmatpush1.msra.mxu0 %v3115
    %3638 = vmatprep.subr.mxu0 0.0
    %3639 = vmatpush1.msra.mxu0 %v3116
    %3640 = vmatprep.subr.mxu0 0.0
    %3641 = vmatpush1.msra.mxu0 %v3117
    %3642 = vmatprep.subr.mxu0 0.0
    %3643 = vmatpush1.msra.mxu0 %v3118
    %3644 = vmatprep.subr.mxu0 0.0
    %3645 = vmatpush1.msra.mxu0 %v3119
    %3646 = vmatprep.subr.mxu0 0.0
    %3647 = vmatpush1.msra.mxu0 %v3120
    %3648 = vmatprep.subr.mxu0 0.0
    %3649 = vmatpush1.msra.mxu0 %v3121
    %3650 = vmatprep.subr.mxu0 0.0
    %3651 = vmatpush1.msra.mxu0 %v3122
    %3652 = vmatprep.subr.mxu0 0.0
    %3653 = vmatpush1.msra.mxu0 %v3123
    %3654 = vmatprep.subr.mxu0 0.0
    %3655 = vmatpush1.msra.mxu0 %v3124
    %3656 = vmatprep.subr.mxu0 0.0
    %3657 = vmatpush1.msra.mxu0 %v3125
    %3658 = vmatprep.subr.mxu0 0.0
    %3659 = vmatpush1.msra.mxu0 %v3126
    %3660 = vmatprep.subr.mxu0 0.0
    %3661 = vmatpush1.msra.mxu0 %v3127
    %3662 = vmatprep.subr.mxu0 0.0
    %3663 = vmatpush1.msra.mxu0 %v3128
    %3664 = vmatprep.subr.mxu0 0.0
    %3665 = vmatpush1.msra.mxu0 %v3129
    %3666 = vmatprep.subr.mxu0 0.0
    %3667 = vmatpush1.msra.mxu0 %v3130
    %3668 = vmatprep.subr.mxu0 0.0
    %3669 = vmatpush1.msra.mxu0 %v3131
    %3670 = vmatprep.subr.mxu0 0.0
    %3671 = vmatpush1.msra.mxu0 %v3132
    %3672 = vmatprep.subr.mxu0 0.0
    %3673 = vmatpush1.msra.mxu0 %v3133
    %3674 = vmatprep.subr.mxu0 0.0
    %3675 = vmatpush1.msra.mxu0 %v3134
    %3676 = vmatprep.subr.mxu0 0.0
    %3677 = vmatpush1.msra.mxu0 %v3135
    %3678 = vmatprep.subr.mxu0 0.0
    %3679 = vmatpush1.msra.mxu0 %v3136
    %3680 = vmatprep.subr.mxu0 0.0
    %3681 = vmatpush1.msra.mxu0 %v3137
    %3682 = vmatprep.subr.mxu0 0.0
    %3683 = vmatpush1.msra.mxu0 %v3138
    %3684 = vmatprep.subr.mxu0 0.0
    %3685 = vmatpush1.msra.mxu0 %v3139
    %3686 = vmatprep.subr.mxu0 0.0
    %3687 = vmatpush1.msra.mxu0 %v3140
    %3688 = vmatprep.subr.mxu0 0.0
    %3689 = vmatpush1.msra.mxu0 %v3141
    %3690 = vmatprep.subr.mxu0 0.0
    %3691 = vmatpush1.msra.mxu0 %v3142
    %3692 = vmatprep.subr.mxu0 0.0
    %3693 = vmatpush1.msra.mxu0 %v3143
    %3694 = vmatprep.subr.mxu0 0.0
    %3695 = vmatpush1.msra.mxu0 %v3144
    %3696 = vmatprep.subr.mxu0 0.0
    %3697 = vmatpush1.msra.mxu0 %v3145
    %3698 = vmatprep.subr.mxu0 0.0
    %3699 = vmatpush1.msra.mxu0 %v3146
    %3700 = vmatprep.mubr.f32.mxu0 %v2904
    %3701 = vmatmul.mubr.f32.gmra.mrb[0].mxu0 %v2903
    %v3702 = vpop.f32.mrb[0].mxu0
    %v3703 = vadd.f32 %v3628, %v3702
    %v3704 = vpop.f32.mrb[0].mxu0
    %3705 = vmatprep.mubr.f32.mxu0 %v2920
    %3706 = vmatmul.mubr.f32.gmra.mrb[0].mxu0 %v2919
    %v3707 = vpop.f32.mrb[0].mxu0
    %v3708 = vadd.f32 %v3633, %v3707
    %v3709 = vpop.f32.mrb[0].mxu0
    %3710 = vdwg.mxu0
    %3711 = vmatprep.subr.mxu0 0.0
    %3712 = vmatpush1.msra.mxu0 %v3147
    %3713 = vmatprep.subr.mxu0 0.0
    %3714 = vmatpush1.msra.mxu0 %v3148
    %3715 = vmatprep.subr.mxu0 0.0
    %3716 = vmatpush1.msra.mxu0 %v3149
    %3717 = vmatprep.subr.mxu0 0.0
    %3718 = vmatpush1.msra.mxu0 %v3150
    %3719 = vmatprep.subr.mxu0 0.0
    %3720 = vmatpush1.msra.mxu0 %v3151
    %3721 = vmatprep.subr.mxu0 0.0
    %3722 = vmatpush1.msra.mxu0 %v3152
    %3723 = vmatprep.subr.mxu0 0.0
    %3724 = vmatpush1.msra.mxu0 %v3153
    %3725 = vmatprep.subr.mxu0 0.0
    %3726 = vmatpush1.msra.mxu0 %v3154
    %3727 = vmatprep.subr.mxu0 0.0
    %3728 = vmatpush1.msra.mxu0 %v3155
    %3729 = vmatprep.subr.mxu0 0.0
    %3730 = vmatpush1.msra.mxu0 %v3156
    %3731 = vmatprep.subr.mxu0 0.0
    %3732 = vmatpush1.msra.mxu0 %v3157
    %3733 = vmatprep.subr.mxu0 0.0
    %3734 = vmatpush1.msra.mxu0 %v3158
    %3735 = vmatprep.subr.mxu0 0.0
    %3736 = vmatpush1.msra.mxu0 %v3159
    %3737 = vmatprep.subr.mxu0 0.0
    %3738 = vmatpush1.msra.mxu0 %v3160
    %3739 = vmatprep.subr.mxu0 0.0
    %3740 = vmatpush1.msra.mxu0 %v3161
    %3741 = vmatprep.subr.mxu0 0.0
    %3742 = vmatpush1.msra.mxu0 %v3162
    %3743 = vmatprep.subr.mxu0 0.0
    %3744 = vmatpush1.msra.mxu0 %v3163
    %3745 = vmatprep.subr.mxu0 0.0
    %3746 = vmatpush1.msra.mxu0 %v3164
    %3747 = vmatprep.subr.mxu0 0.0
    %3748 = vmatpush1.msra.mxu0 %v3165
    %3749 = vmatprep.subr.mxu0 0.0
    %3750 = vmatpush1.msra.mxu0 %v3166
    %3751 = vmatprep.subr.mxu0 0.0
    %3752 = vmatpush1.msra.mxu0 %v3167
    %3753 = vmatprep.subr.mxu0 0.0
    %3754 = vmatpush1.msra.mxu0 %v3168
    %3755 = vmatprep.subr.mxu0 0.0
    %3756 = vmatpush1.msra.mxu0 %v3169
    %3757 = vmatprep.subr.mxu0 0.0
    %3758 = vmatpush1.msra.mxu0 %v3170
    %3759 = vmatprep.subr.mxu0 0.0
    %3760 = vmatpush1.msra.mxu0 %v3171
    %3761 = vmatprep.subr.mxu0 0.0
    %3762 = vmatpush1.msra.mxu0 %v3172
    %3763 = vmatprep.subr.mxu0 0.0
    %3764 = vmatpush1.msra.mxu0 %v3173
    %3765 = vmatprep.subr.mxu0 0.0
    %3766 = vmatpush1.msra.mxu0 %v3174
    %3767 = vmatprep.subr.mxu0 0.0
    %3768 = vmatpush1.msra.mxu0 %v3175
    %3769 = vmatprep.subr.mxu0 0.0
    %3770 = vmatpush1.msra.mxu0 %v3176
    %3771 = vmatprep.subr.mxu0 0.0
    %3772 = vmatpush1.msra.mxu0 %v3177
    %3773 = vmatprep.subr.mxu0 0.0
    %3774 = vmatpush1.msra.mxu0 %v3178
    %3775 = vmatprep.mubr.f32.mxu0 %v2906
    %3776 = vmatmul.mubr.f32.gmra.mrb[0].mxu0 %v2905
    %v3777 = vpop.f32.mrb[0].mxu0
    %v3778 = vadd.f32 %v3703, %v3777
    %v3779 = vpop.f32.mrb[0].mxu0
    %3780 = vmatprep.mubr.f32.mxu0 %v2922
    %3781 = vmatmul.mubr.f32.gmra.mrb[0].mxu0 %v2921
    %v3782 = vpop.f32.mrb[0].mxu0
    %v3783 = vadd.f32 %v3708, %v3782
    %v3784 = vpop.f32.mrb[0].mxu0
    %3785 = vdwg.mxu0
    %v3786 = vadd.f32 %v2080, %v3778
    %v3787 = vadd.f32 %v2081, %v3783
    %3788 = vmatprep.subr.mxu0 0.0
    %3789 = vmatpush1.msra.mxu0 %v3786
    %3790 = vmatprep.subr.mxu0 0.0
    %3791 = vmatpush1.msra.mxu0 %v3787
    %3792 = vmatprep.subr.mxu0 0.0
    %3793 = vmatpush1.msra.mxu0 0.0
    %3794 = vmatprep.subr.mxu0 0.0
    %3795 = vmatpush1.msra.mxu0 0.0
    %3796 = vmatprep.subr.mxu0 0.0
    %3797 = vmatpush1.msra.mxu0 0.0
    %3798 = vmatprep.subr.mxu0 0.0
    %3799 = vmatpush1.msra.mxu0 0.0
    %3800 = vmatprep.subr.mxu0 0.0
    %3801 = vmatpush1.msra.mxu0 0.0
    %3802 = vmatprep.subr.mxu0 0.0
    %3803 = vmatpush1.msra.mxu0 0.0
    %3804 = vmatprep.subr.mxu0 0.0
    %3805 = vmatpush1.msra.mxu0 0.0
    %3806 = vmatprep.subr.mxu0 0.0
    %3807 = vmatpush1.msra.mxu0 0.0
    %3808 = vmatprep.subr.mxu0 0.0
    %3809 = vmatpush1.msra.mxu0 0.0
    %3810 = vmatprep.subr.mxu0 0.0
    %3811 = vmatpush1.msra.mxu0 0.0
    %3812 = vmatprep.subr.mxu0 0.0
    %3813 = vmatpush1.msra.mxu0 0.0
    %3814 = vmatprep.subr.mxu0 0.0
    %3815 = vmatpush1.msra.mxu0 0.0
    %3816 = vmatprep.subr.mxu0 0.0
    %3817 = vmatpush1.msra.mxu0 0.0
    %3818 = vmatprep.subr.mxu0 0.0
    %3819 = vmatpush1.msra.mxu0 0.0
    %3820 = vmatprep.subr.mxu0 0.0
    %3821 = vmatpush1.msra.mxu0 0.0
    %3822 = vmatprep.subr.mxu0 0.0
    %3823 = vmatpush1.msra.mxu0 0.0
    %3824 = vmatprep.subr.mxu0 0.0
    %3825 = vmatpush1.msra.mxu0 0.0
    %3826 = vmatprep.subr.mxu0 0.0
    %3827 = vmatpush1.msra.mxu0 0.0
    %3828 = vmatprep.subr.mxu0 0.0
    %3829 = vmatpush1.msra.mxu0 0.0
    %3830 = vmatprep.subr.mxu0 0.0
    %3831 = vmatpush1.msra.mxu0 0.0
    %3832 = vmatprep.subr.mxu0 0.0
    %3833 = vmatpush1.msra.mxu0 0.0
    %3834 = vmatprep.subr.mxu0 0.0
    %3835 = vmatpush1.msra.mxu0 0.0
    %3836 = vmatprep.subr.mxu0 0.0
    %3837 = vmatpush1.msra.mxu0 0.0
    %3838 = vmatprep.subr.mxu0 0.0
    %3839 = vmatpush1.msra.mxu0 0.0
    %3840 = vmatprep.subr.mxu0 0.0
    %3841 = vmatpush1.msra.mxu0 0.0
    %3842 = vmatprep.subr.mxu0 0.0
    %3843 = vmatpush1.msra.mxu0 0.0
    %3844 = vmatprep.subr.mxu0 0.0
    %3845 = vmatpush1.msra.mxu0 0.0
    %3846 = vmatprep.subr.mxu0 0.0
    %3847 = vmatpush1.msra.mxu0 0.0
    %3848 = vmatprep.subr.mxu0 0.0
    %3849 = vmatpush1.msra.mxu0 0.0
    %3850 = vmatprep.subr.mxu0 0.0
    %3851 = vmatpush1.msra.mxu0 0.0
    %3852 = vmatprep.mubr.f32.mxu0 0.0
    %3853 = vmatmul.mubr.f32.gmra.mrb[0].mxu0 %v1905
    %v3854 = vpop.f32.mrb[0].mxu0
    %v3855 = vadd.f32 0.0, %v3854
    %v3856 = vpop.f32.mrb[0].mxu0
    %3857 = vmatprep.mubr.f32.mxu0 0.0
    %3858 = vmatmul.mubr.f32.gmra.mrb[0].mxu0 %v1908
    %v3859 = vpop.f32.mrb[0].mxu0
    %v3860 = vadd.f32 0.0, %v3859
    %v3861 = vpop.f32.mrb[0].mxu0
    %3862 = vdwg.mxu0
    %v3863 = vsel %vm764, %v3855, 0.0
    %3864 = vadd.xlane.f32.xlu0 %v3863
    %v3865 = vpop.xlane.xlu0 %3864
    %v3866 = vsel %vm764, %v3860, 0.0
    %3867 = vadd.xlane.f32.xlu0 %v3866
    %v3868 = vpop.xlane.xlu0 %3867
    %v3869 = vsub.f32 %v3786, %v3865
    %v3870 = vsub.f32 %v3787, %v3868
    %v3871 = vmul.f32 %v3869, %v3869
    %v3872 = vmul.f32 %v3870, %v3870
    %3873 = vmatprep.subr.mxu0 0.0
    %3874 = vmatpush1.msra.mxu0 %v3871
    %3875 = vmatprep.subr.mxu0 0.0
    %3876 = vmatpush1.msra.mxu0 %v3872
    %3877 = vmatprep.subr.mxu0 0.0
    %3878 = vmatpush1.msra.mxu0 0.0
    %3879 = vmatprep.subr.mxu0 0.0
    %3880 = vmatpush1.msra.mxu0 0.0
    %3881 = vmatprep.subr.mxu0 0.0
    %3882 = vmatpush1.msra.mxu0 0.0
    %3883 = vmatprep.subr.mxu0 0.0
    %3884 = vmatpush1.msra.mxu0 0.0
    %3885 = vmatprep.subr.mxu0 0.0
    %3886 = vmatpush1.msra.mxu0 0.0
    %3887 = vmatprep.subr.mxu0 0.0
    %3888 = vmatpush1.msra.mxu0 0.0
    %3889 = vmatprep.subr.mxu0 0.0
    %3890 = vmatpush1.msra.mxu0 0.0
    %3891 = vmatprep.subr.mxu0 0.0
    %3892 = vmatpush1.msra.mxu0 0.0
    %3893 = vmatprep.subr.mxu0 0.0
    %3894 = vmatpush1.msra.mxu0 0.0
    %3895 = vmatprep.subr.mxu0 0.0
    %3896 = vmatpush1.msra.mxu0 0.0
    %3897 = vmatprep.subr.mxu0 0.0
    %3898 = vmatpush1.msra.mxu0 0.0
    %3899 = vmatprep.subr.mxu0 0.0
    %3900 = vmatpush1.msra.mxu0 0.0
    %3901 = vmatprep.subr.mxu0 0.0
    %3902 = vmatpush1.msra.mxu0 0.0
    %3903 = vmatprep.subr.mxu0 0.0
    %3904 = vmatpush1.msra.mxu0 0.0
    %3905 = vmatprep.subr.mxu0 0.0
    %3906 = vmatpush1.msra.mxu0 0.0
    %3907 = vmatprep.subr.mxu0 0.0
    %3908 = vmatpush1.msra.mxu0 0.0
    %3909 = vmatprep.subr.mxu0 0.0
    %3910 = vmatpush1.msra.mxu0 0.0
    %3911 = vmatprep.subr.mxu0 0.0
    %3912 = vmatpush1.msra.mxu0 0.0
    %3913 = vmatprep.subr.mxu0 0.0
    %3914 = vmatpush1.msra.mxu0 0.0
    %3915 = vmatprep.subr.mxu0 0.0
    %3916 = vmatpush1.msra.mxu0 0.0
    %3917 = vmatprep.subr.mxu0 0.0
    %3918 = vmatpush1.msra.mxu0 0.0
    %3919 = vmatprep.subr.mxu0 0.0
    %3920 = vmatpush1.msra.mxu0 0.0
    %3921 = vmatprep.subr.mxu0 0.0
    %3922 = vmatpush1.msra.mxu0 0.0
    %3923 = vmatprep.subr.mxu0 0.0
    %3924 = vmatpush1.msra.mxu0 0.0
    %3925 = vmatprep.subr.mxu0 0.0
    %3926 = vmatpush1.msra.mxu0 0.0
    %3927 = vmatprep.subr.mxu0 0.0
    %3928 = vmatpush1.msra.mxu0 0.0
    %3929 = vmatprep.subr.mxu0 0.0
    %3930 = vmatpush1.msra.mxu0 0.0
    %3931 = vmatprep.subr.mxu0 0.0
    %3932 = vmatpush1.msra.mxu0 0.0
    %3933 = vmatprep.subr.mxu0 0.0
    %3934 = vmatpush1.msra.mxu0 0.0
    %3935 = vmatprep.subr.mxu0 0.0
    %3936 = vmatpush1.msra.mxu0 0.0
    %3937 = vmatprep.mubr.f32.mxu0 0.0
    %3938 = vmatmul.mubr.f32.gmra.mrb[0].mxu0 %v1905
    %v3939 = vpop.f32.mrb[0].mxu0
    %v3940 = vadd.f32 0.0, %v3939
    %v3941 = vpop.f32.mrb[0].mxu0
    %3942 = vmatprep.mubr.f32.mxu0 0.0
    %3943 = vmatmul.mubr.f32.gmra.mrb[0].mxu0 %v1908
    %v3944 = vpop.f32.mrb[0].mxu0
    %v3945 = vadd.f32 0.0, %v3944
    %v3946 = vpop.f32.mrb[0].mxu0
    %3947 = vdwg.mxu0
    %v3948 = vsel %vm764, %v3940, 0.0
    %3949 = vadd.xlane.f32.xlu0 %v3948
    %v3950 = vpop.xlane.xlu0 %3949
    %v3951 = vsel %vm764, %v3945, 0.0
    %3952 = vadd.xlane.f32.xlu0 %v3951
    %v3953 = vpop.xlane.xlu0 %3952
    %v3954 = vadd.f32 %v3950, 1e-05
    %v3955 = vadd.f32 %v3953, 1e-05
    %v3956 = vrsqrt.pop %v3954
    %v3957 = vrsqrt.pop %v3955
    %v3958 = vmul.f32 %v3869, %v3956
    %v3959 = vmul.f32 %v3870, %v3957
    %3960 = vst.msk [vmem:[#allocation5] sm:$0xff] %vm764, %v3958
    %3961 = vst.msk [vmem:[#allocation5 + $0x8] sm:$0xff] %vm764, %v3959
    // Predicated region
    $region130: #{decoder_forward.1} parent=1 // pred_check
      _
    $region131: #{decoder_forward.1} parent=1 // pred_check_branch
      %3963 = sbr.rel (0) target = $region133
    $region132: #{decoder_forward.1} parent=1 // pred_region
      %s3965 = ssub.s32 256, 256
      %3966 = vsyncadd [#allocation6], %s3965
      %s3967 = sshll.u32 [#allocation5], 4
      %s3968 = int_to_ptr.vmem [resolvable:$true] %s3967
      %3973 = dma.vmem_to_hbm [thread:$0]  %s3968, 256, %s17, [#allocation6], 128, 128, 8
    $region133: #{decoder_forward.1} parent=1 // pred_fallthru
      _
    // Predicated region
    $region134: #{decoder_forward.1} parent=1 // pred_check
      _
    $region135: #{decoder_forward.1} parent=1 // pred_check_branch
      %3975 = sbr.rel (0) target = $region137
    $region136: #{decoder_forward.1} parent=1 // pred_region
      %3976 = dma.done [#allocation6], 256
    $region137: #{decoder_forward.1} parent=1 // pred_fallthru
      _
    %3977 = vsyncpa [#allocation6], 1
  %3978 = vsyncmov [#allocation4]
  %s3979 = vpop.sfrf %3978
  %p3980 = scmp.eq.s32.totalorder %s3979, 0
  %p3981 = pneg %p3980
  %3983 = shalt.err (%p3981)
  %s3984 = scalar_lea.sflag [#allocation4], 1
  %3985 = vsyncmov %s3984
  %s3986 = vpop.sfrf %3985
  %p3987 = scmp.eq.s32.totalorder %s3986, 0
  %p3988 = pneg %p3987
  %3990 = shalt.err (%p3988)

</llo_original>
